<compile_context>
chip_gen: v7x
topology: tpu7x:2x2x1
jax: 0.10.0
libtpu: 0.0.40
codegen_flags: <defaults>
</compile_context>

<pallas_src>
import math
import functools

import jax
import jax.numpy as jnp
from jax.experimental import pallas as pl
from jax.experimental.pallas import tpu as pltpu


# ---------------------------------------------------------------------------
# Fused kernel: all encoder layers + classifier for one batch chunk
# ---------------------------------------------------------------------------
def fused_kernel(x_ref, mask_ref,
                 wq_ref, bq_ref, wk_ref, bk_ref, wv_ref, bv_ref,
                 wo_ref, bo_ref, g1_ref, be1_ref,
                 w1_ref, b1_ref, w2_ref, b2_ref, g2_ref, be2_ref,
                 wc_ref, bc_ref, o_ref, *, n_heads, mxu_dtype):
    x3 = x_ref[...].astype(jnp.float32)          # (Bc, S, D)
    mask = mask_ref[...].astype(jnp.float32)     # (Bc, 1, S)
    Bc, S, D = x3.shape
    n_layers = wq_ref.shape[0]
    dk = D // n_heads
    scale = 1.0 / math.sqrt(dk)
    inv_d = 1.0 / D

    # Additive key-padding bias, broadcast ONCE (hoisted out of layer/head loops).
    bias = jnp.broadcast_to(
        jnp.where(mask == 0.0, jnp.float32(-1e9), jnp.float32(0.0)),
        (Bc, S, S))

    # Ones columns for MXU-offloaded lane reductions (softmax denom, LayerNorm).
    ones_d = jnp.ones((D, 1), jnp.float32)
    ones_s = jnp.ones((S, 1), jnp.float32)

    def mm(a, b):
        # MXU matmul; operands cast to mxu_dtype (bf16 default), f32 accumulate.
        return jnp.dot(a.astype(mxu_dtype), b.astype(mxu_dtype),
                       preferred_element_type=jnp.float32)

    def layer_norm(h, gamma, beta):
        # Lane-axis sums via f32 ones-dots on the MXU (frees XLU/VALU slots).
        s1 = jnp.dot(h, ones_d, preferred_element_type=jnp.float32)
        s2 = jnp.dot(h * h, ones_d, preferred_element_type=jnp.float32)
        mu = s1 * inv_d
        var = jnp.maximum(s2 * inv_d - mu * mu, 0.0)   # guard tiny cancellation
        return (h - mu) * jax.lax.rsqrt(var + 1e-5) * gamma + beta

    x2 = x3.reshape(Bc * S, D)                   # flat (rows, D) slab for matmuls

    def layer_body(l, x2):
        # Hoisted Ref reads: each weight block is loaded from VMEM exactly once.
        wq, bq = wq_ref[l], bq_ref[l]
        wk, bk = wk_ref[l], bk_ref[l]
        wv, bv = wv_ref[l], bv_ref[l]
        wo, bo = wo_ref[l], bo_ref[l]
        g1, be1 = g1_ref[l], be1_ref[l]
        w1, b1 = w1_ref[l], b1_ref[l]
        w2, b2 = w2_ref[l], b2_ref[l]
        g2, be2 = g2_ref[l], be2_ref[l]

        # ---- multi-head self attention ----
        q = (mm(x2, wq) + bq).reshape(Bc, S, D)
        k = (mm(x2, wk) + bk).reshape(Bc, S, D)
        v = (mm(x2, wv) + bv).reshape(Bc, S, D)

        ctx_heads = []
        for h in range(n_heads):                 # static unroll over heads
            sl = slice(h * dk, (h + 1) * dk)
            qh, kh, vh = q[..., sl], k[..., sl], v[..., sl]      # (Bc, S, dk)
            scores = jnp.einsum('bqd,bkd->bqk',
                                qh.astype(mxu_dtype), kh.astype(mxu_dtype),
                                preferred_element_type=jnp.float32) * scale
            scores = scores + bias
            m = jnp.max(scores, axis=-1, keepdims=True)
            e = jnp.exp(scores - m)
            # Row-sum over keys on the MXU (ones-dot) instead of an XLU reduce.
            denom = jnp.dot(e.reshape(Bc * S, S), ones_s,
                            preferred_element_type=jnp.float32).reshape(Bc, S, 1)
            # approx=True uses the EUP; set approx=False for bit-level parity.
            p = e * pl.reciprocal(denom, approx=True)
            ctx_heads.append(
                jnp.einsum('bqk,bkd->bqd',
                           p.astype(mxu_dtype), vh.astype(mxu_dtype),
                           preferred_element_type=jnp.float32))   # (Bc, S, dk)

        # Per-head outputs placed into their lane slots of one slab, then a
        # SINGLE K=D W_o matmul (instead of n_heads tiny K=dk matmuls).
        ctx = jnp.concatenate(ctx_heads, axis=-1).reshape(Bc * S, D)
        attn_out = mm(ctx, wo) + bo

        # ---- residual + LayerNorm 1 (dropout = identity in eval) ----
        h1 = layer_norm(x2 + attn_out, g1, be1)

        # ---- position-wise feed forward ----
        f = jnp.maximum(mm(h1, w1) + b1, 0.0)
        f = mm(f, w2) + b2

        # ---- residual + LayerNorm 2 ----
        return layer_norm(h1 + f, g2, be2)

    if n_layers <= 4:
        for l in range(n_layers):                # static unroll; weights resident
            x2 = layer_body(l, x2)
    else:
        # Bound vreg live ranges at larger depth; dynamic leading-axis Ref
        # indexing (wq_ref[l]) is free.
        x2 = jax.lax.fori_loop(0, n_layers, layer_body, x2)

    # ---- classifier on the CLS (position 0) token; 128-lane padded output ----
    cls = x2.reshape(Bc, S, D)[:, 0, :]                       # (Bc, D)
    logits = mm(cls, wc_ref[...]) + bc_ref[...]               # (Bc, C_pad)
    o_ref[...] = logits.reshape(Bc, 1, logits.shape[-1]).astype(o_ref.dtype)


# ---------------------------------------------------------------------------
# Wrappers
# ---------------------------------------------------------------------------
def fused_encoder_classifier(x, mask, p, wc_pad, bc_pad, *, n_heads,
                             mxu_dtype=jnp.bfloat16):
    B, S, D = x.shape
    L = p["wq"].shape[0]
    d_ff = p["w1"].shape[-1]
    C_pad = wc_pad.shape[-1]

    # Grid collapse: a second grid step is a serial loop (+~0.35us, halved
    # matmul M-fill) unless each chunk has O(256) matmul rows.
    G = 2 if (B % 2 == 0 and (B // 2) * S >= 256) else 1
    Bc = B // G

    def wspec(shape):
        nd = len(shape)
        return pl.BlockSpec(shape, lambda g, _nd=nd: (0,) * _nd)

    in_specs = [
        pl.BlockSpec((Bc, S, D), lambda g: (g, 0, 0)),      # x  (batch chunk)
        pl.BlockSpec((Bc, 1, S), lambda g: (g, 0, 0)),      # mask
        wspec((L, D, D)), wspec((L, 1, D)),                 # wq, bq
        wspec((L, D, D)), wspec((L, 1, D)),                 # wk, bk
        wspec((L, D, D)), wspec((L, 1, D)),                 # wv, bv
        wspec((L, D, D)), wspec((L, 1, D)),                 # wo, bo
        wspec((L, 1, D)), wspec((L, 1, D)),                 # ln1 gamma/beta
        wspec((L, D, d_ff)), wspec((L, 1, d_ff)),           # w1, b1
        wspec((L, d_ff, D)), wspec((L, 1, D)),              # w2, b2
        wspec((L, 1, D)), wspec((L, 1, D)),                 # ln2 gamma/beta
        wspec((D, C_pad)), wspec((1, C_pad)),               # classifier (lane-padded)
    ]

    return pl.pallas_call(
        functools.partial(fused_kernel, n_heads=n_heads, mxu_dtype=mxu_dtype),
        out_shape=jax.ShapeDtypeStruct((B, 1, C_pad), jnp.float32),
        grid=(G,),
        in_specs=in_specs,
        out_specs=pl.BlockSpec((Bc, 1, C_pad), lambda g: (g, 0, 0)),
        compiler_params=pltpu.CompilerParams(
            # "parallel" vs "arbitrary" doesn't change codegen; only CORE_PARALLEL
            # would split across v7x TensorCores (not worth it at these sizes).
            dimension_semantics=("arbitrary",),
            vmem_limit_bytes=32 * 1024 * 1024,   # explicit budget (v7x-safe)
        ),
    )(x, mask,
      p["wq"], p["bq"], p["wk"], p["bk"], p["wv"], p["bv"],
      p["wo"], p["bo"], p["g1"], p["be1"],
      p["w1"], p["b1"], p["w2"], p["b2"], p["g2"], p["be2"],
      wc_pad, bc_pad)


def sentiment_transformer_forward(src, src_mask, params, d_model, n_heads,
                                  mxu_dtype=jnp.bfloat16):
    """src: (B, S) int32 token ids; src_mask: (B, S) {0,1}.

    bf16 MXU operands (f32 accumulate, f32 elementwise) by default on all
    generations; pass mxu_dtype=jnp.float32 for an exact-numerics validation path.
    """
    B, S = src.shape
    n_classes = params["wc"].shape[1]

    # TODO(synk): embedding + positional gathers stay in plain JAX (dynamic row
    # gather could be fused via PrefetchScalarGridSpec + pl.Element row gather;
    # negligible at these shapes).  Everything downstream is one fused kernel.
    src_emb = jnp.take(params["embedding"], src, axis=0) * math.sqrt(d_model)
    pos_emb = jnp.take(params["pos_embedding"], jnp.arange(S), axis=0)[None, :, :]
    x = (src_emb + pos_emb).astype(jnp.float32)        # dropout -> identity (eval)
    mask = src_mask.astype(jnp.float32).reshape(B, 1, S)

    # Pad classifier to 128 output lanes -> the only HBM store is lane-dense.
    C_pad = max(128, ((n_classes + 127) // 128) * 128)
    wc_pad = jnp.pad(params["wc"], ((0, 0), (0, C_pad - n_classes)))
    bc_pad = jnp.pad(params["bc"], ((0, 0), (0, C_pad - n_classes)))

    logits_pad = fused_encoder_classifier(x, mask, params, wc_pad, bc_pad,
                                          n_heads=n_heads, mxu_dtype=mxu_dtype)
    return logits_pad[:, 0, :n_classes]


# ---------------------------------------------------------------------------
# Deterministic parameter construction (per-layer weights stacked on axis 0)
# ---------------------------------------------------------------------------
def init_params(key, vocab_size, d_model, n_heads, n_layers, n_classes, max_len):
    d_ff = 4 * d_model
    keys = jax.random.split(key, 16)

    def dense(k, shape, scale=0.02):
        return (scale * jax.random.normal(k, shape)).astype(jnp.float32)

    L, D = n_layers, d_model
    return {
        "embedding": dense(keys[0], (vocab_size, D), 1.0),
        "pos_embedding": dense(keys[1], (max_len, D), 1.0),
        "wc": dense(keys[2], (D, n_classes)),
        "bc": jnp.zeros((1, n_classes), jnp.float32),
        # stacked per-layer weights (layer axis first) so one kernel sees them all
        "wq": dense(keys[3], (L, D, D)), "bq": jnp.zeros((L, 1, D), jnp.float32),
        "wk": dense(keys[4], (L, D, D)), "bk": jnp.zeros((L, 1, D), jnp.float32),
        "wv": dense(keys[5], (L, D, D)), "bv": jnp.zeros((L, 1, D), jnp.float32),
        "wo": dense(keys[6], (L, D, D)), "bo": jnp.zeros((L, 1, D), jnp.float32),
        "g1": jnp.ones((L, 1, D), jnp.float32), "be1": jnp.zeros((L, 1, D), jnp.float32),
        "w1": dense(keys[7], (L, D, d_ff)), "b1": jnp.zeros((L, 1, d_ff), jnp.float32),
        "w2": dense(keys[8], (L, d_ff, D)), "b2": jnp.zeros((L, 1, D), jnp.float32),
        "g2": jnp.ones((L, 1, D), jnp.float32), "be2": jnp.zeros((L, 1, D), jnp.float32),
    }


# ---------------------------------------------------------------------------
if __name__ == "__main__":
    # Small config consistent with the module's __init__.
    vocab_size, d_model, n_heads, n_layers = 50, 32, 4, 2
    n_classes, max_len = 2, 16
    B, S = 2, 8

    key = jax.random.PRNGKey(0)
    k_par, k_tok = jax.random.split(key)
    params = init_params(k_par, vocab_size, d_model, n_heads, n_layers,
                         n_classes, max_len)

    src = jax.random.randint(k_tok, (B, S), 0, vocab_size, dtype=jnp.int32)
    # Padding mask: first sequence fully valid, second has 2 padded tail tokens.
    lengths = jnp.array([S, S - 2], dtype=jnp.int32)
    src_mask = (jnp.arange(S)[None, :] < lengths[:, None]).astype(jnp.int32)

    out = sentiment_transformer_forward(src, src_mask, params, d_model, n_heads)
    out = jax.block_until_ready(out)
    assert out.shape == (B, n_classes)
    assert bool(jnp.all(jnp.isfinite(out)))
    print("KERNEL_OK")
</pallas_src>

<mosaic_0001>
module attributes {stable_mosaic.version = 11 : i64} {
  func.func @fused_kernel(%arg0: i32, %arg1: memref<2x8x32xf32, #tpu.memory_space<vmem>>, %arg2: memref<2x1x8xf32, #tpu.memory_space<vmem>>, %arg3: memref<2x32x32xf32, #tpu.memory_space<vmem>>, %arg4: memref<2x1x32xf32, #tpu.memory_space<vmem>>, %arg5: memref<2x32x32xf32, #tpu.memory_space<vmem>>, %arg6: memref<2x1x32xf32, #tpu.memory_space<vmem>>, %arg7: memref<2x32x32xf32, #tpu.memory_space<vmem>>, %arg8: memref<2x1x32xf32, #tpu.memory_space<vmem>>, %arg9: memref<2x32x32xf32, #tpu.memory_space<vmem>>, %arg10: memref<2x1x32xf32, #tpu.memory_space<vmem>>, %arg11: memref<2x1x32xf32, #tpu.memory_space<vmem>>, %arg12: memref<2x1x32xf32, #tpu.memory_space<vmem>>, %arg13: memref<2x32x128xf32, #tpu.memory_space<vmem>>, %arg14: memref<2x1x128xf32, #tpu.memory_space<vmem>>, %arg15: memref<2x128x32xf32, #tpu.memory_space<vmem>>, %arg16: memref<2x1x32xf32, #tpu.memory_space<vmem>>, %arg17: memref<2x1x32xf32, #tpu.memory_space<vmem>>, %arg18: memref<2x1x32xf32, #tpu.memory_space<vmem>>, %arg19: memref<32x128xf32, #tpu.memory_space<vmem>>, %arg20: memref<1x128xf32, #tpu.memory_space<vmem>>, %arg21: memref<2x1x128xf32, #tpu.memory_space<vmem>>) attributes {dimension_semantics = [#tpu.dimension_semantics<arbitrary>], iteration_bounds = array<i64: 1>, scalar_prefetch = 0 : i64, scratch_operands = 0 : i64, tpu.core_type = #tpu.core_type<tc>, window_params = [{transform_indices = @transform_0, window_bounds = array<i64: 2, 8, 32>}, {transform_indices = @transform_1, window_bounds = array<i64: 2, 1, 8>}, {pipeline_mode = #tpu.pipeline_mode<synchronous>, transform_indices = @transform_2, window_bounds = array<i64: 2, 32, 32>}, {pipeline_mode = #tpu.pipeline_mode<synchronous>, transform_indices = @transform_3, window_bounds = array<i64: 2, 1, 32>}, {pipeline_mode = #tpu.pipeline_mode<synchronous>, transform_indices = @transform_4, window_bounds = array<i64: 2, 32, 32>}, {pipeline_mode = #tpu.pipeline_mode<synchronous>, transform_indices = @transform_5, window_bounds = array<i64: 2, 1, 32>}, {pipeline_mode = #tpu.pipeline_mode<synchronous>, transform_indices = @transform_6, window_bounds = array<i64: 2, 32, 32>}, {pipeline_mode = #tpu.pipeline_mode<synchronous>, transform_indices = @transform_7, window_bounds = array<i64: 2, 1, 32>}, {pipeline_mode = #tpu.pipeline_mode<synchronous>, transform_indices = @transform_8, window_bounds = array<i64: 2, 32, 32>}, {pipeline_mode = #tpu.pipeline_mode<synchronous>, transform_indices = @transform_9, window_bounds = array<i64: 2, 1, 32>}, {pipeline_mode = #tpu.pipeline_mode<synchronous>, transform_indices = @transform_10, window_bounds = array<i64: 2, 1, 32>}, {pipeline_mode = #tpu.pipeline_mode<synchronous>, transform_indices = @transform_11, window_bounds = array<i64: 2, 1, 32>}, {pipeline_mode = #tpu.pipeline_mode<synchronous>, transform_indices = @transform_12, window_bounds = array<i64: 2, 32, 128>}, {pipeline_mode = #tpu.pipeline_mode<synchronous>, transform_indices = @transform_13, window_bounds = array<i64: 2, 1, 128>}, {pipeline_mode = #tpu.pipeline_mode<synchronous>, transform_indices = @transform_14, window_bounds = array<i64: 2, 128, 32>}, {pipeline_mode = #tpu.pipeline_mode<synchronous>, transform_indices = @transform_15, window_bounds = array<i64: 2, 1, 32>}, {pipeline_mode = #tpu.pipeline_mode<synchronous>, transform_indices = @transform_16, window_bounds = array<i64: 2, 1, 32>}, {pipeline_mode = #tpu.pipeline_mode<synchronous>, transform_indices = @transform_17, window_bounds = array<i64: 2, 1, 32>}, {pipeline_mode = #tpu.pipeline_mode<synchronous>, transform_indices = @transform_18, window_bounds = array<i64: 32, 128>}, {pipeline_mode = #tpu.pipeline_mode<synchronous>, transform_indices = @transform_19, window_bounds = array<i64: 1, 128>}, {transform_indices = @transform_20, window_bounds = array<i64: 2, 1, 128>}]} {
    %c0 = arith.constant 0 : index
    %c0_0 = arith.constant 0 : index
    %c0_1 = arith.constant 0 : index
    %0 = vector.load %arg1[%c0, %c0_0, %c0_1] : memref<2x8x32xf32, #tpu.memory_space<vmem>>, vector<2x8x32xf32>
    %c0_2 = arith.constant 0 : index
    %c0_3 = arith.constant 0 : index
    %c0_4 = arith.constant 0 : index
    %1 = vector.load %arg2[%c0_2, %c0_3, %c0_4] : memref<2x1x8xf32, #tpu.memory_space<vmem>>, vector<2x1x8xf32>
    %cst = arith.constant 0.000000e+00 : f32
    %2 = vector.broadcast %cst : f32 to vector<2x1x8xf32>
    %3 = arith.cmpf oeq, %1, %2 : vector<2x1x8xf32>
    %cst_5 = arith.constant -1.000000e+09 : f32
    %cst_6 = arith.constant 0.000000e+00 : f32
    %4 = vector.broadcast %cst_5 : f32 to vector<2x1x8xf32>
    %5 = vector.broadcast %cst_6 : f32 to vector<2x1x8xf32>
    %6 = arith.select %3, %4, %5 : vector<2x1x8xi1>, vector<2x1x8xf32>
    %7 = vector.shape_cast %6 : vector<2x1x8xf32> to vector<2x1x8xf32>
    %8 = vector.broadcast %7 : vector<2x1x8xf32> to vector<2x8x8xf32>
    %cst_7 = arith.constant 1.000000e+00 : f32
    %9 = vector.broadcast %cst_7 : f32 to vector<32x1xf32>
    %cst_8 = arith.constant 1.000000e+00 : f32
    %10 = vector.broadcast %cst_8 : f32 to vector<8x1xf32>
    %11 = vector.shape_cast %0 : vector<2x8x32xf32> to vector<16x32xf32>
    %c0_9 = arith.constant 0 : index
    %c0_10 = arith.constant 0 : index
    %c0_11 = arith.constant 0 : index
    %12 = vector.load %arg3[%c0_9, %c0_10, %c0_11] : memref<2x32x32xf32, #tpu.memory_space<vmem>>, vector<1x32x32xf32>
    %13 = vector.shape_cast %12 : vector<1x32x32xf32> to vector<32x32xf32>
    %c0_12 = arith.constant 0 : index
    %c0_13 = arith.constant 0 : index
    %c0_14 = arith.constant 0 : index
    %14 = vector.load %arg4[%c0_12, %c0_13, %c0_14] : memref<2x1x32xf32, #tpu.memory_space<vmem>>, vector<1x1x32xf32>
    %15 = vector.shape_cast %14 : vector<1x1x32xf32> to vector<1x32xf32>
    %c0_15 = arith.constant 0 : index
    %c0_16 = arith.constant 0 : index
    %c0_17 = arith.constant 0 : index
    %16 = vector.load %arg5[%c0_15, %c0_16, %c0_17] : memref<2x32x32xf32, #tpu.memory_space<vmem>>, vector<1x32x32xf32>
    %17 = vector.shape_cast %16 : vector<1x32x32xf32> to vector<32x32xf32>
    %c0_18 = arith.constant 0 : index
    %c0_19 = arith.constant 0 : index
    %c0_20 = arith.constant 0 : index
    %18 = vector.load %arg6[%c0_18, %c0_19, %c0_20] : memref<2x1x32xf32, #tpu.memory_space<vmem>>, vector<1x1x32xf32>
    %19 = vector.shape_cast %18 : vector<1x1x32xf32> to vector<1x32xf32>
    %c0_21 = arith.constant 0 : index
    %c0_22 = arith.constant 0 : index
    %c0_23 = arith.constant 0 : index
    %20 = vector.load %arg7[%c0_21, %c0_22, %c0_23] : memref<2x32x32xf32, #tpu.memory_space<vmem>>, vector<1x32x32xf32>
    %21 = vector.shape_cast %20 : vector<1x32x32xf32> to vector<32x32xf32>
    %c0_24 = arith.constant 0 : index
    %c0_25 = arith.constant 0 : index
    %c0_26 = arith.constant 0 : index
    %22 = vector.load %arg8[%c0_24, %c0_25, %c0_26] : memref<2x1x32xf32, #tpu.memory_space<vmem>>, vector<1x1x32xf32>
    %23 = vector.shape_cast %22 : vector<1x1x32xf32> to vector<1x32xf32>
    %c0_27 = arith.constant 0 : index
    %c0_28 = arith.constant 0 : index
    %c0_29 = arith.constant 0 : index
    %24 = vector.load %arg9[%c0_27, %c0_28, %c0_29] : memref<2x32x32xf32, #tpu.memory_space<vmem>>, vector<1x32x32xf32>
    %25 = vector.shape_cast %24 : vector<1x32x32xf32> to vector<32x32xf32>
    %c0_30 = arith.constant 0 : index
    %c0_31 = arith.constant 0 : index
    %c0_32 = arith.constant 0 : index
    %26 = vector.load %arg10[%c0_30, %c0_31, %c0_32] : memref<2x1x32xf32, #tpu.memory_space<vmem>>, vector<1x1x32xf32>
    %27 = vector.shape_cast %26 : vector<1x1x32xf32> to vector<1x32xf32>
    %c0_33 = arith.constant 0 : index
    %c0_34 = arith.constant 0 : index
    %c0_35 = arith.constant 0 : index
    %28 = vector.load %arg11[%c0_33, %c0_34, %c0_35] : memref<2x1x32xf32, #tpu.memory_space<vmem>>, vector<1x1x32xf32>
    %29 = vector.shape_cast %28 : vector<1x1x32xf32> to vector<1x32xf32>
    %c0_36 = arith.constant 0 : index
    %c0_37 = arith.constant 0 : index
    %c0_38 = arith.constant 0 : index
    %30 = vector.load %arg12[%c0_36, %c0_37, %c0_38] : memref<2x1x32xf32, #tpu.memory_space<vmem>>, vector<1x1x32xf32>
    %31 = vector.shape_cast %30 : vector<1x1x32xf32> to vector<1x32xf32>
    %c0_39 = arith.constant 0 : index
    %c0_40 = arith.constant 0 : index
    %c0_41 = arith.constant 0 : index
    %32 = vector.load %arg13[%c0_39, %c0_40, %c0_41] : memref<2x32x128xf32, #tpu.memory_space<vmem>>, vector<1x32x128xf32>
    %33 = vector.shape_cast %32 : vector<1x32x128xf32> to vector<32x128xf32>
    %c0_42 = arith.constant 0 : index
    %c0_43 = arith.constant 0 : index
    %c0_44 = arith.constant 0 : index
    %34 = vector.load %arg14[%c0_42, %c0_43, %c0_44] : memref<2x1x128xf32, #tpu.memory_space<vmem>>, vector<1x1x128xf32>
    %35 = vector.shape_cast %34 : vector<1x1x128xf32> to vector<1x128xf32>
    %c0_45 = arith.constant 0 : index
    %c0_46 = arith.constant 0 : index
    %c0_47 = arith.constant 0 : index
    %36 = vector.load %arg15[%c0_45, %c0_46, %c0_47] : memref<2x128x32xf32, #tpu.memory_space<vmem>>, vector<1x128x32xf32>
    %37 = vector.shape_cast %36 : vector<1x128x32xf32> to vector<128x32xf32>
    %c0_48 = arith.constant 0 : index
    %c0_49 = arith.constant 0 : index
    %c0_50 = arith.constant 0 : index
    %38 = vector.load %arg16[%c0_48, %c0_49, %c0_50] : memref<2x1x32xf32, #tpu.memory_space<vmem>>, vector<1x1x32xf32>
    %39 = vector.shape_cast %38 : vector<1x1x32xf32> to vector<1x32xf32>
    %c0_51 = arith.constant 0 : index
    %c0_52 = arith.constant 0 : index
    %c0_53 = arith.constant 0 : index
    %40 = vector.load %arg17[%c0_51, %c0_52, %c0_53] : memref<2x1x32xf32, #tpu.memory_space<vmem>>, vector<1x1x32xf32>
    %41 = vector.shape_cast %40 : vector<1x1x32xf32> to vector<1x32xf32>
    %c0_54 = arith.constant 0 : index
    %c0_55 = arith.constant 0 : index
    %c0_56 = arith.constant 0 : index
    %42 = vector.load %arg18[%c0_54, %c0_55, %c0_56] : memref<2x1x32xf32, #tpu.memory_space<vmem>>, vector<1x1x32xf32>
    %43 = vector.shape_cast %42 : vector<1x1x32xf32> to vector<1x32xf32>
    %44 = arith.truncf %11 : vector<16x32xf32> to vector<16x32xbf16>
    %45 = arith.truncf %13 : vector<32x32xf32> to vector<32x32xbf16>
    %cst_57 = arith.constant dense<0.000000e+00> : vector<16x32xf32>
    %46 = tpu.matmul %44, %45, %cst_57 {dimension_numbers = #tpu.dot_dimension_numbers<[1], [0], [0], [1], [0, 0, 1, 1], [], []>} : vector<16x32xbf16>, vector<32x32xbf16>, vector<16x32xf32> -> vector<16x32xf32>
    %47 = vector.broadcast %15 : vector<1x32xf32> to vector<16x32xf32>
    %48 = arith.addf %46, %47 : vector<16x32xf32>
    %49 = vector.shape_cast %48 : vector<16x32xf32> to vector<2x8x32xf32>
    %50 = arith.truncf %11 : vector<16x32xf32> to vector<16x32xbf16>
    %51 = arith.truncf %17 : vector<32x32xf32> to vector<32x32xbf16>
    %cst_58 = arith.constant dense<0.000000e+00> : vector<16x32xf32>
    %52 = tpu.matmul %50, %51, %cst_58 {dimension_numbers = #tpu.dot_dimension_numbers<[1], [0], [0], [1], [0, 0, 1, 1], [], []>} : vector<16x32xbf16>, vector<32x32xbf16>, vector<16x32xf32> -> vector<16x32xf32>
    %53 = vector.broadcast %19 : vector<1x32xf32> to vector<16x32xf32>
    %54 = arith.addf %52, %53 : vector<16x32xf32>
    %55 = vector.shape_cast %54 : vector<16x32xf32> to vector<2x8x32xf32>
    %56 = arith.truncf %11 : vector<16x32xf32> to vector<16x32xbf16>
    %57 = arith.truncf %21 : vector<32x32xf32> to vector<32x32xbf16>
    %cst_59 = arith.constant dense<0.000000e+00> : vector<16x32xf32>
    %58 = tpu.matmul %56, %57, %cst_59 {dimension_numbers = #tpu.dot_dimension_numbers<[1], [0], [0], [1], [0, 0, 1, 1], [], []>} : vector<16x32xbf16>, vector<32x32xbf16>, vector<16x32xf32> -> vector<16x32xf32>
    %59 = vector.broadcast %23 : vector<1x32xf32> to vector<16x32xf32>
    %60 = arith.addf %58, %59 : vector<16x32xf32>
    %61 = vector.shape_cast %60 : vector<16x32xf32> to vector<2x8x32xf32>
    %62 = vector.extract_strided_slice %49 {offsets = [0, 0, 0], sizes = [2, 8, 8], strides = [1, 1, 1]} : vector<2x8x32xf32> to vector<2x8x8xf32>
    %63 = vector.extract_strided_slice %55 {offsets = [0, 0, 0], sizes = [2, 8, 8], strides = [1, 1, 1]} : vector<2x8x32xf32> to vector<2x8x8xf32>
    %64 = vector.extract_strided_slice %61 {offsets = [0, 0, 0], sizes = [2, 8, 8], strides = [1, 1, 1]} : vector<2x8x32xf32> to vector<2x8x8xf32>
    %65 = arith.truncf %62 : vector<2x8x8xf32> to vector<2x8x8xbf16>
    %66 = arith.truncf %63 : vector<2x8x8xf32> to vector<2x8x8xbf16>
    "tpu.trace_start"() <{level = 10 : i32, message = "bqd,bkd->bqk"}> : () -> ()
    %cst_60 = arith.constant dense<0.000000e+00> : vector<2x8x8xf32>
    %67 = tpu.matmul %65, %66, %cst_60 {dimension_numbers = #tpu.dot_dimension_numbers<[2], [2], [1], [1], [0, 0, 0, 1, 1, 1], [0], [0]>} : vector<2x8x8xbf16>, vector<2x8x8xbf16>, vector<2x8x8xf32> -> vector<2x8x8xf32>
    "tpu.trace_stop"() : () -> ()
    %cst_61 = arith.constant 0.353553385 : f32
    %68 = vector.broadcast %cst_61 : f32 to vector<2x8x8xf32>
    %69 = arith.mulf %67, %68 : vector<2x8x8xf32>
    %70 = arith.addf %69, %8 : vector<2x8x8xf32>
    %cst_62 = arith.constant dense<0xFF800000> : vector<2x8xf32>
    %71 = vector.multi_reduction <maximumf>, %70, %cst_62 [2] : vector<2x8x8xf32> to vector<2x8xf32>
    %72 = vector.shape_cast %71 : vector<2x8xf32> to vector<2x8x1xf32>
    %73 = vector.broadcast %72 : vector<2x8x1xf32> to vector<2x8x8xf32>
    %74 = arith.subf %70, %73 : vector<2x8x8xf32>
    %75 = math.exp %74 : vector<2x8x8xf32>
    %76 = vector.shape_cast %75 : vector<2x8x8xf32> to vector<16x8xf32>
    %cst_63 = arith.constant dense<0.000000e+00> : vector<16x1xf32>
    %77 = tpu.matmul %76, %10, %cst_63 {dimension_numbers = #tpu.dot_dimension_numbers<[1], [0], [0], [1], [0, 0, 1, 1], [], []>} : vector<16x8xf32>, vector<8x1xf32>, vector<16x1xf32> -> vector<16x1xf32>
    %78 = vector.shape_cast %77 : vector<16x1xf32> to vector<2x8x1xf32>
    %79 = tpu.reciprocal %78 {approx = true} : vector<2x8x1xf32> -> vector<2x8x1xf32>
    %80 = vector.broadcast %79 : vector<2x8x1xf32> to vector<2x8x8xf32>
    %81 = arith.mulf %75, %80 : vector<2x8x8xf32>
    %82 = arith.truncf %81 : vector<2x8x8xf32> to vector<2x8x8xbf16>
    %83 = arith.truncf %64 : vector<2x8x8xf32> to vector<2x8x8xbf16>
    "tpu.trace_start"() <{level = 10 : i32, message = "bqk,bkd->bqd"}> : () -> ()
    %cst_64 = arith.constant dense<0.000000e+00> : vector<2x8x8xf32>
    %84 = tpu.matmul %82, %83, %cst_64 {dimension_numbers = #tpu.dot_dimension_numbers<[2], [1], [1], [2], [0, 0, 0, 1, 1, 2], [0], [0]>} : vector<2x8x8xbf16>, vector<2x8x8xbf16>, vector<2x8x8xf32> -> vector<2x8x8xf32>
    "tpu.trace_stop"() : () -> ()
    %85 = vector.extract_strided_slice %49 {offsets = [0, 0, 8], sizes = [2, 8, 8], strides = [1, 1, 1]} : vector<2x8x32xf32> to vector<2x8x8xf32>
    %86 = vector.extract_strided_slice %55 {offsets = [0, 0, 8], sizes = [2, 8, 8], strides = [1, 1, 1]} : vector<2x8x32xf32> to vector<2x8x8xf32>
    %87 = vector.extract_strided_slice %61 {offsets = [0, 0, 8], sizes = [2, 8, 8], strides = [1, 1, 1]} : vector<2x8x32xf32> to vector<2x8x8xf32>
    %88 = arith.truncf %85 : vector<2x8x8xf32> to vector<2x8x8xbf16>
    %89 = arith.truncf %86 : vector<2x8x8xf32> to vector<2x8x8xbf16>
    "tpu.trace_start"() <{level = 10 : i32, message = "bqd,bkd->bqk"}> : () -> ()
    %cst_65 = arith.constant dense<0.000000e+00> : vector<2x8x8xf32>
    %90 = tpu.matmul %88, %89, %cst_65 {dimension_numbers = #tpu.dot_dimension_numbers<[2], [2], [1], [1], [0, 0, 0, 1, 1, 1], [0], [0]>} : vector<2x8x8xbf16>, vector<2x8x8xbf16>, vector<2x8x8xf32> -> vector<2x8x8xf32>
    "tpu.trace_stop"() : () -> ()
    %cst_66 = arith.constant 0.353553385 : f32
    %91 = vector.broadcast %cst_66 : f32 to vector<2x8x8xf32>
    %92 = arith.mulf %90, %91 : vector<2x8x8xf32>
    %93 = arith.addf %92, %8 : vector<2x8x8xf32>
    %cst_67 = arith.constant dense<0xFF800000> : vector<2x8xf32>
    %94 = vector.multi_reduction <maximumf>, %93, %cst_67 [2] : vector<2x8x8xf32> to vector<2x8xf32>
    %95 = vector.shape_cast %94 : vector<2x8xf32> to vector<2x8x1xf32>
    %96 = vector.broadcast %95 : vector<2x8x1xf32> to vector<2x8x8xf32>
    %97 = arith.subf %93, %96 : vector<2x8x8xf32>
    %98 = math.exp %97 : vector<2x8x8xf32>
    %99 = vector.shape_cast %98 : vector<2x8x8xf32> to vector<16x8xf32>
    %cst_68 = arith.constant dense<0.000000e+00> : vector<16x1xf32>
    %100 = tpu.matmul %99, %10, %cst_68 {dimension_numbers = #tpu.dot_dimension_numbers<[1], [0], [0], [1], [0, 0, 1, 1], [], []>} : vector<16x8xf32>, vector<8x1xf32>, vector<16x1xf32> -> vector<16x1xf32>
    %101 = vector.shape_cast %100 : vector<16x1xf32> to vector<2x8x1xf32>
    %102 = tpu.reciprocal %101 {approx = true} : vector<2x8x1xf32> -> vector<2x8x1xf32>
    %103 = vector.broadcast %102 : vector<2x8x1xf32> to vector<2x8x8xf32>
    %104 = arith.mulf %98, %103 : vector<2x8x8xf32>
    %105 = arith.truncf %104 : vector<2x8x8xf32> to vector<2x8x8xbf16>
    %106 = arith.truncf %87 : vector<2x8x8xf32> to vector<2x8x8xbf16>
    "tpu.trace_start"() <{level = 10 : i32, message = "bqk,bkd->bqd"}> : () -> ()
    %cst_69 = arith.constant dense<0.000000e+00> : vector<2x8x8xf32>
    %107 = tpu.matmul %105, %106, %cst_69 {dimension_numbers = #tpu.dot_dimension_numbers<[2], [1], [1], [2], [0, 0, 0, 1, 1, 2], [0], [0]>} : vector<2x8x8xbf16>, vector<2x8x8xbf16>, vector<2x8x8xf32> -> vector<2x8x8xf32>
    "tpu.trace_stop"() : () -> ()
    %108 = vector.extract_strided_slice %49 {offsets = [0, 0, 16], sizes = [2, 8, 8], strides = [1, 1, 1]} : vector<2x8x32xf32> to vector<2x8x8xf32>
    %109 = vector.extract_strided_slice %55 {offsets = [0, 0, 16], sizes = [2, 8, 8], strides = [1, 1, 1]} : vector<2x8x32xf32> to vector<2x8x8xf32>
    %110 = vector.extract_strided_slice %61 {offsets = [0, 0, 16], sizes = [2, 8, 8], strides = [1, 1, 1]} : vector<2x8x32xf32> to vector<2x8x8xf32>
    %111 = arith.truncf %108 : vector<2x8x8xf32> to vector<2x8x8xbf16>
    %112 = arith.truncf %109 : vector<2x8x8xf32> to vector<2x8x8xbf16>
    "tpu.trace_start"() <{level = 10 : i32, message = "bqd,bkd->bqk"}> : () -> ()
    %cst_70 = arith.constant dense<0.000000e+00> : vector<2x8x8xf32>
    %113 = tpu.matmul %111, %112, %cst_70 {dimension_numbers = #tpu.dot_dimension_numbers<[2], [2], [1], [1], [0, 0, 0, 1, 1, 1], [0], [0]>} : vector<2x8x8xbf16>, vector<2x8x8xbf16>, vector<2x8x8xf32> -> vector<2x8x8xf32>
    "tpu.trace_stop"() : () -> ()
    %cst_71 = arith.constant 0.353553385 : f32
    %114 = vector.broadcast %cst_71 : f32 to vector<2x8x8xf32>
    %115 = arith.mulf %113, %114 : vector<2x8x8xf32>
    %116 = arith.addf %115, %8 : vector<2x8x8xf32>
    %cst_72 = arith.constant dense<0xFF800000> : vector<2x8xf32>
    %117 = vector.multi_reduction <maximumf>, %116, %cst_72 [2] : vector<2x8x8xf32> to vector<2x8xf32>
    %118 = vector.shape_cast %117 : vector<2x8xf32> to vector<2x8x1xf32>
    %119 = vector.broadcast %118 : vector<2x8x1xf32> to vector<2x8x8xf32>
    %120 = arith.subf %116, %119 : vector<2x8x8xf32>
    %121 = math.exp %120 : vector<2x8x8xf32>
    %122 = vector.shape_cast %121 : vector<2x8x8xf32> to vector<16x8xf32>
    %cst_73 = arith.constant dense<0.000000e+00> : vector<16x1xf32>
    %123 = tpu.matmul %122, %10, %cst_73 {dimension_numbers = #tpu.dot_dimension_numbers<[1], [0], [0], [1], [0, 0, 1, 1], [], []>} : vector<16x8xf32>, vector<8x1xf32>, vector<16x1xf32> -> vector<16x1xf32>
    %124 = vector.shape_cast %123 : vector<16x1xf32> to vector<2x8x1xf32>
    %125 = tpu.reciprocal %124 {approx = true} : vector<2x8x1xf32> -> vector<2x8x1xf32>
    %126 = vector.broadcast %125 : vector<2x8x1xf32> to vector<2x8x8xf32>
    %127 = arith.mulf %121, %126 : vector<2x8x8xf32>
    %128 = arith.truncf %127 : vector<2x8x8xf32> to vector<2x8x8xbf16>
    %129 = arith.truncf %110 : vector<2x8x8xf32> to vector<2x8x8xbf16>
    "tpu.trace_start"() <{level = 10 : i32, message = "bqk,bkd->bqd"}> : () -> ()
    %cst_74 = arith.constant dense<0.000000e+00> : vector<2x8x8xf32>
    %130 = tpu.matmul %128, %129, %cst_74 {dimension_numbers = #tpu.dot_dimension_numbers<[2], [1], [1], [2], [0, 0, 0, 1, 1, 2], [0], [0]>} : vector<2x8x8xbf16>, vector<2x8x8xbf16>, vector<2x8x8xf32> -> vector<2x8x8xf32>
    "tpu.trace_stop"() : () -> ()
    %131 = vector.extract_strided_slice %49 {offsets = [0, 0, 24], sizes = [2, 8, 8], strides = [1, 1, 1]} : vector<2x8x32xf32> to vector<2x8x8xf32>
    %132 = vector.extract_strided_slice %55 {offsets = [0, 0, 24], sizes = [2, 8, 8], strides = [1, 1, 1]} : vector<2x8x32xf32> to vector<2x8x8xf32>
    %133 = vector.extract_strided_slice %61 {offsets = [0, 0, 24], sizes = [2, 8, 8], strides = [1, 1, 1]} : vector<2x8x32xf32> to vector<2x8x8xf32>
    %134 = arith.truncf %131 : vector<2x8x8xf32> to vector<2x8x8xbf16>
    %135 = arith.truncf %132 : vector<2x8x8xf32> to vector<2x8x8xbf16>
    "tpu.trace_start"() <{level = 10 : i32, message = "bqd,bkd->bqk"}> : () -> ()
    %cst_75 = arith.constant dense<0.000000e+00> : vector<2x8x8xf32>
    %136 = tpu.matmul %134, %135, %cst_75 {dimension_numbers = #tpu.dot_dimension_numbers<[2], [2], [1], [1], [0, 0, 0, 1, 1, 1], [0], [0]>} : vector<2x8x8xbf16>, vector<2x8x8xbf16>, vector<2x8x8xf32> -> vector<2x8x8xf32>
    "tpu.trace_stop"() : () -> ()
    %cst_76 = arith.constant 0.353553385 : f32
    %137 = vector.broadcast %cst_76 : f32 to vector<2x8x8xf32>
    %138 = arith.mulf %136, %137 : vector<2x8x8xf32>
    %139 = arith.addf %138, %8 : vector<2x8x8xf32>
    %cst_77 = arith.constant dense<0xFF800000> : vector<2x8xf32>
    %140 = vector.multi_reduction <maximumf>, %139, %cst_77 [2] : vector<2x8x8xf32> to vector<2x8xf32>
    %141 = vector.shape_cast %140 : vector<2x8xf32> to vector<2x8x1xf32>
    %142 = vector.broadcast %141 : vector<2x8x1xf32> to vector<2x8x8xf32>
    %143 = arith.subf %139, %142 : vector<2x8x8xf32>
    %144 = math.exp %143 : vector<2x8x8xf32>
    %145 = vector.shape_cast %144 : vector<2x8x8xf32> to vector<16x8xf32>
    %cst_78 = arith.constant dense<0.000000e+00> : vector<16x1xf32>
    %146 = tpu.matmul %145, %10, %cst_78 {dimension_numbers = #tpu.dot_dimension_numbers<[1], [0], [0], [1], [0, 0, 1, 1], [], []>} : vector<16x8xf32>, vector<8x1xf32>, vector<16x1xf32> -> vector<16x1xf32>
    %147 = vector.shape_cast %146 : vector<16x1xf32> to vector<2x8x1xf32>
    %148 = tpu.reciprocal %147 {approx = true} : vector<2x8x1xf32> -> vector<2x8x1xf32>
    %149 = vector.broadcast %148 : vector<2x8x1xf32> to vector<2x8x8xf32>
    %150 = arith.mulf %144, %149 : vector<2x8x8xf32>
    %151 = arith.truncf %150 : vector<2x8x8xf32> to vector<2x8x8xbf16>
    %152 = arith.truncf %133 : vector<2x8x8xf32> to vector<2x8x8xbf16>
    "tpu.trace_start"() <{level = 10 : i32, message = "bqk,bkd->bqd"}> : () -> ()
    %cst_79 = arith.constant dense<0.000000e+00> : vector<2x8x8xf32>
    %153 = tpu.matmul %151, %152, %cst_79 {dimension_numbers = #tpu.dot_dimension_numbers<[2], [1], [1], [2], [0, 0, 0, 1, 1, 2], [0], [0]>} : vector<2x8x8xbf16>, vector<2x8x8xbf16>, vector<2x8x8xf32> -> vector<2x8x8xf32>
    "tpu.trace_stop"() : () -> ()
    %154 = tpu.concatenate %84, %107, %130, %153 in 2 : vector<2x8x8xf32>, vector<2x8x8xf32>, vector<2x8x8xf32>, vector<2x8x8xf32> -> vector<2x8x32xf32>
    %155 = vector.shape_cast %154 : vector<2x8x32xf32> to vector<16x32xf32>
    %156 = arith.truncf %155 : vector<16x32xf32> to vector<16x32xbf16>
    %157 = arith.truncf %25 : vector<32x32xf32> to vector<32x32xbf16>
    %cst_80 = arith.constant dense<0.000000e+00> : vector<16x32xf32>
    %158 = tpu.matmul %156, %157, %cst_80 {dimension_numbers = #tpu.dot_dimension_numbers<[1], [0], [0], [1], [0, 0, 1, 1], [], []>} : vector<16x32xbf16>, vector<32x32xbf16>, vector<16x32xf32> -> vector<16x32xf32>
    %159 = vector.broadcast %27 : vector<1x32xf32> to vector<16x32xf32>
    %160 = arith.addf %158, %159 : vector<16x32xf32>
    %161 = arith.addf %11, %160 : vector<16x32xf32>
    %cst_81 = arith.constant dense<0.000000e+00> : vector<16x1xf32>
    %162 = tpu.matmul %161, %9, %cst_81 {dimension_numbers = #tpu.dot_dimension_numbers<[1], [0], [0], [1], [0, 0, 1, 1], [], []>} : vector<16x32xf32>, vector<32x1xf32>, vector<16x1xf32> -> vector<16x1xf32>
    %163 = arith.mulf %161, %161 : vector<16x32xf32>
    %cst_82 = arith.constant dense<0.000000e+00> : vector<16x1xf32>
    %164 = tpu.matmul %163, %9, %cst_82 {dimension_numbers = #tpu.dot_dimension_numbers<[1], [0], [0], [1], [0, 0, 1, 1], [], []>} : vector<16x32xf32>, vector<32x1xf32>, vector<16x1xf32> -> vector<16x1xf32>
    %cst_83 = arith.constant 3.125000e-02 : f32
    %165 = vector.broadcast %cst_83 : f32 to vector<16x1xf32>
    %166 = arith.mulf %162, %165 : vector<16x1xf32>
    %cst_84 = arith.constant 3.125000e-02 : f32
    %167 = vector.broadcast %cst_84 : f32 to vector<16x1xf32>
    %168 = arith.mulf %164, %167 : vector<16x1xf32>
    %169 = arith.mulf %166, %166 : vector<16x1xf32>
    %170 = arith.subf %168, %169 : vector<16x1xf32>
    %cst_85 = arith.constant 0.000000e+00 : f32
    %171 = vector.broadcast %cst_85 : f32 to vector<16x1xf32>
    %172 = arith.maximumf %170, %171 : vector<16x1xf32>
    %173 = vector.broadcast %166 : vector<16x1xf32> to vector<16x32xf32>
    %174 = arith.subf %161, %173 : vector<16x32xf32>
    %cst_86 = arith.constant 9.99999974E-6 : f32
    %175 = vector.broadcast %cst_86 : f32 to vector<16x1xf32>
    %176 = arith.addf %172, %175 : vector<16x1xf32>
    %177 = math.rsqrt %176 : vector<16x1xf32>
    %178 = vector.broadcast %177 : vector<16x1xf32> to vector<16x32xf32>
    %179 = arith.mulf %174, %178 : vector<16x32xf32>
    %180 = vector.broadcast %29 : vector<1x32xf32> to vector<16x32xf32>
    %181 = arith.mulf %179, %180 : vector<16x32xf32>
    %182 = vector.broadcast %31 : vector<1x32xf32> to vector<16x32xf32>
    %183 = arith.addf %181, %182 : vector<16x32xf32>
    %184 = arith.truncf %183 : vector<16x32xf32> to vector<16x32xbf16>
    %185 = arith.truncf %33 : vector<32x128xf32> to vector<32x128xbf16>
    %cst_87 = arith.constant dense<0.000000e+00> : vector<16x128xf32>
    %186 = tpu.matmul %184, %185, %cst_87 {dimension_numbers = #tpu.dot_dimension_numbers<[1], [0], [0], [1], [0, 0, 1, 1], [], []>} : vector<16x32xbf16>, vector<32x128xbf16>, vector<16x128xf32> -> vector<16x128xf32>
    %187 = vector.broadcast %35 : vector<1x128xf32> to vector<16x128xf32>
    %188 = arith.addf %186, %187 : vector<16x128xf32>
    %cst_88 = arith.constant 0.000000e+00 : f32
    %189 = vector.broadcast %cst_88 : f32 to vector<16x128xf32>
    %190 = arith.maximumf %188, %189 : vector<16x128xf32>
    %191 = arith.truncf %190 : vector<16x128xf32> to vector<16x128xbf16>
    %192 = arith.truncf %37 : vector<128x32xf32> to vector<128x32xbf16>
    %cst_89 = arith.constant dense<0.000000e+00> : vector<16x32xf32>
    %193 = tpu.matmul %191, %192, %cst_89 {dimension_numbers = #tpu.dot_dimension_numbers<[1], [0], [0], [1], [0, 0, 1, 1], [], []>} : vector<16x128xbf16>, vector<128x32xbf16>, vector<16x32xf32> -> vector<16x32xf32>
    %194 = vector.broadcast %39 : vector<1x32xf32> to vector<16x32xf32>
    %195 = arith.addf %193, %194 : vector<16x32xf32>
    %196 = arith.addf %183, %195 : vector<16x32xf32>
    %cst_90 = arith.constant dense<0.000000e+00> : vector<16x1xf32>
    %197 = tpu.matmul %196, %9, %cst_90 {dimension_numbers = #tpu.dot_dimension_numbers<[1], [0], [0], [1], [0, 0, 1, 1], [], []>} : vector<16x32xf32>, vector<32x1xf32>, vector<16x1xf32> -> vector<16x1xf32>
    %198 = arith.mulf %196, %196 : vector<16x32xf32>
    %cst_91 = arith.constant dense<0.000000e+00> : vector<16x1xf32>
    %199 = tpu.matmul %198, %9, %cst_91 {dimension_numbers = #tpu.dot_dimension_numbers<[1], [0], [0], [1], [0, 0, 1, 1], [], []>} : vector<16x32xf32>, vector<32x1xf32>, vector<16x1xf32> -> vector<16x1xf32>
    %cst_92 = arith.constant 3.125000e-02 : f32
    %200 = vector.broadcast %cst_92 : f32 to vector<16x1xf32>
    %201 = arith.mulf %197, %200 : vector<16x1xf32>
    %cst_93 = arith.constant 3.125000e-02 : f32
    %202 = vector.broadcast %cst_93 : f32 to vector<16x1xf32>
    %203 = arith.mulf %199, %202 : vector<16x1xf32>
    %204 = arith.mulf %201, %201 : vector<16x1xf32>
    %205 = arith.subf %203, %204 : vector<16x1xf32>
    %cst_94 = arith.constant 0.000000e+00 : f32
    %206 = vector.broadcast %cst_94 : f32 to vector<16x1xf32>
    %207 = arith.maximumf %205, %206 : vector<16x1xf32>
    %208 = vector.broadcast %201 : vector<16x1xf32> to vector<16x32xf32>
    %209 = arith.subf %196, %208 : vector<16x32xf32>
    %cst_95 = arith.constant 9.99999974E-6 : f32
    %210 = vector.broadcast %cst_95 : f32 to vector<16x1xf32>
    %211 = arith.addf %207, %210 : vector<16x1xf32>
    %212 = math.rsqrt %211 : vector<16x1xf32>
    %213 = vector.broadcast %212 : vector<16x1xf32> to vector<16x32xf32>
    %214 = arith.mulf %209, %213 : vector<16x32xf32>
    %215 = vector.broadcast %41 : vector<1x32xf32> to vector<16x32xf32>
    %216 = arith.mulf %214, %215 : vector<16x32xf32>
    %217 = vector.broadcast %43 : vector<1x32xf32> to vector<16x32xf32>
    %218 = arith.addf %216, %217 : vector<16x32xf32>
    %c1 = arith.constant 1 : index
    %c0_96 = arith.constant 0 : index
    %c0_97 = arith.constant 0 : index
    %219 = vector.load %arg3[%c1, %c0_96, %c0_97] : memref<2x32x32xf32, #tpu.memory_space<vmem>>, vector<1x32x32xf32>
    %220 = vector.shape_cast %219 : vector<1x32x32xf32> to vector<32x32xf32>
    %c1_98 = arith.constant 1 : index
    %c0_99 = arith.constant 0 : index
    %c0_100 = arith.constant 0 : index
    %221 = vector.load %arg4[%c1_98, %c0_99, %c0_100] : memref<2x1x32xf32, #tpu.memory_space<vmem>>, vector<1x1x32xf32>
    %222 = vector.shape_cast %221 : vector<1x1x32xf32> to vector<1x32xf32>
    %c1_101 = arith.constant 1 : index
    %c0_102 = arith.constant 0 : index
    %c0_103 = arith.constant 0 : index
    %223 = vector.load %arg5[%c1_101, %c0_102, %c0_103] : memref<2x32x32xf32, #tpu.memory_space<vmem>>, vector<1x32x32xf32>
    %224 = vector.shape_cast %223 : vector<1x32x32xf32> to vector<32x32xf32>
    %c1_104 = arith.constant 1 : index
    %c0_105 = arith.constant 0 : index
    %c0_106 = arith.constant 0 : index
    %225 = vector.load %arg6[%c1_104, %c0_105, %c0_106] : memref<2x1x32xf32, #tpu.memory_space<vmem>>, vector<1x1x32xf32>
    %226 = vector.shape_cast %225 : vector<1x1x32xf32> to vector<1x32xf32>
    %c1_107 = arith.constant 1 : index
    %c0_108 = arith.constant 0 : index
    %c0_109 = arith.constant 0 : index
    %227 = vector.load %arg7[%c1_107, %c0_108, %c0_109] : memref<2x32x32xf32, #tpu.memory_space<vmem>>, vector<1x32x32xf32>
    %228 = vector.shape_cast %227 : vector<1x32x32xf32> to vector<32x32xf32>
    %c1_110 = arith.constant 1 : index
    %c0_111 = arith.constant 0 : index
    %c0_112 = arith.constant 0 : index
    %229 = vector.load %arg8[%c1_110, %c0_111, %c0_112] : memref<2x1x32xf32, #tpu.memory_space<vmem>>, vector<1x1x32xf32>
    %230 = vector.shape_cast %229 : vector<1x1x32xf32> to vector<1x32xf32>
    %c1_113 = arith.constant 1 : index
    %c0_114 = arith.constant 0 : index
    %c0_115 = arith.constant 0 : index
    %231 = vector.load %arg9[%c1_113, %c0_114, %c0_115] : memref<2x32x32xf32, #tpu.memory_space<vmem>>, vector<1x32x32xf32>
    %232 = vector.shape_cast %231 : vector<1x32x32xf32> to vector<32x32xf32>
    %c1_116 = arith.constant 1 : index
    %c0_117 = arith.constant 0 : index
    %c0_118 = arith.constant 0 : index
    %233 = vector.load %arg10[%c1_116, %c0_117, %c0_118] : memref<2x1x32xf32, #tpu.memory_space<vmem>>, vector<1x1x32xf32>
    %234 = vector.shape_cast %233 : vector<1x1x32xf32> to vector<1x32xf32>
    %c1_119 = arith.constant 1 : index
    %c0_120 = arith.constant 0 : index
    %c0_121 = arith.constant 0 : index
    %235 = vector.load %arg11[%c1_119, %c0_120, %c0_121] : memref<2x1x32xf32, #tpu.memory_space<vmem>>, vector<1x1x32xf32>
    %236 = vector.shape_cast %235 : vector<1x1x32xf32> to vector<1x32xf32>
    %c1_122 = arith.constant 1 : index
    %c0_123 = arith.constant 0 : index
    %c0_124 = arith.constant 0 : index
    %237 = vector.load %arg12[%c1_122, %c0_123, %c0_124] : memref<2x1x32xf32, #tpu.memory_space<vmem>>, vector<1x1x32xf32>
    %238 = vector.shape_cast %237 : vector<1x1x32xf32> to vector<1x32xf32>
    %c1_125 = arith.constant 1 : index
    %c0_126 = arith.constant 0 : index
    %c0_127 = arith.constant 0 : index
    %239 = vector.load %arg13[%c1_125, %c0_126, %c0_127] : memref<2x32x128xf32, #tpu.memory_space<vmem>>, vector<1x32x128xf32>
    %240 = vector.shape_cast %239 : vector<1x32x128xf32> to vector<32x128xf32>
    %c1_128 = arith.constant 1 : index
    %c0_129 = arith.constant 0 : index
    %c0_130 = arith.constant 0 : index
    %241 = vector.load %arg14[%c1_128, %c0_129, %c0_130] : memref<2x1x128xf32, #tpu.memory_space<vmem>>, vector<1x1x128xf32>
    %242 = vector.shape_cast %241 : vector<1x1x128xf32> to vector<1x128xf32>
    %c1_131 = arith.constant 1 : index
    %c0_132 = arith.constant 0 : index
    %c0_133 = arith.constant 0 : index
    %243 = vector.load %arg15[%c1_131, %c0_132, %c0_133] : memref<2x128x32xf32, #tpu.memory_space<vmem>>, vector<1x128x32xf32>
    %244 = vector.shape_cast %243 : vector<1x128x32xf32> to vector<128x32xf32>
    %c1_134 = arith.constant 1 : index
    %c0_135 = arith.constant 0 : index
    %c0_136 = arith.constant 0 : index
    %245 = vector.load %arg16[%c1_134, %c0_135, %c0_136] : memref<2x1x32xf32, #tpu.memory_space<vmem>>, vector<1x1x32xf32>
    %246 = vector.shape_cast %245 : vector<1x1x32xf32> to vector<1x32xf32>
    %c1_137 = arith.constant 1 : index
    %c0_138 = arith.constant 0 : index
    %c0_139 = arith.constant 0 : index
    %247 = vector.load %arg17[%c1_137, %c0_138, %c0_139] : memref<2x1x32xf32, #tpu.memory_space<vmem>>, vector<1x1x32xf32>
    %248 = vector.shape_cast %247 : vector<1x1x32xf32> to vector<1x32xf32>
    %c1_140 = arith.constant 1 : index
    %c0_141 = arith.constant 0 : index
    %c0_142 = arith.constant 0 : index
    %249 = vector.load %arg18[%c1_140, %c0_141, %c0_142] : memref<2x1x32xf32, #tpu.memory_space<vmem>>, vector<1x1x32xf32>
    %250 = vector.shape_cast %249 : vector<1x1x32xf32> to vector<1x32xf32>
    %251 = arith.truncf %218 : vector<16x32xf32> to vector<16x32xbf16>
    %252 = arith.truncf %220 : vector<32x32xf32> to vector<32x32xbf16>
    %cst_143 = arith.constant dense<0.000000e+00> : vector<16x32xf32>
    %253 = tpu.matmul %251, %252, %cst_143 {dimension_numbers = #tpu.dot_dimension_numbers<[1], [0], [0], [1], [0, 0, 1, 1], [], []>} : vector<16x32xbf16>, vector<32x32xbf16>, vector<16x32xf32> -> vector<16x32xf32>
    %254 = vector.broadcast %222 : vector<1x32xf32> to vector<16x32xf32>
    %255 = arith.addf %253, %254 : vector<16x32xf32>
    %256 = vector.shape_cast %255 : vector<16x32xf32> to vector<2x8x32xf32>
    %257 = arith.truncf %218 : vector<16x32xf32> to vector<16x32xbf16>
    %258 = arith.truncf %224 : vector<32x32xf32> to vector<32x32xbf16>
    %cst_144 = arith.constant dense<0.000000e+00> : vector<16x32xf32>
    %259 = tpu.matmul %257, %258, %cst_144 {dimension_numbers = #tpu.dot_dimension_numbers<[1], [0], [0], [1], [0, 0, 1, 1], [], []>} : vector<16x32xbf16>, vector<32x32xbf16>, vector<16x32xf32> -> vector<16x32xf32>
    %260 = vector.broadcast %226 : vector<1x32xf32> to vector<16x32xf32>
    %261 = arith.addf %259, %260 : vector<16x32xf32>
    %262 = vector.shape_cast %261 : vector<16x32xf32> to vector<2x8x32xf32>
    %263 = arith.truncf %218 : vector<16x32xf32> to vector<16x32xbf16>
    %264 = arith.truncf %228 : vector<32x32xf32> to vector<32x32xbf16>
    %cst_145 = arith.constant dense<0.000000e+00> : vector<16x32xf32>
    %265 = tpu.matmul %263, %264, %cst_145 {dimension_numbers = #tpu.dot_dimension_numbers<[1], [0], [0], [1], [0, 0, 1, 1], [], []>} : vector<16x32xbf16>, vector<32x32xbf16>, vector<16x32xf32> -> vector<16x32xf32>
    %266 = vector.broadcast %230 : vector<1x32xf32> to vector<16x32xf32>
    %267 = arith.addf %265, %266 : vector<16x32xf32>
    %268 = vector.shape_cast %267 : vector<16x32xf32> to vector<2x8x32xf32>
    %269 = vector.extract_strided_slice %256 {offsets = [0, 0, 0], sizes = [2, 8, 8], strides = [1, 1, 1]} : vector<2x8x32xf32> to vector<2x8x8xf32>
    %270 = vector.extract_strided_slice %262 {offsets = [0, 0, 0], sizes = [2, 8, 8], strides = [1, 1, 1]} : vector<2x8x32xf32> to vector<2x8x8xf32>
    %271 = vector.extract_strided_slice %268 {offsets = [0, 0, 0], sizes = [2, 8, 8], strides = [1, 1, 1]} : vector<2x8x32xf32> to vector<2x8x8xf32>
    %272 = arith.truncf %269 : vector<2x8x8xf32> to vector<2x8x8xbf16>
    %273 = arith.truncf %270 : vector<2x8x8xf32> to vector<2x8x8xbf16>
    "tpu.trace_start"() <{level = 10 : i32, message = "bqd,bkd->bqk"}> : () -> ()
    %cst_146 = arith.constant dense<0.000000e+00> : vector<2x8x8xf32>
    %274 = tpu.matmul %272, %273, %cst_146 {dimension_numbers = #tpu.dot_dimension_numbers<[2], [2], [1], [1], [0, 0, 0, 1, 1, 1], [0], [0]>} : vector<2x8x8xbf16>, vector<2x8x8xbf16>, vector<2x8x8xf32> -> vector<2x8x8xf32>
    "tpu.trace_stop"() : () -> ()
    %cst_147 = arith.constant 0.353553385 : f32
    %275 = vector.broadcast %cst_147 : f32 to vector<2x8x8xf32>
    %276 = arith.mulf %274, %275 : vector<2x8x8xf32>
    %277 = arith.addf %276, %8 : vector<2x8x8xf32>
    %cst_148 = arith.constant dense<0xFF800000> : vector<2x8xf32>
    %278 = vector.multi_reduction <maximumf>, %277, %cst_148 [2] : vector<2x8x8xf32> to vector<2x8xf32>
    %279 = vector.shape_cast %278 : vector<2x8xf32> to vector<2x8x1xf32>
    %280 = vector.broadcast %279 : vector<2x8x1xf32> to vector<2x8x8xf32>
    %281 = arith.subf %277, %280 : vector<2x8x8xf32>
    %282 = math.exp %281 : vector<2x8x8xf32>
    %283 = vector.shape_cast %282 : vector<2x8x8xf32> to vector<16x8xf32>
    %cst_149 = arith.constant dense<0.000000e+00> : vector<16x1xf32>
    %284 = tpu.matmul %283, %10, %cst_149 {dimension_numbers = #tpu.dot_dimension_numbers<[1], [0], [0], [1], [0, 0, 1, 1], [], []>} : vector<16x8xf32>, vector<8x1xf32>, vector<16x1xf32> -> vector<16x1xf32>
    %285 = vector.shape_cast %284 : vector<16x1xf32> to vector<2x8x1xf32>
    %286 = tpu.reciprocal %285 {approx = true} : vector<2x8x1xf32> -> vector<2x8x1xf32>
    %287 = vector.broadcast %286 : vector<2x8x1xf32> to vector<2x8x8xf32>
    %288 = arith.mulf %282, %287 : vector<2x8x8xf32>
    %289 = arith.truncf %288 : vector<2x8x8xf32> to vector<2x8x8xbf16>
    %290 = arith.truncf %271 : vector<2x8x8xf32> to vector<2x8x8xbf16>
    "tpu.trace_start"() <{level = 10 : i32, message = "bqk,bkd->bqd"}> : () -> ()
    %cst_150 = arith.constant dense<0.000000e+00> : vector<2x8x8xf32>
    %291 = tpu.matmul %289, %290, %cst_150 {dimension_numbers = #tpu.dot_dimension_numbers<[2], [1], [1], [2], [0, 0, 0, 1, 1, 2], [0], [0]>} : vector<2x8x8xbf16>, vector<2x8x8xbf16>, vector<2x8x8xf32> -> vector<2x8x8xf32>
    "tpu.trace_stop"() : () -> ()
    %292 = vector.extract_strided_slice %256 {offsets = [0, 0, 8], sizes = [2, 8, 8], strides = [1, 1, 1]} : vector<2x8x32xf32> to vector<2x8x8xf32>
    %293 = vector.extract_strided_slice %262 {offsets = [0, 0, 8], sizes = [2, 8, 8], strides = [1, 1, 1]} : vector<2x8x32xf32> to vector<2x8x8xf32>
    %294 = vector.extract_strided_slice %268 {offsets = [0, 0, 8], sizes = [2, 8, 8], strides = [1, 1, 1]} : vector<2x8x32xf32> to vector<2x8x8xf32>
    %295 = arith.truncf %292 : vector<2x8x8xf32> to vector<2x8x8xbf16>
    %296 = arith.truncf %293 : vector<2x8x8xf32> to vector<2x8x8xbf16>
    "tpu.trace_start"() <{level = 10 : i32, message = "bqd,bkd->bqk"}> : () -> ()
    %cst_151 = arith.constant dense<0.000000e+00> : vector<2x8x8xf32>
    %297 = tpu.matmul %295, %296, %cst_151 {dimension_numbers = #tpu.dot_dimension_numbers<[2], [2], [1], [1], [0, 0, 0, 1, 1, 1], [0], [0]>} : vector<2x8x8xbf16>, vector<2x8x8xbf16>, vector<2x8x8xf32> -> vector<2x8x8xf32>
    "tpu.trace_stop"() : () -> ()
    %cst_152 = arith.constant 0.353553385 : f32
    %298 = vector.broadcast %cst_152 : f32 to vector<2x8x8xf32>
    %299 = arith.mulf %297, %298 : vector<2x8x8xf32>
    %300 = arith.addf %299, %8 : vector<2x8x8xf32>
    %cst_153 = arith.constant dense<0xFF800000> : vector<2x8xf32>
    %301 = vector.multi_reduction <maximumf>, %300, %cst_153 [2] : vector<2x8x8xf32> to vector<2x8xf32>
    %302 = vector.shape_cast %301 : vector<2x8xf32> to vector<2x8x1xf32>
    %303 = vector.broadcast %302 : vector<2x8x1xf32> to vector<2x8x8xf32>
    %304 = arith.subf %300, %303 : vector<2x8x8xf32>
    %305 = math.exp %304 : vector<2x8x8xf32>
    %306 = vector.shape_cast %305 : vector<2x8x8xf32> to vector<16x8xf32>
    %cst_154 = arith.constant dense<0.000000e+00> : vector<16x1xf32>
    %307 = tpu.matmul %306, %10, %cst_154 {dimension_numbers = #tpu.dot_dimension_numbers<[1], [0], [0], [1], [0, 0, 1, 1], [], []>} : vector<16x8xf32>, vector<8x1xf32>, vector<16x1xf32> -> vector<16x1xf32>
    %308 = vector.shape_cast %307 : vector<16x1xf32> to vector<2x8x1xf32>
    %309 = tpu.reciprocal %308 {approx = true} : vector<2x8x1xf32> -> vector<2x8x1xf32>
    %310 = vector.broadcast %309 : vector<2x8x1xf32> to vector<2x8x8xf32>
    %311 = arith.mulf %305, %310 : vector<2x8x8xf32>
    %312 = arith.truncf %311 : vector<2x8x8xf32> to vector<2x8x8xbf16>
    %313 = arith.truncf %294 : vector<2x8x8xf32> to vector<2x8x8xbf16>
    "tpu.trace_start"() <{level = 10 : i32, message = "bqk,bkd->bqd"}> : () -> ()
    %cst_155 = arith.constant dense<0.000000e+00> : vector<2x8x8xf32>
    %314 = tpu.matmul %312, %313, %cst_155 {dimension_numbers = #tpu.dot_dimension_numbers<[2], [1], [1], [2], [0, 0, 0, 1, 1, 2], [0], [0]>} : vector<2x8x8xbf16>, vector<2x8x8xbf16>, vector<2x8x8xf32> -> vector<2x8x8xf32>
    "tpu.trace_stop"() : () -> ()
    %315 = vector.extract_strided_slice %256 {offsets = [0, 0, 16], sizes = [2, 8, 8], strides = [1, 1, 1]} : vector<2x8x32xf32> to vector<2x8x8xf32>
    %316 = vector.extract_strided_slice %262 {offsets = [0, 0, 16], sizes = [2, 8, 8], strides = [1, 1, 1]} : vector<2x8x32xf32> to vector<2x8x8xf32>
    %317 = vector.extract_strided_slice %268 {offsets = [0, 0, 16], sizes = [2, 8, 8], strides = [1, 1, 1]} : vector<2x8x32xf32> to vector<2x8x8xf32>
    %318 = arith.truncf %315 : vector<2x8x8xf32> to vector<2x8x8xbf16>
    %319 = arith.truncf %316 : vector<2x8x8xf32> to vector<2x8x8xbf16>
    "tpu.trace_start"() <{level = 10 : i32, message = "bqd,bkd->bqk"}> : () -> ()
    %cst_156 = arith.constant dense<0.000000e+00> : vector<2x8x8xf32>
    %320 = tpu.matmul %318, %319, %cst_156 {dimension_numbers = #tpu.dot_dimension_numbers<[2], [2], [1], [1], [0, 0, 0, 1, 1, 1], [0], [0]>} : vector<2x8x8xbf16>, vector<2x8x8xbf16>, vector<2x8x8xf32> -> vector<2x8x8xf32>
    "tpu.trace_stop"() : () -> ()
    %cst_157 = arith.constant 0.353553385 : f32
    %321 = vector.broadcast %cst_157 : f32 to vector<2x8x8xf32>
    %322 = arith.mulf %320, %321 : vector<2x8x8xf32>
    %323 = arith.addf %322, %8 : vector<2x8x8xf32>
    %cst_158 = arith.constant dense<0xFF800000> : vector<2x8xf32>
    %324 = vector.multi_reduction <maximumf>, %323, %cst_158 [2] : vector<2x8x8xf32> to vector<2x8xf32>
    %325 = vector.shape_cast %324 : vector<2x8xf32> to vector<2x8x1xf32>
    %326 = vector.broadcast %325 : vector<2x8x1xf32> to vector<2x8x8xf32>
    %327 = arith.subf %323, %326 : vector<2x8x8xf32>
    %328 = math.exp %327 : vector<2x8x8xf32>
    %329 = vector.shape_cast %328 : vector<2x8x8xf32> to vector<16x8xf32>
    %cst_159 = arith.constant dense<0.000000e+00> : vector<16x1xf32>
    %330 = tpu.matmul %329, %10, %cst_159 {dimension_numbers = #tpu.dot_dimension_numbers<[1], [0], [0], [1], [0, 0, 1, 1], [], []>} : vector<16x8xf32>, vector<8x1xf32>, vector<16x1xf32> -> vector<16x1xf32>
    %331 = vector.shape_cast %330 : vector<16x1xf32> to vector<2x8x1xf32>
    %332 = tpu.reciprocal %331 {approx = true} : vector<2x8x1xf32> -> vector<2x8x1xf32>
    %333 = vector.broadcast %332 : vector<2x8x1xf32> to vector<2x8x8xf32>
    %334 = arith.mulf %328, %333 : vector<2x8x8xf32>
    %335 = arith.truncf %334 : vector<2x8x8xf32> to vector<2x8x8xbf16>
    %336 = arith.truncf %317 : vector<2x8x8xf32> to vector<2x8x8xbf16>
    "tpu.trace_start"() <{level = 10 : i32, message = "bqk,bkd->bqd"}> : () -> ()
    %cst_160 = arith.constant dense<0.000000e+00> : vector<2x8x8xf32>
    %337 = tpu.matmul %335, %336, %cst_160 {dimension_numbers = #tpu.dot_dimension_numbers<[2], [1], [1], [2], [0, 0, 0, 1, 1, 2], [0], [0]>} : vector<2x8x8xbf16>, vector<2x8x8xbf16>, vector<2x8x8xf32> -> vector<2x8x8xf32>
    "tpu.trace_stop"() : () -> ()
    %338 = vector.extract_strided_slice %256 {offsets = [0, 0, 24], sizes = [2, 8, 8], strides = [1, 1, 1]} : vector<2x8x32xf32> to vector<2x8x8xf32>
    %339 = vector.extract_strided_slice %262 {offsets = [0, 0, 24], sizes = [2, 8, 8], strides = [1, 1, 1]} : vector<2x8x32xf32> to vector<2x8x8xf32>
    %340 = vector.extract_strided_slice %268 {offsets = [0, 0, 24], sizes = [2, 8, 8], strides = [1, 1, 1]} : vector<2x8x32xf32> to vector<2x8x8xf32>
    %341 = arith.truncf %338 : vector<2x8x8xf32> to vector<2x8x8xbf16>
    %342 = arith.truncf %339 : vector<2x8x8xf32> to vector<2x8x8xbf16>
    "tpu.trace_start"() <{level = 10 : i32, message = "bqd,bkd->bqk"}> : () -> ()
    %cst_161 = arith.constant dense<0.000000e+00> : vector<2x8x8xf32>
    %343 = tpu.matmul %341, %342, %cst_161 {dimension_numbers = #tpu.dot_dimension_numbers<[2], [2], [1], [1], [0, 0, 0, 1, 1, 1], [0], [0]>} : vector<2x8x8xbf16>, vector<2x8x8xbf16>, vector<2x8x8xf32> -> vector<2x8x8xf32>
    "tpu.trace_stop"() : () -> ()
    %cst_162 = arith.constant 0.353553385 : f32
    %344 = vector.broadcast %cst_162 : f32 to vector<2x8x8xf32>
    %345 = arith.mulf %343, %344 : vector<2x8x8xf32>
    %346 = arith.addf %345, %8 : vector<2x8x8xf32>
    %cst_163 = arith.constant dense<0xFF800000> : vector<2x8xf32>
    %347 = vector.multi_reduction <maximumf>, %346, %cst_163 [2] : vector<2x8x8xf32> to vector<2x8xf32>
    %348 = vector.shape_cast %347 : vector<2x8xf32> to vector<2x8x1xf32>
    %349 = vector.broadcast %348 : vector<2x8x1xf32> to vector<2x8x8xf32>
    %350 = arith.subf %346, %349 : vector<2x8x8xf32>
    %351 = math.exp %350 : vector<2x8x8xf32>
    %352 = vector.shape_cast %351 : vector<2x8x8xf32> to vector<16x8xf32>
    %cst_164 = arith.constant dense<0.000000e+00> : vector<16x1xf32>
    %353 = tpu.matmul %352, %10, %cst_164 {dimension_numbers = #tpu.dot_dimension_numbers<[1], [0], [0], [1], [0, 0, 1, 1], [], []>} : vector<16x8xf32>, vector<8x1xf32>, vector<16x1xf32> -> vector<16x1xf32>
    %354 = vector.shape_cast %353 : vector<16x1xf32> to vector<2x8x1xf32>
    %355 = tpu.reciprocal %354 {approx = true} : vector<2x8x1xf32> -> vector<2x8x1xf32>
    %356 = vector.broadcast %355 : vector<2x8x1xf32> to vector<2x8x8xf32>
    %357 = arith.mulf %351, %356 : vector<2x8x8xf32>
    %358 = arith.truncf %357 : vector<2x8x8xf32> to vector<2x8x8xbf16>
    %359 = arith.truncf %340 : vector<2x8x8xf32> to vector<2x8x8xbf16>
    "tpu.trace_start"() <{level = 10 : i32, message = "bqk,bkd->bqd"}> : () -> ()
    %cst_165 = arith.constant dense<0.000000e+00> : vector<2x8x8xf32>
    %360 = tpu.matmul %358, %359, %cst_165 {dimension_numbers = #tpu.dot_dimension_numbers<[2], [1], [1], [2], [0, 0, 0, 1, 1, 2], [0], [0]>} : vector<2x8x8xbf16>, vector<2x8x8xbf16>, vector<2x8x8xf32> -> vector<2x8x8xf32>
    "tpu.trace_stop"() : () -> ()
    %361 = tpu.concatenate %291, %314, %337, %360 in 2 : vector<2x8x8xf32>, vector<2x8x8xf32>, vector<2x8x8xf32>, vector<2x8x8xf32> -> vector<2x8x32xf32>
    %362 = vector.shape_cast %361 : vector<2x8x32xf32> to vector<16x32xf32>
    %363 = arith.truncf %362 : vector<16x32xf32> to vector<16x32xbf16>
    %364 = arith.truncf %232 : vector<32x32xf32> to vector<32x32xbf16>
    %cst_166 = arith.constant dense<0.000000e+00> : vector<16x32xf32>
    %365 = tpu.matmul %363, %364, %cst_166 {dimension_numbers = #tpu.dot_dimension_numbers<[1], [0], [0], [1], [0, 0, 1, 1], [], []>} : vector<16x32xbf16>, vector<32x32xbf16>, vector<16x32xf32> -> vector<16x32xf32>
    %366 = vector.broadcast %234 : vector<1x32xf32> to vector<16x32xf32>
    %367 = arith.addf %365, %366 : vector<16x32xf32>
    %368 = arith.addf %218, %367 : vector<16x32xf32>
    %cst_167 = arith.constant dense<0.000000e+00> : vector<16x1xf32>
    %369 = tpu.matmul %368, %9, %cst_167 {dimension_numbers = #tpu.dot_dimension_numbers<[1], [0], [0], [1], [0, 0, 1, 1], [], []>} : vector<16x32xf32>, vector<32x1xf32>, vector<16x1xf32> -> vector<16x1xf32>
    %370 = arith.mulf %368, %368 : vector<16x32xf32>
    %cst_168 = arith.constant dense<0.000000e+00> : vector<16x1xf32>
    %371 = tpu.matmul %370, %9, %cst_168 {dimension_numbers = #tpu.dot_dimension_numbers<[1], [0], [0], [1], [0, 0, 1, 1], [], []>} : vector<16x32xf32>, vector<32x1xf32>, vector<16x1xf32> -> vector<16x1xf32>
    %cst_169 = arith.constant 3.125000e-02 : f32
    %372 = vector.broadcast %cst_169 : f32 to vector<16x1xf32>
    %373 = arith.mulf %369, %372 : vector<16x1xf32>
    %cst_170 = arith.constant 3.125000e-02 : f32
    %374 = vector.broadcast %cst_170 : f32 to vector<16x1xf32>
    %375 = arith.mulf %371, %374 : vector<16x1xf32>
    %376 = arith.mulf %373, %373 : vector<16x1xf32>
    %377 = arith.subf %375, %376 : vector<16x1xf32>
    %cst_171 = arith.constant 0.000000e+00 : f32
    %378 = vector.broadcast %cst_171 : f32 to vector<16x1xf32>
    %379 = arith.maximumf %377, %378 : vector<16x1xf32>
    %380 = vector.broadcast %373 : vector<16x1xf32> to vector<16x32xf32>
    %381 = arith.subf %368, %380 : vector<16x32xf32>
    %cst_172 = arith.constant 9.99999974E-6 : f32
    %382 = vector.broadcast %cst_172 : f32 to vector<16x1xf32>
    %383 = arith.addf %379, %382 : vector<16x1xf32>
    %384 = math.rsqrt %383 : vector<16x1xf32>
    %385 = vector.broadcast %384 : vector<16x1xf32> to vector<16x32xf32>
    %386 = arith.mulf %381, %385 : vector<16x32xf32>
    %387 = vector.broadcast %236 : vector<1x32xf32> to vector<16x32xf32>
    %388 = arith.mulf %386, %387 : vector<16x32xf32>
    %389 = vector.broadcast %238 : vector<1x32xf32> to vector<16x32xf32>
    %390 = arith.addf %388, %389 : vector<16x32xf32>
    %391 = arith.truncf %390 : vector<16x32xf32> to vector<16x32xbf16>
    %392 = arith.truncf %240 : vector<32x128xf32> to vector<32x128xbf16>
    %cst_173 = arith.constant dense<0.000000e+00> : vector<16x128xf32>
    %393 = tpu.matmul %391, %392, %cst_173 {dimension_numbers = #tpu.dot_dimension_numbers<[1], [0], [0], [1], [0, 0, 1, 1], [], []>} : vector<16x32xbf16>, vector<32x128xbf16>, vector<16x128xf32> -> vector<16x128xf32>
    %394 = vector.broadcast %242 : vector<1x128xf32> to vector<16x128xf32>
    %395 = arith.addf %393, %394 : vector<16x128xf32>
    %cst_174 = arith.constant 0.000000e+00 : f32
    %396 = vector.broadcast %cst_174 : f32 to vector<16x128xf32>
    %397 = arith.maximumf %395, %396 : vector<16x128xf32>
    %398 = arith.truncf %397 : vector<16x128xf32> to vector<16x128xbf16>
    %399 = arith.truncf %244 : vector<128x32xf32> to vector<128x32xbf16>
    %cst_175 = arith.constant dense<0.000000e+00> : vector<16x32xf32>
    %400 = tpu.matmul %398, %399, %cst_175 {dimension_numbers = #tpu.dot_dimension_numbers<[1], [0], [0], [1], [0, 0, 1, 1], [], []>} : vector<16x128xbf16>, vector<128x32xbf16>, vector<16x32xf32> -> vector<16x32xf32>
    %401 = vector.broadcast %246 : vector<1x32xf32> to vector<16x32xf32>
    %402 = arith.addf %400, %401 : vector<16x32xf32>
    %403 = arith.addf %390, %402 : vector<16x32xf32>
    %cst_176 = arith.constant dense<0.000000e+00> : vector<16x1xf32>
    %404 = tpu.matmul %403, %9, %cst_176 {dimension_numbers = #tpu.dot_dimension_numbers<[1], [0], [0], [1], [0, 0, 1, 1], [], []>} : vector<16x32xf32>, vector<32x1xf32>, vector<16x1xf32> -> vector<16x1xf32>
    %405 = arith.mulf %403, %403 : vector<16x32xf32>
    %cst_177 = arith.constant dense<0.000000e+00> : vector<16x1xf32>
    %406 = tpu.matmul %405, %9, %cst_177 {dimension_numbers = #tpu.dot_dimension_numbers<[1], [0], [0], [1], [0, 0, 1, 1], [], []>} : vector<16x32xf32>, vector<32x1xf32>, vector<16x1xf32> -> vector<16x1xf32>
    %cst_178 = arith.constant 3.125000e-02 : f32
    %407 = vector.broadcast %cst_178 : f32 to vector<16x1xf32>
    %408 = arith.mulf %404, %407 : vector<16x1xf32>
    %cst_179 = arith.constant 3.125000e-02 : f32
    %409 = vector.broadcast %cst_179 : f32 to vector<16x1xf32>
    %410 = arith.mulf %406, %409 : vector<16x1xf32>
    %411 = arith.mulf %408, %408 : vector<16x1xf32>
    %412 = arith.subf %410, %411 : vector<16x1xf32>
    %cst_180 = arith.constant 0.000000e+00 : f32
    %413 = vector.broadcast %cst_180 : f32 to vector<16x1xf32>
    %414 = arith.maximumf %412, %413 : vector<16x1xf32>
    %415 = vector.broadcast %408 : vector<16x1xf32> to vector<16x32xf32>
    %416 = arith.subf %403, %415 : vector<16x32xf32>
    %cst_181 = arith.constant 9.99999974E-6 : f32
    %417 = vector.broadcast %cst_181 : f32 to vector<16x1xf32>
    %418 = arith.addf %414, %417 : vector<16x1xf32>
    %419 = math.rsqrt %418 : vector<16x1xf32>
    %420 = vector.broadcast %419 : vector<16x1xf32> to vector<16x32xf32>
    %421 = arith.mulf %416, %420 : vector<16x32xf32>
    %422 = vector.broadcast %248 : vector<1x32xf32> to vector<16x32xf32>
    %423 = arith.mulf %421, %422 : vector<16x32xf32>
    %424 = vector.broadcast %250 : vector<1x32xf32> to vector<16x32xf32>
    %425 = arith.addf %423, %424 : vector<16x32xf32>
    %426 = vector.shape_cast %425 : vector<16x32xf32> to vector<2x8x32xf32>
    %427 = vector.extract_strided_slice %426 {offsets = [0, 0, 0], sizes = [2, 1, 32], strides = [1, 1, 1]} : vector<2x8x32xf32> to vector<2x1x32xf32>
    %428 = vector.shape_cast %427 : vector<2x1x32xf32> to vector<2x32xf32>
    %c0_182 = arith.constant 0 : index
    %c0_183 = arith.constant 0 : index
    %429 = vector.load %arg19[%c0_182, %c0_183] : memref<32x128xf32, #tpu.memory_space<vmem>>, vector<32x128xf32>
    %430 = arith.truncf %428 : vector<2x32xf32> to vector<2x32xbf16>
    %431 = arith.truncf %429 : vector<32x128xf32> to vector<32x128xbf16>
    %cst_184 = arith.constant dense<0.000000e+00> : vector<2x128xf32>
    %432 = tpu.matmul %430, %431, %cst_184 {dimension_numbers = #tpu.dot_dimension_numbers<[1], [0], [0], [1], [0, 0, 1, 1], [], []>} : vector<2x32xbf16>, vector<32x128xbf16>, vector<2x128xf32> -> vector<2x128xf32>
    %c0_185 = arith.constant 0 : index
    %c0_186 = arith.constant 0 : index
    %433 = vector.load %arg20[%c0_185, %c0_186] : memref<1x128xf32, #tpu.memory_space<vmem>>, vector<1x128xf32>
    %434 = vector.broadcast %433 : vector<1x128xf32> to vector<2x128xf32>
    %435 = arith.addf %432, %434 : vector<2x128xf32>
    %436 = vector.shape_cast %435 : vector<2x128xf32> to vector<2x1x128xf32>
    %c0_187 = arith.constant 0 : index
    %c0_188 = arith.constant 0 : index
    %c0_189 = arith.constant 0 : index
    %437 = vector.load %arg21[%c0_187, %c0_188, %c0_189] : memref<2x1x128xf32, #tpu.memory_space<vmem>>, vector<2x1x128xf32>
    tpu.vector_store %arg21[%c0_187, %c0_188, %c0_189], %436 {strides = array<i32>} : memref<2x1x128xf32, #tpu.memory_space<vmem>>, vector<2x1x128xf32>,
    return
  }
  func.func @transform_0(%arg0: i32) -> (i32, i32, i32) {
    %c0_i32 = arith.constant 0 : i32
    %c0_i32_0 = arith.constant 0 : i32
    %c0_i32_1 = arith.constant 0 : i32
    return %arg0, %c0_i32, %c0_i32_0 : i32, i32, i32
  }
  func.func @transform_1(%arg0: i32) -> (i32, i32, i32) {
    %c0_i32 = arith.constant 0 : i32
    %c0_i32_0 = arith.constant 0 : i32
    %c0_i32_1 = arith.constant 0 : i32
    return %arg0, %c0_i32, %c0_i32_0 : i32, i32, i32
  }
  func.func @transform_2(%arg0: i32) -> (i32, i32, i32) {
    %c0_i32 = arith.constant 0 : i32
    %c0_i32_0 = arith.constant 0 : i32
    %c0_i32_1 = arith.constant 0 : i32
    %c0_i32_2 = arith.constant 0 : i32
    return %c0_i32, %c0_i32_0, %c0_i32_1 : i32, i32, i32
  }
  func.func @transform_3(%arg0: i32) -> (i32, i32, i32) {
    %c0_i32 = arith.constant 0 : i32
    %c0_i32_0 = arith.constant 0 : i32
    %c0_i32_1 = arith.constant 0 : i32
    %c0_i32_2 = arith.constant 0 : i32
    return %c0_i32, %c0_i32_0, %c0_i32_1 : i32, i32, i32
  }
  func.func @transform_4(%arg0: i32) -> (i32, i32, i32) {
    %c0_i32 = arith.constant 0 : i32
    %c0_i32_0 = arith.constant 0 : i32
    %c0_i32_1 = arith.constant 0 : i32
    %c0_i32_2 = arith.constant 0 : i32
    return %c0_i32, %c0_i32_0, %c0_i32_1 : i32, i32, i32
  }
  func.func @transform_5(%arg0: i32) -> (i32, i32, i32) {
    %c0_i32 = arith.constant 0 : i32
    %c0_i32_0 = arith.constant 0 : i32
    %c0_i32_1 = arith.constant 0 : i32
    %c0_i32_2 = arith.constant 0 : i32
    return %c0_i32, %c0_i32_0, %c0_i32_1 : i32, i32, i32
  }
  func.func @transform_6(%arg0: i32) -> (i32, i32, i32) {
    %c0_i32 = arith.constant 0 : i32
    %c0_i32_0 = arith.constant 0 : i32
    %c0_i32_1 = arith.constant 0 : i32
    %c0_i32_2 = arith.constant 0 : i32
    return %c0_i32, %c0_i32_0, %c0_i32_1 : i32, i32, i32
  }
  func.func @transform_7(%arg0: i32) -> (i32, i32, i32) {
    %c0_i32 = arith.constant 0 : i32
    %c0_i32_0 = arith.constant 0 : i32
    %c0_i32_1 = arith.constant 0 : i32
    %c0_i32_2 = arith.constant 0 : i32
    return %c0_i32, %c0_i32_0, %c0_i32_1 : i32, i32, i32
  }
  func.func @transform_8(%arg0: i32) -> (i32, i32, i32) {
    %c0_i32 = arith.constant 0 : i32
    %c0_i32_0 = arith.constant 0 : i32
    %c0_i32_1 = arith.constant 0 : i32
    %c0_i32_2 = arith.constant 0 : i32
    return %c0_i32, %c0_i32_0, %c0_i32_1 : i32, i32, i32
  }
  func.func @transform_9(%arg0: i32) -> (i32, i32, i32) {
    %c0_i32 = arith.constant 0 : i32
    %c0_i32_0 = arith.constant 0 : i32
    %c0_i32_1 = arith.constant 0 : i32
    %c0_i32_2 = arith.constant 0 : i32
    return %c0_i32, %c0_i32_0, %c0_i32_1 : i32, i32, i32
  }
  func.func @transform_10(%arg0: i32) -> (i32, i32, i32) {
    %c0_i32 = arith.constant 0 : i32
    %c0_i32_0 = arith.constant 0 : i32
    %c0_i32_1 = arith.constant 0 : i32
    %c0_i32_2 = arith.constant 0 : i32
    return %c0_i32, %c0_i32_0, %c0_i32_1 : i32, i32, i32
  }
  func.func @transform_11(%arg0: i32) -> (i32, i32, i32) {
    %c0_i32 = arith.constant 0 : i32
    %c0_i32_0 = arith.constant 0 : i32
    %c0_i32_1 = arith.constant 0 : i32
    %c0_i32_2 = arith.constant 0 : i32
    return %c0_i32, %c0_i32_0, %c0_i32_1 : i32, i32, i32
  }
  func.func @transform_12(%arg0: i32) -> (i32, i32, i32) {
    %c0_i32 = arith.constant 0 : i32
    %c0_i32_0 = arith.constant 0 : i32
    %c0_i32_1 = arith.constant 0 : i32
    %c0_i32_2 = arith.constant 0 : i32
    return %c0_i32, %c0_i32_0, %c0_i32_1 : i32, i32, i32
  }
  func.func @transform_13(%arg0: i32) -> (i32, i32, i32) {
    %c0_i32 = arith.constant 0 : i32
    %c0_i32_0 = arith.constant 0 : i32
    %c0_i32_1 = arith.constant 0 : i32
    %c0_i32_2 = arith.constant 0 : i32
    return %c0_i32, %c0_i32_0, %c0_i32_1 : i32, i32, i32
  }
  func.func @transform_14(%arg0: i32) -> (i32, i32, i32) {
    %c0_i32 = arith.constant 0 : i32
    %c0_i32_0 = arith.constant 0 : i32
    %c0_i32_1 = arith.constant 0 : i32
    %c0_i32_2 = arith.constant 0 : i32
    return %c0_i32, %c0_i32_0, %c0_i32_1 : i32, i32, i32
  }
  func.func @transform_15(%arg0: i32) -> (i32, i32, i32) {
    %c0_i32 = arith.constant 0 : i32
    %c0_i32_0 = arith.constant 0 : i32
    %c0_i32_1 = arith.constant 0 : i32
    %c0_i32_2 = arith.constant 0 : i32
    return %c0_i32, %c0_i32_0, %c0_i32_1 : i32, i32, i32
  }
  func.func @transform_16(%arg0: i32) -> (i32, i32, i32) {
    %c0_i32 = arith.constant 0 : i32
    %c0_i32_0 = arith.constant 0 : i32
    %c0_i32_1 = arith.constant 0 : i32
    %c0_i32_2 = arith.constant 0 : i32
    return %c0_i32, %c0_i32_0, %c0_i32_1 : i32, i32, i32
  }
  func.func @transform_17(%arg0: i32) -> (i32, i32, i32) {
    %c0_i32 = arith.constant 0 : i32
    %c0_i32_0 = arith.constant 0 : i32
    %c0_i32_1 = arith.constant 0 : i32
    %c0_i32_2 = arith.constant 0 : i32
    return %c0_i32, %c0_i32_0, %c0_i32_1 : i32, i32, i32
  }
  func.func @transform_18(%arg0: i32) -> (i32, i32) {
    %c0_i32 = arith.constant 0 : i32
    %c0_i32_0 = arith.constant 0 : i32
    %c0_i32_1 = arith.constant 0 : i32
    return %c0_i32, %c0_i32_0 : i32, i32
  }
  func.func @transform_19(%arg0: i32) -> (i32, i32) {
    %c0_i32 = arith.constant 0 : i32
    %c0_i32_0 = arith.constant 0 : i32
    %c0_i32_1 = arith.constant 0 : i32
    return %c0_i32, %c0_i32_0 : i32, i32
  }
  func.func @transform_20(%arg0: i32) -> (i32, i32, i32) {
    %c0_i32 = arith.constant 0 : i32
    %c0_i32_0 = arith.constant 0 : i32
    %c0_i32_1 = arith.constant 0 : i32
    return %arg0, %c0_i32, %c0_i32_0 : i32, i32, i32
  }
}

</mosaic_0001>

<llo_original>
// kernel: tpu_custom_call.1
$region0: #{tpu_custom_call.1}
  #allocation0 [shape = 'u32[]', space=smem, size = 0x4, offset = 0x4, fixed_abs, tag = 'smem constant byte address 0x4 - core index']
  #allocation1 [shape = 'u32[144,128]{1,0:T(1,128)}', space=vmem, size = 0x12000, scoped, tag = 'internal scratch']
  %s0 = inlined_call_operand.hbm [shape: f32[2,8,32], index: 0, kind: input, shape index: {}]
  %s1 = inlined_call_operand.vmem [shape: f32[2,1,8], index: 1, kind: input, shape index: {}]
  %s2 = inlined_call_operand.vmem [shape: f32[2,32,32], index: 2, kind: input, shape index: {}]
  %s3 = inlined_call_operand.vmem [shape: f32[2,1,32], index: 3, kind: input, shape index: {}]
  %s4 = inlined_call_operand.vmem [shape: f32[2,32,32], index: 4, kind: input, shape index: {}]
  %s5 = inlined_call_operand.hbm [shape: f32[2,1,32], index: 5, kind: input, shape index: {}]
  %s6 = inlined_call_operand.vmem [shape: f32[2,32,32], index: 6, kind: input, shape index: {}]
  %s7 = inlined_call_operand.hbm [shape: f32[2,1,32], index: 7, kind: input, shape index: {}]
  %s8 = inlined_call_operand.vmem [shape: f32[2,32,32], index: 8, kind: input, shape index: {}]
  %s9 = inlined_call_operand.hbm [shape: f32[2,1,32], index: 9, kind: input, shape index: {}]
  %s10 = inlined_call_operand.hbm [shape: f32[2,1,32], index: 10, kind: input, shape index: {}]
  %s11 = inlined_call_operand.vmem [shape: f32[2,1,32], index: 11, kind: input, shape index: {}]
  %s12 = inlined_call_operand.vmem [shape: f32[2,32,128], index: 12, kind: input, shape index: {}]
  %s13 = inlined_call_operand.vmem [shape: f32[2,1,128], index: 13, kind: input, shape index: {}]
  %s14 = inlined_call_operand.vmem [shape: f32[2,128,32], index: 14, kind: input, shape index: {}]
  %s15 = inlined_call_operand.vmem [shape: f32[2,1,32], index: 15, kind: input, shape index: {}]
  %s16 = inlined_call_operand.vmem [shape: f32[2,1,32], index: 16, kind: input, shape index: {}]
  %s17 = inlined_call_operand.vmem [shape: f32[2,1,32], index: 17, kind: input, shape index: {}]
  %s18 = inlined_call_operand.vmem [shape: f32[32,128], index: 18, kind: input, shape index: {}]
  %s19 = inlined_call_operand.vmem [shape: f32[1,128], index: 19, kind: input, shape index: {}]
  %s20 = inlined_call_operand.hbm [shape: f32[2,1,128], index: 20, kind: output, shape index: {}]
  %s21 = sld [smem:[#allocation0]]
  $region110: #{tpu_custom_call.1} parent=0
    _
  %s23 = ssub.s32 1, %s21
  %s24 = scalar_select 0, %s23, %s21
  $region1: #{tpu_custom_call.1} parent=0
    #allocation2 [shape = 'u8[8192]{0}', space=vmem, size = 0x2000, scoped, tag = 'input window, operand 0, single buffered']
    #allocation3 [shape = 's32[1]{0}', space=sflag, size = 0x4, scoped, tag = 'scoped memory for tpu_custom_call.1']
    #allocation4 [shape = 's32[1]{0}', space=sflag, size = 0x4, scoped, tag = 'scoped memory for tpu_custom_call.1']
    #allocation5 [shape = 'u8[1024]{0}', space=vmem, size = 0x400, scoped, tag = 'input window, operand 5, single buffered']
    #allocation6 [shape = 's32[1]{0}', space=sflag, size = 0x4, scoped, tag = 'scoped memory for tpu_custom_call.1']
    #allocation7 [shape = 'u8[1024]{0}', space=vmem, size = 0x400, scoped, tag = 'input window, operand 7, single buffered']
    #allocation8 [shape = 'u8[1024]{0}', space=vmem, size = 0x400, scoped, tag = 'input window, operand 9, single buffered']
    #allocation9 [shape = 's32[1]{0}', space=sflag, size = 0x4, scoped, tag = 'scoped memory for tpu_custom_call.1']
    #allocation10 [shape = 'u8[1024]{0}', space=vmem, size = 0x400, scoped, tag = 'input window, operand 10, single buffered']
    #allocation11 [shape = 'u8[1024]{0}', space=vmem, size = 0x400, scoped, tag = 'output window, operand 0, single buffered']
    %25 = vsyncpa [#allocation3], 0
    %26 = vsyncpa [#allocation6], 0
    %27 = vsyncpa [#allocation9], 0
    %28 = vsyncpa [#allocation4], 0
    // Predicated region
    $region2: #{tpu_custom_call.1} parent=1 // pred_check
      _
    $region3: #{tpu_custom_call.1} parent=1 // pred_check_branch
      %30 = sbr.rel (0) target = $region5
    $region4: #{tpu_custom_call.1} parent=1 // pred_region
      %s32 = ssub.s32 256, 256
      %33 = vsyncadd [#allocation3], %s32
      %s34 = sshll.u32 [#allocation2], 4
      %s35 = int_to_ptr.vmem [resolvable:$true] %s34
      %40 = dma.hbm_to_vmem [thread:$0]  %s0, 256, %s35, [#allocation3], 128, 128, 8
    $region5: #{tpu_custom_call.1} parent=1 // pred_fallthru
      _
    // Predicated region
    $region6: #{tpu_custom_call.1} parent=1 // pred_check
      _
    $region7: #{tpu_custom_call.1} parent=1 // pred_check_branch
      %42 = sbr.rel (0) target = $region9
    $region8: #{tpu_custom_call.1} parent=1 // pred_region
      _
    $region9: #{tpu_custom_call.1} parent=1 // pred_fallthru
      _
    // Predicated region
    $region10: #{tpu_custom_call.1} parent=1 // pred_check
      _
    $region11: #{tpu_custom_call.1} parent=1 // pred_check_branch
      %44 = sbr.rel (0) target = $region13
    $region12: #{tpu_custom_call.1} parent=1 // pred_region
      _
    $region13: #{tpu_custom_call.1} parent=1 // pred_fallthru
      _
    // Predicated region
    $region14: #{tpu_custom_call.1} parent=1 // pred_check
      _
    $region15: #{tpu_custom_call.1} parent=1 // pred_check_branch
      %46 = sbr.rel (0) target = $region17
    $region16: #{tpu_custom_call.1} parent=1 // pred_region
      _
    $region17: #{tpu_custom_call.1} parent=1 // pred_fallthru
      _
    // Predicated region
    $region18: #{tpu_custom_call.1} parent=1 // pred_check
      _
    $region19: #{tpu_custom_call.1} parent=1 // pred_check_branch
      %48 = sbr.rel (0) target = $region21
    $region20: #{tpu_custom_call.1} parent=1 // pred_region
      _
    $region21: #{tpu_custom_call.1} parent=1 // pred_fallthru
      _
    // Predicated region
    $region22: #{tpu_custom_call.1} parent=1 // pred_check
      _
    $region23: #{tpu_custom_call.1} parent=1 // pred_check_branch
      %50 = sbr.rel (0) target = $region25
    $region24: #{tpu_custom_call.1} parent=1 // pred_region
      %s52 = ssub.s32 32, 32
      %53 = vsyncadd [#allocation6], %s52
      %s54 = sshll.u32 [#allocation5], 4
      %s55 = int_to_ptr.vmem [resolvable:$true] %s54
      %60 = dma.hbm_to_vmem [thread:$0]  %s5, 32, %s55, [#allocation6], 16, 16, 1
    $region25: #{tpu_custom_call.1} parent=1 // pred_fallthru
      _
    // Predicated region
    $region26: #{tpu_custom_call.1} parent=1 // pred_check
      _
    $region27: #{tpu_custom_call.1} parent=1 // pred_check_branch
      %62 = sbr.rel (0) target = $region29
    $region28: #{tpu_custom_call.1} parent=1 // pred_region
      _
    $region29: #{tpu_custom_call.1} parent=1 // pred_fallthru
      _
    // Predicated region
    $region30: #{tpu_custom_call.1} parent=1 // pred_check
      _
    $region31: #{tpu_custom_call.1} parent=1 // pred_check_branch
      %64 = sbr.rel (0) target = $region33
    $region32: #{tpu_custom_call.1} parent=1 // pred_region
      %s66 = ssub.s32 32, 32
      %67 = vsyncadd [#allocation6], %s66
      %s68 = sshll.u32 [#allocation7], 4
      %s69 = int_to_ptr.vmem [resolvable:$true] %s68
      %74 = dma.hbm_to_vmem [thread:$0]  %s7, 32, %s69, [#allocation6], 16, 16, 1
    $region33: #{tpu_custom_call.1} parent=1 // pred_fallthru
      _
    // Predicated region
    $region34: #{tpu_custom_call.1} parent=1 // pred_check
      _
    $region35: #{tpu_custom_call.1} parent=1 // pred_check_branch
      %76 = sbr.rel (0) target = $region37
    $region36: #{tpu_custom_call.1} parent=1 // pred_region
      _
    $region37: #{tpu_custom_call.1} parent=1 // pred_fallthru
      _
    // Predicated region
    $region38: #{tpu_custom_call.1} parent=1 // pred_check
      _
    $region39: #{tpu_custom_call.1} parent=1 // pred_check_branch
      %78 = sbr.rel (0) target = $region41
    $region40: #{tpu_custom_call.1} parent=1 // pred_region
      %s80 = ssub.s32 32, 32
      %81 = vsyncadd [#allocation9], %s80
      %s82 = sshll.u32 [#allocation8], 4
      %s83 = int_to_ptr.vmem [resolvable:$true] %s82
      %88 = dma.hbm_to_vmem [thread:$0]  %s9, 32, %s83, [#allocation9], 16, 16, 1
    $region41: #{tpu_custom_call.1} parent=1 // pred_fallthru
      _
    // Predicated region
    $region42: #{tpu_custom_call.1} parent=1 // pred_check
      _
    $region43: #{tpu_custom_call.1} parent=1 // pred_check_branch
      %90 = sbr.rel (0) target = $region45
    $region44: #{tpu_custom_call.1} parent=1 // pred_region
      %s92 = ssub.s32 32, 32
      %93 = vsyncadd [#allocation9], %s92
      %s94 = sshll.u32 [#allocation10], 4
      %s95 = int_to_ptr.vmem [resolvable:$true] %s94
      %100 = dma.hbm_to_vmem [thread:$0]  %s10, 32, %s95, [#allocation9], 16, 16, 1
    $region45: #{tpu_custom_call.1} parent=1 // pred_fallthru
      _
    // Predicated region
    $region46: #{tpu_custom_call.1} parent=1 // pred_check
      _
    $region47: #{tpu_custom_call.1} parent=1 // pred_check_branch
      %102 = sbr.rel (0) target = $region49
    $region48: #{tpu_custom_call.1} parent=1 // pred_region
      _
    $region49: #{tpu_custom_call.1} parent=1 // pred_fallthru
      _
    // Predicated region
    $region50: #{tpu_custom_call.1} parent=1 // pred_check
      _
    $region51: #{tpu_custom_call.1} parent=1 // pred_check_branch
      %104 = sbr.rel (0) target = $region53
    $region52: #{tpu_custom_call.1} parent=1 // pred_region
      _
    $region53: #{tpu_custom_call.1} parent=1 // pred_fallthru
      _
    // Predicated region
    $region54: #{tpu_custom_call.1} parent=1 // pred_check
      _
    $region55: #{tpu_custom_call.1} parent=1 // pred_check_branch
      %106 = sbr.rel (0) target = $region57
    $region56: #{tpu_custom_call.1} parent=1 // pred_region
      _
    $region57: #{tpu_custom_call.1} parent=1 // pred_fallthru
      _
    // Predicated region
    $region58: #{tpu_custom_call.1} parent=1 // pred_check
      _
    $region59: #{tpu_custom_call.1} parent=1 // pred_check_branch
      %108 = sbr.rel (0) target = $region61
    $region60: #{tpu_custom_call.1} parent=1 // pred_region
      _
    $region61: #{tpu_custom_call.1} parent=1 // pred_fallthru
      _
    // Predicated region
    $region62: #{tpu_custom_call.1} parent=1 // pred_check
      _
    $region63: #{tpu_custom_call.1} parent=1 // pred_check_branch
      %110 = sbr.rel (0) target = $region65
    $region64: #{tpu_custom_call.1} parent=1 // pred_region
      _
    $region65: #{tpu_custom_call.1} parent=1 // pred_fallthru
      _
    // Predicated region
    $region66: #{tpu_custom_call.1} parent=1 // pred_check
      _
    $region67: #{tpu_custom_call.1} parent=1 // pred_check_branch
      %112 = sbr.rel (0) target = $region69
    $region68: #{tpu_custom_call.1} parent=1 // pred_region
      _
    $region69: #{tpu_custom_call.1} parent=1 // pred_fallthru
      _
    // Predicated region
    $region70: #{tpu_custom_call.1} parent=1 // pred_check
      _
    $region71: #{tpu_custom_call.1} parent=1 // pred_check_branch
      %114 = sbr.rel (0) target = $region73
    $region72: #{tpu_custom_call.1} parent=1 // pred_region
      _
    $region73: #{tpu_custom_call.1} parent=1 // pred_fallthru
      _
    // Predicated region
    $region74: #{tpu_custom_call.1} parent=1 // pred_check
      _
    $region75: #{tpu_custom_call.1} parent=1 // pred_check_branch
      %116 = sbr.rel (0) target = $region77
    $region76: #{tpu_custom_call.1} parent=1 // pred_region
      _
    $region77: #{tpu_custom_call.1} parent=1 // pred_fallthru
      _
    // Predicated region
    $region78: #{tpu_custom_call.1} parent=1 // pred_check
      _
    $region79: #{tpu_custom_call.1} parent=1 // pred_check_branch
      %118 = sbr.rel (0) target = $region81
    $region80: #{tpu_custom_call.1} parent=1 // pred_region
      _
    $region81: #{tpu_custom_call.1} parent=1 // pred_fallthru
      _
    // Predicated region
    $region82: #{tpu_custom_call.1} parent=1 // pred_check
      _
    $region83: #{tpu_custom_call.1} parent=1 // pred_check_branch
      %120 = sbr.rel (0) target = $region85
    $region84: #{tpu_custom_call.1} parent=1 // pred_region
      %121 = dma.done [#allocation3], 256
    $region85: #{tpu_custom_call.1} parent=1 // pred_fallthru
      _
    // Predicated region
    $region86: #{tpu_custom_call.1} parent=1 // pred_check
      _
    $region87: #{tpu_custom_call.1} parent=1 // pred_check_branch
      %123 = sbr.rel (0) target = $region89
    $region88: #{tpu_custom_call.1} parent=1 // pred_region
      %124 = dma.done [#allocation6], 32
    $region89: #{tpu_custom_call.1} parent=1 // pred_fallthru
      _
    // Predicated region
    $region90: #{tpu_custom_call.1} parent=1 // pred_check
      _
    $region91: #{tpu_custom_call.1} parent=1 // pred_check_branch
      %126 = sbr.rel (0) target = $region93
    $region92: #{tpu_custom_call.1} parent=1 // pred_region
      %127 = dma.done [#allocation6], 32
    $region93: #{tpu_custom_call.1} parent=1 // pred_fallthru
      _
    // Predicated region
    $region94: #{tpu_custom_call.1} parent=1 // pred_check
      _
    $region95: #{tpu_custom_call.1} parent=1 // pred_check_branch
      %129 = sbr.rel (0) target = $region97
    $region96: #{tpu_custom_call.1} parent=1 // pred_region
      %130 = dma.done [#allocation9], 32
    $region97: #{tpu_custom_call.1} parent=1 // pred_fallthru
      _
    // Predicated region
    $region98: #{tpu_custom_call.1} parent=1 // pred_check
      _
    $region99: #{tpu_custom_call.1} parent=1 // pred_check_branch
      %132 = sbr.rel (0) target = $region101
    $region100: #{tpu_custom_call.1} parent=1 // pred_region
      %133 = dma.done [#allocation9], 32
    $region101: #{tpu_custom_call.1} parent=1 // pred_fallthru
      _
    %v135 = vld [vmem:[#allocation2] sm:$0xff]
    %v136 = vld [vmem:[#allocation2 + $0x8] sm:$0xff]
    %v137 = vld [vmem:[%s1] sm:$0x1]
    %v138 = vld [vmem:[%s1 + $0x1] sm:$0x1]
    %vm139 = vcmp.eq.f32.partialorder %v137, 0.0
    %vm140 = vcmp.eq.f32.partialorder %v138, 0.0
    %v141 = vsel %vm139, -1e+09, 0.0
    %v142 = vsel %vm140, -1e+09, 0.0
    %v145 = vlaneseq
    %v146 = vshrl.u32 %v145, 7
    %v147 = vsub.s32 0, %v146
    %v148 = vrot.slane %v141, %v147
    %v149 = vlaneseq
    %v150 = vshrl.u32 %v149, 7
    %v151 = vsub.s32 0, %v150
    %v152 = vrot.slane %v142, %v151
    %v155 = vld [vmem:[%s2] sm:$0xff]
    %v156 = vld [vmem:[%s2 + $0x8] sm:$0xff]
    %v157 = vld [vmem:[%s2 + $0x10] sm:$0xff]
    %v158 = vld [vmem:[%s2 + $0x18] sm:$0xff]
    %v159 = vld [vmem:[%s3] sm:$0x1]
    %v160 = vld [vmem:[%s4] sm:$0xff]
    %v161 = vld [vmem:[%s4 + $0x8] sm:$0xff]
    %v162 = vld [vmem:[%s4 + $0x10] sm:$0xff]
    %v163 = vld [vmem:[%s4 + $0x18] sm:$0xff]
    %v164 = vld [vmem:[#allocation5] sm:$0x1]
    %v165 = vld [vmem:[%s6] sm:$0xff]
    %v166 = vld [vmem:[%s6 + $0x8] sm:$0xff]
    %v167 = vld [vmem:[%s6 + $0x10] sm:$0xff]
    %v168 = vld [vmem:[%s6 + $0x18] sm:$0xff]
    %v169 = vld [vmem:[#allocation7] sm:$0x1]
    %v170 = vld [vmem:[%s8] sm:$0xff]
    %v171 = vld [vmem:[%s8 + $0x8] sm:$0xff]
    %v172 = vld [vmem:[%s8 + $0x10] sm:$0xff]
    %v173 = vld [vmem:[%s8 + $0x18] sm:$0xff]
    %v174 = vld [vmem:[#allocation8] sm:$0x1]
    %v175 = vld [vmem:[#allocation10] sm:$0x1]
    %v176 = vld [vmem:[%s11] sm:$0x1]
    %v177 = vld [vmem:[%s12] sm:$0xff]
    %v178 = vld [vmem:[%s12 + $0x8] sm:$0xff]
    %v179 = vld [vmem:[%s12 + $0x10] sm:$0xff]
    %v180 = vld [vmem:[%s12 + $0x18] sm:$0xff]
    %v181 = vld [vmem:[%s13] sm:$0x1]
    %v182 = vld [vmem:[%s14] sm:$0xff]
    %v183 = vld [vmem:[%s14 + $0x8] sm:$0xff]
    %v184 = vld [vmem:[%s14 + $0x10] sm:$0xff]
    %v185 = vld [vmem:[%s14 + $0x18] sm:$0xff]
    %v186 = vld [vmem:[%s14 + $0x20] sm:$0xff]
    %v187 = vld [vmem:[%s14 + $0x28] sm:$0xff]
    %v188 = vld [vmem:[%s14 + $0x30] sm:$0xff]
    %v189 = vld [vmem:[%s14 + $0x38] sm:$0xff]
    %v190 = vld [vmem:[%s14 + $0x40] sm:$0xff]
    %v191 = vld [vmem:[%s14 + $0x48] sm:$0xff]
    %v192 = vld [vmem:[%s14 + $0x50] sm:$0xff]
    %v193 = vld [vmem:[%s14 + $0x58] sm:$0xff]
    %v194 = vld [vmem:[%s14 + $0x60] sm:$0xff]
    %v195 = vld [vmem:[%s14 + $0x68] sm:$0xff]
    %v196 = vld [vmem:[%s14 + $0x70] sm:$0xff]
    %v197 = vld [vmem:[%s14 + $0x78] sm:$0xff]
    %v198 = vld [vmem:[%s15] sm:$0x1]
    %v199 = vld [vmem:[%s16] sm:$0x1]
    %v200 = vld [vmem:[%s17] sm:$0x1]
    %v201 = vpack.c.bf16 %v136, %v135
    %v202 = vpack.c.bf16 %v156, %v155
    %v203 = vpack.c.bf16 %v158, %v157
    %v205 = vlaneseq
    %v206 = vshrl.u32 %v205, 7
    %v207 = vsub.s32 0, %v206
    %v208 = vrot.slane %v159, %v207
    %vm210 = vcmask 261120
    %v212 = vsel %vm210, %v201, 0
    %214 = vmatprep.subr.bf16.mxu0 0
    %215 = vmatpush1.bf16.msra.mxu0 %v202
    %216 = vmatprep.subr.bf16.mxu0 0
    %217 = vmatpush1.bf16.msra.mxu0 %v203
    %218 = vmatprep.subr.bf16.mxu0 0
    %219 = vmatpush1.bf16.msra.mxu0 0
    %220 = vmatprep.subr.bf16.mxu0 0
    %221 = vmatpush1.bf16.msra.mxu0 0
    %222 = vmatprep.subr.bf16.mxu0 0
    %223 = vmatpush1.bf16.msra.mxu0 0
    %224 = vmatprep.subr.bf16.mxu0 0
    %225 = vmatpush1.bf16.msra.mxu0 0
    %226 = vmatprep.subr.bf16.mxu0 0
    %227 = vmatpush1.bf16.msra.mxu0 0
    %228 = vmatprep.subr.bf16.mxu0 0
    %229 = vmatpush1.bf16.msra.mxu0 0
    %230 = vmatprep.subr.bf16.mxu0 0
    %231 = vmatpush1.bf16.msra.mxu0 0
    %232 = vmatprep.subr.bf16.mxu0 0
    %233 = vmatpush1.bf16.msra.mxu0 0
    %234 = vmatprep.subr.bf16.mxu0 0
    %235 = vmatpush1.bf16.msra.mxu0 0
    %236 = vmatprep.subr.bf16.mxu0 0
    %237 = vmatpush1.bf16.msra.mxu0 0
    %238 = vmatprep.subr.bf16.mxu0 0
    %239 = vmatpush1.bf16.msra.mxu0 0
    %240 = vmatprep.subr.bf16.mxu0 0
    %241 = vmatpush1.bf16.msra.mxu0 0
    %242 = vmatprep.subr.bf16.mxu0 0
    %243 = vmatpush1.bf16.msra.mxu0 0
    %244 = vmatprep.subr.bf16.mxu0 0
    %245 = vmatpush1.bf16.msra.mxu0 0
    %246 = vmatprep.mubr.bf16.mxu0 0
    %247 = vmatmul.mubr.bf16.gmra.mrb[0].mxu0 %v212
    %v248 = vpop.f32.mrb[0].mxu0
    %v249 = vadd.f32 %v208, %v248
    %v250 = vpop.f32.mrb[0].mxu0
    %v251 = vpop.f32.mrb[0].mxu0
    %v252 = vadd.f32 %v208, %v251
    %v253 = vpop.f32.mrb[0].mxu0
    %254 = vdwg.mxu0
    %v255 = vpack.c.bf16 %v161, %v160
    %v256 = vpack.c.bf16 %v163, %v162
    %v258 = vlaneseq
    %v259 = vshrl.u32 %v258, 7
    %v260 = vsub.s32 0, %v259
    %v261 = vrot.slane %v164, %v260
    %263 = vmatprep.subr.bf16.mxu0 0
    %264 = vmatpush1.bf16.msra.mxu0 %v255
    %265 = vmatprep.subr.bf16.mxu0 0
    %266 = vmatpush1.bf16.msra.mxu0 %v256
    %267 = vmatprep.subr.bf16.mxu0 0
    %268 = vmatpush1.bf16.msra.mxu0 0
    %269 = vmatprep.subr.bf16.mxu0 0
    %270 = vmatpush1.bf16.msra.mxu0 0
    %271 = vmatprep.subr.bf16.mxu0 0
    %272 = vmatpush1.bf16.msra.mxu0 0
    %273 = vmatprep.subr.bf16.mxu0 0
    %274 = vmatpush1.bf16.msra.mxu0 0
    %275 = vmatprep.subr.bf16.mxu0 0
    %276 = vmatpush1.bf16.msra.mxu0 0
    %277 = vmatprep.subr.bf16.mxu0 0
    %278 = vmatpush1.bf16.msra.mxu0 0
    %279 = vmatprep.subr.bf16.mxu0 0
    %280 = vmatpush1.bf16.msra.mxu0 0
    %281 = vmatprep.subr.bf16.mxu0 0
    %282 = vmatpush1.bf16.msra.mxu0 0
    %283 = vmatprep.subr.bf16.mxu0 0
    %284 = vmatpush1.bf16.msra.mxu0 0
    %285 = vmatprep.subr.bf16.mxu0 0
    %286 = vmatpush1.bf16.msra.mxu0 0
    %287 = vmatprep.subr.bf16.mxu0 0
    %288 = vmatpush1.bf16.msra.mxu0 0
    %289 = vmatprep.subr.bf16.mxu0 0
    %290 = vmatpush1.bf16.msra.mxu0 0
    %291 = vmatprep.subr.bf16.mxu0 0
    %292 = vmatpush1.bf16.msra.mxu0 0
    %293 = vmatprep.subr.bf16.mxu0 0
    %294 = vmatpush1.bf16.msra.mxu0 0
    %295 = vmatprep.mubr.bf16.mxu0 0
    %296 = vmatmul.mubr.bf16.gmra.mrb[0].mxu0 %v212
    %v297 = vpop.f32.mrb[0].mxu0
    %v298 = vadd.f32 %v261, %v297
    %v299 = vpop.f32.mrb[0].mxu0
    %v300 = vpop.f32.mrb[0].mxu0
    %v301 = vadd.f32 %v261, %v300
    %v302 = vpop.f32.mrb[0].mxu0
    %303 = vdwg.mxu0
    %v304 = vpack.c.bf16 %v166, %v165
    %v305 = vpack.c.bf16 %v168, %v167
    %v307 = vlaneseq
    %v308 = vshrl.u32 %v307, 7
    %v309 = vsub.s32 0, %v308
    %v310 = vrot.slane %v169, %v309
    %312 = vmatprep.subr.bf16.mxu0 0
    %313 = vmatpush1.bf16.msra.mxu0 %v304
    %314 = vmatprep.subr.bf16.mxu0 0
    %315 = vmatpush1.bf16.msra.mxu0 %v305
    %316 = vmatprep.subr.bf16.mxu0 0
    %317 = vmatpush1.bf16.msra.mxu0 0
    %318 = vmatprep.subr.bf16.mxu0 0
    %319 = vmatpush1.bf16.msra.mxu0 0
    %320 = vmatprep.subr.bf16.mxu0 0
    %321 = vmatpush1.bf16.msra.mxu0 0
    %322 = vmatprep.subr.bf16.mxu0 0
    %323 = vmatpush1.bf16.msra.mxu0 0
    %324 = vmatprep.subr.bf16.mxu0 0
    %325 = vmatpush1.bf16.msra.mxu0 0
    %326 = vmatprep.subr.bf16.mxu0 0
    %327 = vmatpush1.bf16.msra.mxu0 0
    %328 = vmatprep.subr.bf16.mxu0 0
    %329 = vmatpush1.bf16.msra.mxu0 0
    %330 = vmatprep.subr.bf16.mxu0 0
    %331 = vmatpush1.bf16.msra.mxu0 0
    %332 = vmatprep.subr.bf16.mxu0 0
    %333 = vmatpush1.bf16.msra.mxu0 0
    %334 = vmatprep.subr.bf16.mxu0 0
    %335 = vmatpush1.bf16.msra.mxu0 0
    %336 = vmatprep.subr.bf16.mxu0 0
    %337 = vmatpush1.bf16.msra.mxu0 0
    %338 = vmatprep.subr.bf16.mxu0 0
    %339 = vmatpush1.bf16.msra.mxu0 0
    %340 = vmatprep.subr.bf16.mxu0 0
    %341 = vmatpush1.bf16.msra.mxu0 0
    %342 = vmatprep.subr.bf16.mxu0 0
    %343 = vmatpush1.bf16.msra.mxu0 0
    %344 = vmatprep.mubr.bf16.mxu0 0
    %345 = vmatmul.mubr.bf16.gmra.mrb[0].mxu0 %v212
    %v346 = vpop.f32.mrb[0].mxu0
    %v347 = vadd.f32 %v310, %v346
    %v348 = vpop.f32.mrb[0].mxu0
    %v349 = vpop.f32.mrb[0].mxu0
    %v350 = vadd.f32 %v310, %v349
    %v351 = vpop.f32.mrb[0].mxu0
    %352 = vdwg.mxu0
    %v353 = vpack.c.bf16 %v249, %v249
    %v354 = vpack.c.bf16 %v252, %v252
    %v355 = vpack.c.bf16 %v298, %v298
    %v356 = vpack.c.bf16 %v301, %v301
    %vm357 = vcmask 64512
    %v359 = vsel %vm357, %v353, 0
    %v362 = vsel %vm357, %v355, 0
    %364 = vmatprep.subr.bf16.mxu0 0
    %365 = vmatpush1.bf16.xpose.msra.mxu0 %v362
    %366 = vmatprep.subr.bf16.mxu0 0
    %367 = vmatpush1.bf16.xpose.msra.mxu0 0
    %368 = vmatprep.subr.bf16.mxu0 0
    %369 = vmatpush1.bf16.xpose.msra.mxu0 0
    %370 = vmatprep.subr.bf16.mxu0 0
    %371 = vmatpush1.bf16.xpose.msra.mxu0 0
    %372 = vmatprep.subr.bf16.mxu0 0
    %373 = vmatpush1.bf16.xpose.msra.mxu0 0
    %374 = vmatprep.subr.bf16.mxu0 0
    %375 = vmatpush1.bf16.xpose.msra.mxu0 0
    %376 = vmatprep.subr.bf16.mxu0 0
    %377 = vmatpush1.bf16.xpose.msra.mxu0 0
    %378 = vmatprep.subr.bf16.mxu0 0
    %379 = vmatpush1.bf16.xpose.msra.mxu0 0
    %380 = vmatprep.subr.bf16.mxu0 0
    %381 = vmatpush1.bf16.xpose.msra.mxu0 0
    %382 = vmatprep.subr.bf16.mxu0 0
    %383 = vmatpush1.bf16.xpose.msra.mxu0 0
    %384 = vmatprep.subr.bf16.mxu0 0
    %385 = vmatpush1.bf16.xpose.msra.mxu0 0
    %386 = vmatprep.subr.bf16.mxu0 0
    %387 = vmatpush1.bf16.xpose.msra.mxu0 0
    %388 = vmatprep.subr.bf16.mxu0 0
    %389 = vmatpush1.bf16.xpose.msra.mxu0 0
    %390 = vmatprep.subr.bf16.mxu0 0
    %391 = vmatpush1.bf16.xpose.msra.mxu0 0
    %392 = vmatprep.subr.bf16.mxu0 0
    %393 = vmatpush1.bf16.xpose.msra.mxu0 0
    %394 = vmatprep.subr.bf16.mxu0 0
    %395 = vmatpush1.bf16.xpose.msra.mxu0 0
    %396 = vmatprep.mubr.bf16.mxu0 0
    %397 = vmatmul.mubr.bf16.gmra.mrb[0].mxu0 %v359
    %v398 = vpop.f32.mrb[0].mxu0
    %v399 = vadd.f32 0.0, %v398
    %v400 = vpop.f32.mrb[0].mxu0
    %v401 = vpop.f32.mrb[0].mxu0
    %v402 = vpop.f32.mrb[0].mxu0
    %403 = vdwg.mxu0
    %v405 = vsel %vm357, %v354, 0
    %v408 = vsel %vm357, %v356, 0
    %410 = vmatprep.subr.bf16.mxu0 0
    %411 = vmatpush1.bf16.xpose.msra.mxu0 %v408
    %412 = vmatprep.subr.bf16.mxu0 0
    %413 = vmatpush1.bf16.xpose.msra.mxu0 0
    %414 = vmatprep.subr.bf16.mxu0 0
    %415 = vmatpush1.bf16.xpose.msra.mxu0 0
    %416 = vmatprep.subr.bf16.mxu0 0
    %417 = vmatpush1.bf16.xpose.msra.mxu0 0
    %418 = vmatprep.subr.bf16.mxu0 0
    %419 = vmatpush1.bf16.xpose.msra.mxu0 0
    %420 = vmatprep.subr.bf16.mxu0 0
    %421 = vmatpush1.bf16.xpose.msra.mxu0 0
    %422 = vmatprep.subr.bf16.mxu0 0
    %423 = vmatpush1.bf16.xpose.msra.mxu0 0
    %424 = vmatprep.subr.bf16.mxu0 0
    %425 = vmatpush1.bf16.xpose.msra.mxu0 0
    %426 = vmatprep.subr.bf16.mxu0 0
    %427 = vmatpush1.bf16.xpose.msra.mxu0 0
    %428 = vmatprep.subr.bf16.mxu0 0
    %429 = vmatpush1.bf16.xpose.msra.mxu0 0
    %430 = vmatprep.subr.bf16.mxu0 0
    %431 = vmatpush1.bf16.xpose.msra.mxu0 0
    %432 = vmatprep.subr.bf16.mxu0 0
    %433 = vmatpush1.bf16.xpose.msra.mxu0 0
    %434 = vmatprep.subr.bf16.mxu0 0
    %435 = vmatpush1.bf16.xpose.msra.mxu0 0
    %436 = vmatprep.subr.bf16.mxu0 0
    %437 = vmatpush1.bf16.xpose.msra.mxu0 0
    %438 = vmatprep.subr.bf16.mxu0 0
    %439 = vmatpush1.bf16.xpose.msra.mxu0 0
    %440 = vmatprep.subr.bf16.mxu0 0
    %441 = vmatpush1.bf16.xpose.msra.mxu0 0
    %442 = vmatprep.mubr.bf16.mxu0 0
    %443 = vmatmul.mubr.bf16.gmra.mrb[0].mxu0 %v405
    %v444 = vpop.f32.mrb[0].mxu0
    %v445 = vadd.f32 0.0, %v444
    %v446 = vpop.f32.mrb[0].mxu0
    %v447 = vpop.f32.mrb[0].mxu0
    %v448 = vpop.f32.mrb[0].mxu0
    %449 = vdwg.mxu0
    %v450 = vmul.f32 %v399, 0.35355338
    %v451 = vmul.f32 %v445, 0.35355338
    %v452 = vadd.f32 %v450, %v148
    %v453 = vadd.f32 %v451, %v152
    %v454 = vsel %vm357, %v452, -inf
    %455 = vmax.xlane.f32.xlu0 %v454
    %v456 = vpop.xlane.xlu0 %455
    %v457 = vsel %vm357, %v453, -inf
    %458 = vmax.xlane.f32.xlu0 %v457
    %v459 = vpop.xlane.xlu0 %458
    %v460 = vsub.f32 %v452, %v456
    %v461 = vsub.f32 %v453, %v459
    %v462 = vmul.f32 %v460, 1.442695
    %v463 = vpow.pop %v462
    %v464 = vmul.f32 %v461, 1.442695
    %v465 = vpow.pop %v464
    %v467 = vsel %vm357, %v463, 0
    %v470 = vsel %vm357, %v465, 0
    %472 = vmatprep.subr.mxu0 0.0
    %473 = vmatpush1.msra.mxu0 1.0
    %474 = vmatprep.subr.mxu0 0.0
    %475 = vmatpush1.msra.mxu0 0.0
    %476 = vmatprep.subr.mxu0 0.0
    %477 = vmatpush1.msra.mxu0 0.0
    %478 = vmatprep.subr.mxu0 0.0
    %479 = vmatpush1.msra.mxu0 0.0
    %480 = vmatprep.subr.mxu0 0.0
    %481 = vmatpush1.msra.mxu0 0.0
    %482 = vmatprep.subr.mxu0 0.0
    %483 = vmatpush1.msra.mxu0 0.0
    %484 = vmatprep.subr.mxu0 0.0
    %485 = vmatpush1.msra.mxu0 0.0
    %486 = vmatprep.subr.mxu0 0.0
    %487 = vmatpush1.msra.mxu0 0.0
    %488 = vmatprep.subr.mxu0 0.0
    %489 = vmatpush1.msra.mxu0 0.0
    %490 = vmatprep.subr.mxu0 0.0
    %491 = vmatpush1.msra.mxu0 0.0
    %492 = vmatprep.subr.mxu0 0.0
    %493 = vmatpush1.msra.mxu0 0.0
    %494 = vmatprep.subr.mxu0 0.0
    %495 = vmatpush1.msra.mxu0 0.0
    %496 = vmatprep.subr.mxu0 0.0
    %497 = vmatpush1.msra.mxu0 0.0
    %498 = vmatprep.subr.mxu0 0.0
    %499 = vmatpush1.msra.mxu0 0.0
    %500 = vmatprep.subr.mxu0 0.0
    %501 = vmatpush1.msra.mxu0 0.0
    %502 = vmatprep.subr.mxu0 0.0
    %503 = vmatpush1.msra.mxu0 0.0
    %504 = vmatprep.subr.mxu0 0.0
    %505 = vmatpush1.msra.mxu0 0.0
    %506 = vmatprep.subr.mxu0 0.0
    %507 = vmatpush1.msra.mxu0 0.0
    %508 = vmatprep.subr.mxu0 0.0
    %509 = vmatpush1.msra.mxu0 0.0
    %510 = vmatprep.subr.mxu0 0.0
    %511 = vmatpush1.msra.mxu0 0.0
    %512 = vmatprep.subr.mxu0 0.0
    %513 = vmatpush1.msra.mxu0 0.0
    %514 = vmatprep.subr.mxu0 0.0
    %515 = vmatpush1.msra.mxu0 0.0
    %516 = vmatprep.subr.mxu0 0.0
    %517 = vmatpush1.msra.mxu0 0.0
    %518 = vmatprep.subr.mxu0 0.0
    %519 = vmatpush1.msra.mxu0 0.0
    %520 = vmatprep.subr.mxu0 0.0
    %521 = vmatpush1.msra.mxu0 0.0
    %522 = vmatprep.subr.mxu0 0.0
    %523 = vmatpush1.msra.mxu0 0.0
    %524 = vmatprep.subr.mxu0 0.0
    %525 = vmatpush1.msra.mxu0 0.0
    %526 = vmatprep.subr.mxu0 0.0
    %527 = vmatpush1.msra.mxu0 0.0
    %528 = vmatprep.subr.mxu0 0.0
    %529 = vmatpush1.msra.mxu0 0.0
    %530 = vmatprep.subr.mxu0 0.0
    %531 = vmatpush1.msra.mxu0 0.0
    %532 = vmatprep.subr.mxu0 0.0
    %533 = vmatpush1.msra.mxu0 0.0
    %534 = vmatprep.subr.mxu0 0.0
    %535 = vmatpush1.msra.mxu0 0.0
    %536 = vmatprep.mubr.f32.mxu0 0.0
    %537 = vmatmul.mubr.f32.gmra.mrb[0].mxu0 %v467
    %v538 = vpop.f32.mrb[0].mxu0
    %v539 = vadd.f32 0.0, %v538
    %v540 = vpop.f32.mrb[0].mxu0
    %541 = vmatprep.mubr.f32.mxu0 0.0
    %542 = vmatmul.mubr.f32.gmra.mrb[0].mxu0 %v470
    %v543 = vpop.f32.mrb[0].mxu0
    %v544 = vadd.f32 0.0, %v543
    %v545 = vpop.f32.mrb[0].mxu0
    %546 = vdwg.mxu0
    %v547 = vrcp.pop %v539
    %v548 = vrcp.pop %v544
    %550 = vset.pattern.permute.xlu0 0
    %551 = vperm.xlu0 %550, %v547
    %v552 = vpop.permute.xlu0 %551
    %555 = vset.pattern.permute.xlu0 0
    %556 = vperm.xlu0 %555, %v548
    %v557 = vpop.permute.xlu0 %556
    %v559 = vmul.f32 %v463, %v552
    %v560 = vmul.f32 %v465, %v557
    %v561 = vpack.c.bf16 %v559, %v559
    %v562 = vpack.c.bf16 %v560, %v560
    %v563 = vpack.c.bf16 %v347, %v347
    %v564 = vpack.c.bf16 %v350, %v350
    %v566 = vsel %vm357, %v561, 0
    %vm568 = vcmask 1043456
    %v570 = vsel %vm568, %v563, 0
    %572 = vmatprep.subr.bf16.mxu0 0
    %573 = vmatpush1.bf16.msra.mxu0 %v570
    %574 = vmatprep.subr.bf16.mxu0 0
    %575 = vmatpush1.bf16.msra.mxu0 0
    %576 = vmatprep.subr.bf16.mxu0 0
    %577 = vmatpush1.bf16.msra.mxu0 0
    %578 = vmatprep.subr.bf16.mxu0 0
    %579 = vmatpush1.bf16.msra.mxu0 0
    %580 = vmatprep.subr.bf16.mxu0 0
    %581 = vmatpush1.bf16.msra.mxu0 0
    %582 = vmatprep.subr.bf16.mxu0 0
    %583 = vmatpush1.bf16.msra.mxu0 0
    %584 = vmatprep.subr.bf16.mxu0 0
    %585 = vmatpush1.bf16.msra.mxu0 0
    %586 = vmatprep.subr.bf16.mxu0 0
    %587 = vmatpush1.bf16.msra.mxu0 0
    %588 = vmatprep.subr.bf16.mxu0 0
    %589 = vmatpush1.bf16.msra.mxu0 0
    %590 = vmatprep.subr.bf16.mxu0 0
    %591 = vmatpush1.bf16.msra.mxu0 0
    %592 = vmatprep.subr.bf16.mxu0 0
    %593 = vmatpush1.bf16.msra.mxu0 0
    %594 = vmatprep.subr.bf16.mxu0 0
    %595 = vmatpush1.bf16.msra.mxu0 0
    %596 = vmatprep.subr.bf16.mxu0 0
    %597 = vmatpush1.bf16.msra.mxu0 0
    %598 = vmatprep.subr.bf16.mxu0 0
    %599 = vmatpush1.bf16.msra.mxu0 0
    %600 = vmatprep.subr.bf16.mxu0 0
    %601 = vmatpush1.bf16.msra.mxu0 0
    %602 = vmatprep.subr.bf16.mxu0 0
    %603 = vmatpush1.bf16.msra.mxu0 0
    %604 = vmatprep.mubr.bf16.mxu0 0
    %605 = vmatmul.mubr.bf16.gmra.mrb[0].mxu0 %v566
    %v606 = vpop.f32.mrb[0].mxu0
    %v607 = vadd.f32 0.0, %v606
    %v608 = vpop.f32.mrb[0].mxu0
    %v609 = vpop.f32.mrb[0].mxu0
    %v610 = vpop.f32.mrb[0].mxu0
    %611 = vdwg.mxu0
    %v613 = vsel %vm357, %v562, 0
    %v616 = vsel %vm568, %v564, 0
    %618 = vmatprep.subr.bf16.mxu0 0
    %619 = vmatpush1.bf16.msra.mxu0 %v616
    %620 = vmatprep.subr.bf16.mxu0 0
    %621 = vmatpush1.bf16.msra.mxu0 0
    %622 = vmatprep.subr.bf16.mxu0 0
    %623 = vmatpush1.bf16.msra.mxu0 0
    %624 = vmatprep.subr.bf16.mxu0 0
    %625 = vmatpush1.bf16.msra.mxu0 0
    %626 = vmatprep.subr.bf16.mxu0 0
    %627 = vmatpush1.bf16.msra.mxu0 0
    %628 = vmatprep.subr.bf16.mxu0 0
    %629 = vmatpush1.bf16.msra.mxu0 0
    %630 = vmatprep.subr.bf16.mxu0 0
    %631 = vmatpush1.bf16.msra.mxu0 0
    %632 = vmatprep.subr.bf16.mxu0 0
    %633 = vmatpush1.bf16.msra.mxu0 0
    %634 = vmatprep.subr.bf16.mxu0 0
    %635 = vmatpush1.bf16.msra.mxu0 0
    %636 = vmatprep.subr.bf16.mxu0 0
    %637 = vmatpush1.bf16.msra.mxu0 0
    %638 = vmatprep.subr.bf16.mxu0 0
    %639 = vmatpush1.bf16.msra.mxu0 0
    %640 = vmatprep.subr.bf16.mxu0 0
    %641 = vmatpush1.bf16.msra.mxu0 0
    %642 = vmatprep.subr.bf16.mxu0 0
    %643 = vmatpush1.bf16.msra.mxu0 0
    %644 = vmatprep.subr.bf16.mxu0 0
    %645 = vmatpush1.bf16.msra.mxu0 0
    %646 = vmatprep.subr.bf16.mxu0 0
    %647 = vmatpush1.bf16.msra.mxu0 0
    %648 = vmatprep.subr.bf16.mxu0 0
    %649 = vmatpush1.bf16.msra.mxu0 0
    %650 = vmatprep.mubr.bf16.mxu0 0
    %651 = vmatmul.mubr.bf16.gmra.mrb[0].mxu0 %v613
    %v652 = vpop.f32.mrb[0].mxu0
    %v653 = vadd.f32 0.0, %v652
    %v654 = vpop.f32.mrb[0].mxu0
    %v655 = vpop.f32.mrb[0].mxu0
    %v656 = vpop.f32.mrb[0].mxu0
    %657 = vdwg.mxu0
    %659 = vrot.lane.b32.xlu0 %v353, 120
    %v660 = vpop.permute.xlu0 %659
    %662 = vrot.lane.b32.xlu0 %v355, 120
    %v663 = vpop.permute.xlu0 %662
    %v665 = vsel %vm357, %v660, 0
    %v668 = vsel %vm357, %v663, 0
    %670 = vmatprep.subr.bf16.mxu0 0
    %671 = vmatpush1.bf16.xpose.msra.mxu0 %v668
    %672 = vmatprep.subr.bf16.mxu0 0
    %673 = vmatpush1.bf16.xpose.msra.mxu0 0
    %674 = vmatprep.subr.bf16.mxu0 0
    %675 = vmatpush1.bf16.xpose.msra.mxu0 0
    %676 = vmatprep.subr.bf16.mxu0 0
    %677 = vmatpush1.bf16.xpose.msra.mxu0 0
    %678 = vmatprep.subr.bf16.mxu0 0
    %679 = vmatpush1.bf16.xpose.msra.mxu0 0
    %680 = vmatprep.subr.bf16.mxu0 0
    %681 = vmatpush1.bf16.xpose.msra.mxu0 0
    %682 = vmatprep.subr.bf16.mxu0 0
    %683 = vmatpush1.bf16.xpose.msra.mxu0 0
    %684 = vmatprep.subr.bf16.mxu0 0
    %685 = vmatpush1.bf16.xpose.msra.mxu0 0
    %686 = vmatprep.subr.bf16.mxu0 0
    %687 = vmatpush1.bf16.xpose.msra.mxu0 0
    %688 = vmatprep.subr.bf16.mxu0 0
    %689 = vmatpush1.bf16.xpose.msra.mxu0 0
    %690 = vmatprep.subr.bf16.mxu0 0
    %691 = vmatpush1.bf16.xpose.msra.mxu0 0
    %692 = vmatprep.subr.bf16.mxu0 0
    %693 = vmatpush1.bf16.xpose.msra.mxu0 0
    %694 = vmatprep.subr.bf16.mxu0 0
    %695 = vmatpush1.bf16.xpose.msra.mxu0 0
    %696 = vmatprep.subr.bf16.mxu0 0
    %697 = vmatpush1.bf16.xpose.msra.mxu0 0
    %698 = vmatprep.subr.bf16.mxu0 0
    %699 = vmatpush1.bf16.xpose.msra.mxu0 0
    %700 = vmatprep.subr.bf16.mxu0 0
    %701 = vmatpush1.bf16.xpose.msra.mxu0 0
    %702 = vmatprep.mubr.bf16.mxu0 0
    %703 = vmatmul.mubr.bf16.gmra.mrb[0].mxu0 %v665
    %v704 = vpop.f32.mrb[0].mxu0
    %v705 = vadd.f32 0.0, %v704
    %v706 = vpop.f32.mrb[0].mxu0
    %v707 = vpop.f32.mrb[0].mxu0
    %v708 = vpop.f32.mrb[0].mxu0
    %709 = vdwg.mxu0
    %711 = vrot.lane.b32.xlu0 %v354, 120
    %v712 = vpop.permute.xlu0 %711
    %714 = vrot.lane.b32.xlu0 %v356, 120
    %v715 = vpop.permute.xlu0 %714
    %v717 = vsel %vm357, %v712, 0
    %v720 = vsel %vm357, %v715, 0
    %722 = vmatprep.subr.bf16.mxu0 0
    %723 = vmatpush1.bf16.xpose.msra.mxu0 %v720
    %724 = vmatprep.subr.bf16.mxu0 0
    %725 = vmatpush1.bf16.xpose.msra.mxu0 0
    %726 = vmatprep.subr.bf16.mxu0 0
    %727 = vmatpush1.bf16.xpose.msra.mxu0 0
    %728 = vmatprep.subr.bf16.mxu0 0
    %729 = vmatpush1.bf16.xpose.msra.mxu0 0
    %730 = vmatprep.subr.bf16.mxu0 0
    %731 = vmatpush1.bf16.xpose.msra.mxu0 0
    %732 = vmatprep.subr.bf16.mxu0 0
    %733 = vmatpush1.bf16.xpose.msra.mxu0 0
    %734 = vmatprep.subr.bf16.mxu0 0
    %735 = vmatpush1.bf16.xpose.msra.mxu0 0
    %736 = vmatprep.subr.bf16.mxu0 0
    %737 = vmatpush1.bf16.xpose.msra.mxu0 0
    %738 = vmatprep.subr.bf16.mxu0 0
    %739 = vmatpush1.bf16.xpose.msra.mxu0 0
    %740 = vmatprep.subr.bf16.mxu0 0
    %741 = vmatpush1.bf16.xpose.msra.mxu0 0
    %742 = vmatprep.subr.bf16.mxu0 0
    %743 = vmatpush1.bf16.xpose.msra.mxu0 0
    %744 = vmatprep.subr.bf16.mxu0 0
    %745 = vmatpush1.bf16.xpose.msra.mxu0 0
    %746 = vmatprep.subr.bf16.mxu0 0
    %747 = vmatpush1.bf16.xpose.msra.mxu0 0
    %748 = vmatprep.subr.bf16.mxu0 0
    %749 = vmatpush1.bf16.xpose.msra.mxu0 0
    %750 = vmatprep.subr.bf16.mxu0 0
    %751 = vmatpush1.bf16.xpose.msra.mxu0 0
    %752 = vmatprep.subr.bf16.mxu0 0
    %753 = vmatpush1.bf16.xpose.msra.mxu0 0
    %754 = vmatprep.mubr.bf16.mxu0 0
    %755 = vmatmul.mubr.bf16.gmra.mrb[0].mxu0 %v717
    %v756 = vpop.f32.mrb[0].mxu0
    %v757 = vadd.f32 0.0, %v756
    %v758 = vpop.f32.mrb[0].mxu0
    %v759 = vpop.f32.mrb[0].mxu0
    %v760 = vpop.f32.mrb[0].mxu0
    %761 = vdwg.mxu0
    %v762 = vmul.f32 %v705, 0.35355338
    %v763 = vmul.f32 %v757, 0.35355338
    %v764 = vadd.f32 %v762, %v148
    %v765 = vadd.f32 %v763, %v152
    %v766 = vsel %vm357, %v764, -inf
    %767 = vmax.xlane.f32.xlu0 %v766
    %v768 = vpop.xlane.xlu0 %767
    %v769 = vsel %vm357, %v765, -inf
    %770 = vmax.xlane.f32.xlu0 %v769
    %v771 = vpop.xlane.xlu0 %770
    %v772 = vsub.f32 %v764, %v768
    %v773 = vsub.f32 %v765, %v771
    %v774 = vmul.f32 %v772, 1.442695
    %v775 = vpow.pop %v774
    %v776 = vmul.f32 %v773, 1.442695
    %v777 = vpow.pop %v776
    %v779 = vsel %vm357, %v775, 0
    %v782 = vsel %vm357, %v777, 0
    %784 = vmatprep.subr.mxu0 0.0
    %785 = vmatpush1.msra.mxu0 1.0
    %786 = vmatprep.subr.mxu0 0.0
    %787 = vmatpush1.msra.mxu0 0.0
    %788 = vmatprep.subr.mxu0 0.0
    %789 = vmatpush1.msra.mxu0 0.0
    %790 = vmatprep.subr.mxu0 0.0
    %791 = vmatpush1.msra.mxu0 0.0
    %792 = vmatprep.subr.mxu0 0.0
    %793 = vmatpush1.msra.mxu0 0.0
    %794 = vmatprep.subr.mxu0 0.0
    %795 = vmatpush1.msra.mxu0 0.0
    %796 = vmatprep.subr.mxu0 0.0
    %797 = vmatpush1.msra.mxu0 0.0
    %798 = vmatprep.subr.mxu0 0.0
    %799 = vmatpush1.msra.mxu0 0.0
    %800 = vmatprep.subr.mxu0 0.0
    %801 = vmatpush1.msra.mxu0 0.0
    %802 = vmatprep.subr.mxu0 0.0
    %803 = vmatpush1.msra.mxu0 0.0
    %804 = vmatprep.subr.mxu0 0.0
    %805 = vmatpush1.msra.mxu0 0.0
    %806 = vmatprep.subr.mxu0 0.0
    %807 = vmatpush1.msra.mxu0 0.0
    %808 = vmatprep.subr.mxu0 0.0
    %809 = vmatpush1.msra.mxu0 0.0
    %810 = vmatprep.subr.mxu0 0.0
    %811 = vmatpush1.msra.mxu0 0.0
    %812 = vmatprep.subr.mxu0 0.0
    %813 = vmatpush1.msra.mxu0 0.0
    %814 = vmatprep.subr.mxu0 0.0
    %815 = vmatpush1.msra.mxu0 0.0
    %816 = vmatprep.subr.mxu0 0.0
    %817 = vmatpush1.msra.mxu0 0.0
    %818 = vmatprep.subr.mxu0 0.0
    %819 = vmatpush1.msra.mxu0 0.0
    %820 = vmatprep.subr.mxu0 0.0
    %821 = vmatpush1.msra.mxu0 0.0
    %822 = vmatprep.subr.mxu0 0.0
    %823 = vmatpush1.msra.mxu0 0.0
    %824 = vmatprep.subr.mxu0 0.0
    %825 = vmatpush1.msra.mxu0 0.0
    %826 = vmatprep.subr.mxu0 0.0
    %827 = vmatpush1.msra.mxu0 0.0
    %828 = vmatprep.subr.mxu0 0.0
    %829 = vmatpush1.msra.mxu0 0.0
    %830 = vmatprep.subr.mxu0 0.0
    %831 = vmatpush1.msra.mxu0 0.0
    %832 = vmatprep.subr.mxu0 0.0
    %833 = vmatpush1.msra.mxu0 0.0
    %834 = vmatprep.subr.mxu0 0.0
    %835 = vmatpush1.msra.mxu0 0.0
    %836 = vmatprep.subr.mxu0 0.0
    %837 = vmatpush1.msra.mxu0 0.0
    %838 = vmatprep.subr.mxu0 0.0
    %839 = vmatpush1.msra.mxu0 0.0
    %840 = vmatprep.subr.mxu0 0.0
    %841 = vmatpush1.msra.mxu0 0.0
    %842 = vmatprep.subr.mxu0 0.0
    %843 = vmatpush1.msra.mxu0 0.0
    %844 = vmatprep.subr.mxu0 0.0
    %845 = vmatpush1.msra.mxu0 0.0
    %846 = vmatprep.subr.mxu0 0.0
    %847 = vmatpush1.msra.mxu0 0.0
    %848 = vmatprep.mubr.f32.mxu0 0.0
    %849 = vmatmul.mubr.f32.gmra.mrb[0].mxu0 %v779
    %v850 = vpop.f32.mrb[0].mxu0
    %v851 = vadd.f32 0.0, %v850
    %v852 = vpop.f32.mrb[0].mxu0
    %853 = vmatprep.mubr.f32.mxu0 0.0
    %854 = vmatmul.mubr.f32.gmra.mrb[0].mxu0 %v782
    %v855 = vpop.f32.mrb[0].mxu0
    %v856 = vadd.f32 0.0, %v855
    %v857 = vpop.f32.mrb[0].mxu0
    %858 = vdwg.mxu0
    %v859 = vrcp.pop %v851
    %v860 = vrcp.pop %v856
    %862 = vset.pattern.permute.xlu0 0
    %863 = vperm.xlu0 %862, %v859
    %v864 = vpop.permute.xlu0 %863
    %867 = vset.pattern.permute.xlu0 0
    %868 = vperm.xlu0 %867, %v860
    %v869 = vpop.permute.xlu0 %868
    %v871 = vmul.f32 %v775, %v864
    %v872 = vmul.f32 %v777, %v869
    %v873 = vpack.c.bf16 %v871, %v871
    %v874 = vpack.c.bf16 %v872, %v872
    %876 = vrot.lane.b32.xlu0 %v563, 120
    %v877 = vpop.permute.xlu0 %876
    %v879 = vsel %vm357, %v873, 0
    %v882 = vsel %vm568, %v877, 0
    %884 = vmatprep.subr.bf16.mxu0 0
    %885 = vmatpush1.bf16.msra.mxu0 %v882
    %886 = vmatprep.subr.bf16.mxu0 0
    %887 = vmatpush1.bf16.msra.mxu0 0
    %888 = vmatprep.subr.bf16.mxu0 0
    %889 = vmatpush1.bf16.msra.mxu0 0
    %890 = vmatprep.subr.bf16.mxu0 0
    %891 = vmatpush1.bf16.msra.mxu0 0
    %892 = vmatprep.subr.bf16.mxu0 0
    %893 = vmatpush1.bf16.msra.mxu0 0
    %894 = vmatprep.subr.bf16.mxu0 0
    %895 = vmatpush1.bf16.msra.mxu0 0
    %896 = vmatprep.subr.bf16.mxu0 0
    %897 = vmatpush1.bf16.msra.mxu0 0
    %898 = vmatprep.subr.bf16.mxu0 0
    %899 = vmatpush1.bf16.msra.mxu0 0
    %900 = vmatprep.subr.bf16.mxu0 0
    %901 = vmatpush1.bf16.msra.mxu0 0
    %902 = vmatprep.subr.bf16.mxu0 0
    %903 = vmatpush1.bf16.msra.mxu0 0
    %904 = vmatprep.subr.bf16.mxu0 0
    %905 = vmatpush1.bf16.msra.mxu0 0
    %906 = vmatprep.subr.bf16.mxu0 0
    %907 = vmatpush1.bf16.msra.mxu0 0
    %908 = vmatprep.subr.bf16.mxu0 0
    %909 = vmatpush1.bf16.msra.mxu0 0
    %910 = vmatprep.subr.bf16.mxu0 0
    %911 = vmatpush1.bf16.msra.mxu0 0
    %912 = vmatprep.subr.bf16.mxu0 0
    %913 = vmatpush1.bf16.msra.mxu0 0
    %914 = vmatprep.subr.bf16.mxu0 0
    %915 = vmatpush1.bf16.msra.mxu0 0
    %916 = vmatprep.mubr.bf16.mxu0 0
    %917 = vmatmul.mubr.bf16.gmra.mrb[0].mxu0 %v879
    %v918 = vpop.f32.mrb[0].mxu0
    %v919 = vadd.f32 0.0, %v918
    %v920 = vpop.f32.mrb[0].mxu0
    %v921 = vpop.f32.mrb[0].mxu0
    %v922 = vpop.f32.mrb[0].mxu0
    %923 = vdwg.mxu0
    %925 = vrot.lane.b32.xlu0 %v564, 120
    %v926 = vpop.permute.xlu0 %925
    %v928 = vsel %vm357, %v874, 0
    %v931 = vsel %vm568, %v926, 0
    %933 = vmatprep.subr.bf16.mxu0 0
    %934 = vmatpush1.bf16.msra.mxu0 %v931
    %935 = vmatprep.subr.bf16.mxu0 0
    %936 = vmatpush1.bf16.msra.mxu0 0
    %937 = vmatprep.subr.bf16.mxu0 0
    %938 = vmatpush1.bf16.msra.mxu0 0
    %939 = vmatprep.subr.bf16.mxu0 0
    %940 = vmatpush1.bf16.msra.mxu0 0
    %941 = vmatprep.subr.bf16.mxu0 0
    %942 = vmatpush1.bf16.msra.mxu0 0
    %943 = vmatprep.subr.bf16.mxu0 0
    %944 = vmatpush1.bf16.msra.mxu0 0
    %945 = vmatprep.subr.bf16.mxu0 0
    %946 = vmatpush1.bf16.msra.mxu0 0
    %947 = vmatprep.subr.bf16.mxu0 0
    %948 = vmatpush1.bf16.msra.mxu0 0
    %949 = vmatprep.subr.bf16.mxu0 0
    %950 = vmatpush1.bf16.msra.mxu0 0
    %951 = vmatprep.subr.bf16.mxu0 0
    %952 = vmatpush1.bf16.msra.mxu0 0
    %953 = vmatprep.subr.bf16.mxu0 0
    %954 = vmatpush1.bf16.msra.mxu0 0
    %955 = vmatprep.subr.bf16.mxu0 0
    %956 = vmatpush1.bf16.msra.mxu0 0
    %957 = vmatprep.subr.bf16.mxu0 0
    %958 = vmatpush1.bf16.msra.mxu0 0
    %959 = vmatprep.subr.bf16.mxu0 0
    %960 = vmatpush1.bf16.msra.mxu0 0
    %961 = vmatprep.subr.bf16.mxu0 0
    %962 = vmatpush1.bf16.msra.mxu0 0
    %963 = vmatprep.subr.bf16.mxu0 0
    %964 = vmatpush1.bf16.msra.mxu0 0
    %965 = vmatprep.mubr.bf16.mxu0 0
    %966 = vmatmul.mubr.bf16.gmra.mrb[0].mxu0 %v928
    %v967 = vpop.f32.mrb[0].mxu0
    %v968 = vadd.f32 0.0, %v967
    %v969 = vpop.f32.mrb[0].mxu0
    %v970 = vpop.f32.mrb[0].mxu0
    %v971 = vpop.f32.mrb[0].mxu0
    %972 = vdwg.mxu0
    %973 = vrot.lane.b32.xlu0 %v353, 112
    %v974 = vpop.permute.xlu0 %973
    %975 = vrot.lane.b32.xlu0 %v355, 112
    %v976 = vpop.permute.xlu0 %975
    %v978 = vsel %vm357, %v974, 0
    %v981 = vsel %vm357, %v976, 0
    %983 = vmatprep.subr.bf16.mxu0 0
    %984 = vmatpush1.bf16.xpose.msra.mxu0 %v981
    %985 = vmatprep.subr.bf16.mxu0 0
    %986 = vmatpush1.bf16.xpose.msra.mxu0 0
    %987 = vmatprep.subr.bf16.mxu0 0
    %988 = vmatpush1.bf16.xpose.msra.mxu0 0
    %989 = vmatprep.subr.bf16.mxu0 0
    %990 = vmatpush1.bf16.xpose.msra.mxu0 0
    %991 = vmatprep.subr.bf16.mxu0 0
    %992 = vmatpush1.bf16.xpose.msra.mxu0 0
    %993 = vmatprep.subr.bf16.mxu0 0
    %994 = vmatpush1.bf16.xpose.msra.mxu0 0
    %995 = vmatprep.subr.bf16.mxu0 0
    %996 = vmatpush1.bf16.xpose.msra.mxu0 0
    %997 = vmatprep.subr.bf16.mxu0 0
    %998 = vmatpush1.bf16.xpose.msra.mxu0 0
    %999 = vmatprep.subr.bf16.mxu0 0
    %1000 = vmatpush1.bf16.xpose.msra.mxu0 0
    %1001 = vmatprep.subr.bf16.mxu0 0
    %1002 = vmatpush1.bf16.xpose.msra.mxu0 0
    %1003 = vmatprep.subr.bf16.mxu0 0
    %1004 = vmatpush1.bf16.xpose.msra.mxu0 0
    %1005 = vmatprep.subr.bf16.mxu0 0
    %1006 = vmatpush1.bf16.xpose.msra.mxu0 0
    %1007 = vmatprep.subr.bf16.mxu0 0
    %1008 = vmatpush1.bf16.xpose.msra.mxu0 0
    %1009 = vmatprep.subr.bf16.mxu0 0
    %1010 = vmatpush1.bf16.xpose.msra.mxu0 0
    %1011 = vmatprep.subr.bf16.mxu0 0
    %1012 = vmatpush1.bf16.xpose.msra.mxu0 0
    %1013 = vmatprep.subr.bf16.mxu0 0
    %1014 = vmatpush1.bf16.xpose.msra.mxu0 0
    %1015 = vmatprep.mubr.bf16.mxu0 0
    %1016 = vmatmul.mubr.bf16.gmra.mrb[0].mxu0 %v978
    %v1017 = vpop.f32.mrb[0].mxu0
    %v1018 = vadd.f32 0.0, %v1017
    %v1019 = vpop.f32.mrb[0].mxu0
    %v1020 = vpop.f32.mrb[0].mxu0
    %v1021 = vpop.f32.mrb[0].mxu0
    %1022 = vdwg.mxu0
    %1023 = vrot.lane.b32.xlu0 %v354, 112
    %v1024 = vpop.permute.xlu0 %1023
    %1025 = vrot.lane.b32.xlu0 %v356, 112
    %v1026 = vpop.permute.xlu0 %1025
    %v1028 = vsel %vm357, %v1024, 0
    %v1031 = vsel %vm357, %v1026, 0
    %1033 = vmatprep.subr.bf16.mxu0 0
    %1034 = vmatpush1.bf16.xpose.msra.mxu0 %v1031
    %1035 = vmatprep.subr.bf16.mxu0 0
    %1036 = vmatpush1.bf16.xpose.msra.mxu0 0
    %1037 = vmatprep.subr.bf16.mxu0 0
    %1038 = vmatpush1.bf16.xpose.msra.mxu0 0
    %1039 = vmatprep.subr.bf16.mxu0 0
    %1040 = vmatpush1.bf16.xpose.msra.mxu0 0
    %1041 = vmatprep.subr.bf16.mxu0 0
    %1042 = vmatpush1.bf16.xpose.msra.mxu0 0
    %1043 = vmatprep.subr.bf16.mxu0 0
    %1044 = vmatpush1.bf16.xpose.msra.mxu0 0
    %1045 = vmatprep.subr.bf16.mxu0 0
    %1046 = vmatpush1.bf16.xpose.msra.mxu0 0
    %1047 = vmatprep.subr.bf16.mxu0 0
    %1048 = vmatpush1.bf16.xpose.msra.mxu0 0
    %1049 = vmatprep.subr.bf16.mxu0 0
    %1050 = vmatpush1.bf16.xpose.msra.mxu0 0
    %1051 = vmatprep.subr.bf16.mxu0 0
    %1052 = vmatpush1.bf16.xpose.msra.mxu0 0
    %1053 = vmatprep.subr.bf16.mxu0 0
    %1054 = vmatpush1.bf16.xpose.msra.mxu0 0
    %1055 = vmatprep.subr.bf16.mxu0 0
    %1056 = vmatpush1.bf16.xpose.msra.mxu0 0
    %1057 = vmatprep.subr.bf16.mxu0 0
    %1058 = vmatpush1.bf16.xpose.msra.mxu0 0
    %1059 = vmatprep.subr.bf16.mxu0 0
    %1060 = vmatpush1.bf16.xpose.msra.mxu0 0
    %1061 = vmatprep.subr.bf16.mxu0 0
    %1062 = vmatpush1.bf16.xpose.msra.mxu0 0
    %1063 = vmatprep.subr.bf16.mxu0 0
    %1064 = vmatpush1.bf16.xpose.msra.mxu0 0
    %1065 = vmatprep.mubr.bf16.mxu0 0
    %1066 = vmatmul.mubr.bf16.gmra.mrb[0].mxu0 %v1028
    %v1067 = vpop.f32.mrb[0].mxu0
    %v1068 = vadd.f32 0.0, %v1067
    %v1069 = vpop.f32.mrb[0].mxu0
    %v1070 = vpop.f32.mrb[0].mxu0
    %v1071 = vpop.f32.mrb[0].mxu0
    %1072 = vdwg.mxu0
    %v1073 = vmul.f32 %v1018, 0.35355338
    %v1074 = vmul.f32 %v1068, 0.35355338
    %v1075 = vadd.f32 %v1073, %v148
    %v1076 = vadd.f32 %v1074, %v152
    %v1077 = vsel %vm357, %v1075, -inf
    %1078 = vmax.xlane.f32.xlu0 %v1077
    %v1079 = vpop.xlane.xlu0 %1078
    %v1080 = vsel %vm357, %v1076, -inf
    %1081 = vmax.xlane.f32.xlu0 %v1080
    %v1082 = vpop.xlane.xlu0 %1081
    %v1083 = vsub.f32 %v1075, %v1079
    %v1084 = vsub.f32 %v1076, %v1082
    %v1085 = vmul.f32 %v1083, 1.442695
    %v1086 = vpow.pop %v1085
    %v1087 = vmul.f32 %v1084, 1.442695
    %v1088 = vpow.pop %v1087
    %v1090 = vsel %vm357, %v1086, 0
    %v1093 = vsel %vm357, %v1088, 0
    %1095 = vmatprep.subr.mxu0 0.0
    %1096 = vmatpush1.msra.mxu0 1.0
    %1097 = vmatprep.subr.mxu0 0.0
    %1098 = vmatpush1.msra.mxu0 0.0
    %1099 = vmatprep.subr.mxu0 0.0
    %1100 = vmatpush1.msra.mxu0 0.0
    %1101 = vmatprep.subr.mxu0 0.0
    %1102 = vmatpush1.msra.mxu0 0.0
    %1103 = vmatprep.subr.mxu0 0.0
    %1104 = vmatpush1.msra.mxu0 0.0
    %1105 = vmatprep.subr.mxu0 0.0
    %1106 = vmatpush1.msra.mxu0 0.0
    %1107 = vmatprep.subr.mxu0 0.0
    %1108 = vmatpush1.msra.mxu0 0.0
    %1109 = vmatprep.subr.mxu0 0.0
    %1110 = vmatpush1.msra.mxu0 0.0
    %1111 = vmatprep.subr.mxu0 0.0
    %1112 = vmatpush1.msra.mxu0 0.0
    %1113 = vmatprep.subr.mxu0 0.0
    %1114 = vmatpush1.msra.mxu0 0.0
    %1115 = vmatprep.subr.mxu0 0.0
    %1116 = vmatpush1.msra.mxu0 0.0
    %1117 = vmatprep.subr.mxu0 0.0
    %1118 = vmatpush1.msra.mxu0 0.0
    %1119 = vmatprep.subr.mxu0 0.0
    %1120 = vmatpush1.msra.mxu0 0.0
    %1121 = vmatprep.subr.mxu0 0.0
    %1122 = vmatpush1.msra.mxu0 0.0
    %1123 = vmatprep.subr.mxu0 0.0
    %1124 = vmatpush1.msra.mxu0 0.0
    %1125 = vmatprep.subr.mxu0 0.0
    %1126 = vmatpush1.msra.mxu0 0.0
    %1127 = vmatprep.subr.mxu0 0.0
    %1128 = vmatpush1.msra.mxu0 0.0
    %1129 = vmatprep.subr.mxu0 0.0
    %1130 = vmatpush1.msra.mxu0 0.0
    %1131 = vmatprep.subr.mxu0 0.0
    %1132 = vmatpush1.msra.mxu0 0.0
    %1133 = vmatprep.subr.mxu0 0.0
    %1134 = vmatpush1.msra.mxu0 0.0
    %1135 = vmatprep.subr.mxu0 0.0
    %1136 = vmatpush1.msra.mxu0 0.0
    %1137 = vmatprep.subr.mxu0 0.0
    %1138 = vmatpush1.msra.mxu0 0.0
    %1139 = vmatprep.subr.mxu0 0.0
    %1140 = vmatpush1.msra.mxu0 0.0
    %1141 = vmatprep.subr.mxu0 0.0
    %1142 = vmatpush1.msra.mxu0 0.0
    %1143 = vmatprep.subr.mxu0 0.0
    %1144 = vmatpush1.msra.mxu0 0.0
    %1145 = vmatprep.subr.mxu0 0.0
    %1146 = vmatpush1.msra.mxu0 0.0
    %1147 = vmatprep.subr.mxu0 0.0
    %1148 = vmatpush1.msra.mxu0 0.0
    %1149 = vmatprep.subr.mxu0 0.0
    %1150 = vmatpush1.msra.mxu0 0.0
    %1151 = vmatprep.subr.mxu0 0.0
    %1152 = vmatpush1.msra.mxu0 0.0
    %1153 = vmatprep.subr.mxu0 0.0
    %1154 = vmatpush1.msra.mxu0 0.0
    %1155 = vmatprep.subr.mxu0 0.0
    %1156 = vmatpush1.msra.mxu0 0.0
    %1157 = vmatprep.subr.mxu0 0.0
    %1158 = vmatpush1.msra.mxu0 0.0
    %1159 = vmatprep.mubr.f32.mxu0 0.0
    %1160 = vmatmul.mubr.f32.gmra.mrb[0].mxu0 %v1090
    %v1161 = vpop.f32.mrb[0].mxu0
    %v1162 = vadd.f32 0.0, %v1161
    %v1163 = vpop.f32.mrb[0].mxu0
    %1164 = vmatprep.mubr.f32.mxu0 0.0
    %1165 = vmatmul.mubr.f32.gmra.mrb[0].mxu0 %v1093
    %v1166 = vpop.f32.mrb[0].mxu0
    %v1167 = vadd.f32 0.0, %v1166
    %v1168 = vpop.f32.mrb[0].mxu0
    %1169 = vdwg.mxu0
    %v1170 = vrcp.pop %v1162
    %v1171 = vrcp.pop %v1167
    %1173 = vset.pattern.permute.xlu0 0
    %1174 = vperm.xlu0 %1173, %v1170
    %v1175 = vpop.permute.xlu0 %1174
    %1178 = vset.pattern.permute.xlu0 0
    %1179 = vperm.xlu0 %1178, %v1171
    %v1180 = vpop.permute.xlu0 %1179
    %v1182 = vmul.f32 %v1086, %v1175
    %v1183 = vmul.f32 %v1088, %v1180
    %v1184 = vpack.c.bf16 %v1182, %v1182
    %v1185 = vpack.c.bf16 %v1183, %v1183
    %1186 = vrot.lane.b32.xlu0 %v563, 112
    %v1187 = vpop.permute.xlu0 %1186
    %v1189 = vsel %vm357, %v1184, 0
    %v1192 = vsel %vm568, %v1187, 0
    %1194 = vmatprep.subr.bf16.mxu0 0
    %1195 = vmatpush1.bf16.msra.mxu0 %v1192
    %1196 = vmatprep.subr.bf16.mxu0 0
    %1197 = vmatpush1.bf16.msra.mxu0 0
    %1198 = vmatprep.subr.bf16.mxu0 0
    %1199 = vmatpush1.bf16.msra.mxu0 0
    %1200 = vmatprep.subr.bf16.mxu0 0
    %1201 = vmatpush1.bf16.msra.mxu0 0
    %1202 = vmatprep.subr.bf16.mxu0 0
    %1203 = vmatpush1.bf16.msra.mxu0 0
    %1204 = vmatprep.subr.bf16.mxu0 0
    %1205 = vmatpush1.bf16.msra.mxu0 0
    %1206 = vmatprep.subr.bf16.mxu0 0
    %1207 = vmatpush1.bf16.msra.mxu0 0
    %1208 = vmatprep.subr.bf16.mxu0 0
    %1209 = vmatpush1.bf16.msra.mxu0 0
    %1210 = vmatprep.subr.bf16.mxu0 0
    %1211 = vmatpush1.bf16.msra.mxu0 0
    %1212 = vmatprep.subr.bf16.mxu0 0
    %1213 = vmatpush1.bf16.msra.mxu0 0
    %1214 = vmatprep.subr.bf16.mxu0 0
    %1215 = vmatpush1.bf16.msra.mxu0 0
    %1216 = vmatprep.subr.bf16.mxu0 0
    %1217 = vmatpush1.bf16.msra.mxu0 0
    %1218 = vmatprep.subr.bf16.mxu0 0
    %1219 = vmatpush1.bf16.msra.mxu0 0
    %1220 = vmatprep.subr.bf16.mxu0 0
    %1221 = vmatpush1.bf16.msra.mxu0 0
    %1222 = vmatprep.subr.bf16.mxu0 0
    %1223 = vmatpush1.bf16.msra.mxu0 0
    %1224 = vmatprep.subr.bf16.mxu0 0
    %1225 = vmatpush1.bf16.msra.mxu0 0
    %1226 = vmatprep.mubr.bf16.mxu0 0
    %1227 = vmatmul.mubr.bf16.gmra.mrb[0].mxu0 %v1189
    %v1228 = vpop.f32.mrb[0].mxu0
    %v1229 = vadd.f32 0.0, %v1228
    %v1230 = vpop.f32.mrb[0].mxu0
    %v1231 = vpop.f32.mrb[0].mxu0
    %v1232 = vpop.f32.mrb[0].mxu0
    %1233 = vdwg.mxu0
    %1234 = vrot.lane.b32.xlu0 %v564, 112
    %v1235 = vpop.permute.xlu0 %1234
    %v1237 = vsel %vm357, %v1185, 0
    %v1240 = vsel %vm568, %v1235, 0
    %1242 = vmatprep.subr.bf16.mxu0 0
    %1243 = vmatpush1.bf16.msra.mxu0 %v1240
    %1244 = vmatprep.subr.bf16.mxu0 0
    %1245 = vmatpush1.bf16.msra.mxu0 0
    %1246 = vmatprep.subr.bf16.mxu0 0
    %1247 = vmatpush1.bf16.msra.mxu0 0
    %1248 = vmatprep.subr.bf16.mxu0 0
    %1249 = vmatpush1.bf16.msra.mxu0 0
    %1250 = vmatprep.subr.bf16.mxu0 0
    %1251 = vmatpush1.bf16.msra.mxu0 0
    %1252 = vmatprep.subr.bf16.mxu0 0
    %1253 = vmatpush1.bf16.msra.mxu0 0
    %1254 = vmatprep.subr.bf16.mxu0 0
    %1255 = vmatpush1.bf16.msra.mxu0 0
    %1256 = vmatprep.subr.bf16.mxu0 0
    %1257 = vmatpush1.bf16.msra.mxu0 0
    %1258 = vmatprep.subr.bf16.mxu0 0
    %1259 = vmatpush1.bf16.msra.mxu0 0
    %1260 = vmatprep.subr.bf16.mxu0 0
    %1261 = vmatpush1.bf16.msra.mxu0 0
    %1262 = vmatprep.subr.bf16.mxu0 0
    %1263 = vmatpush1.bf16.msra.mxu0 0
    %1264 = vmatprep.subr.bf16.mxu0 0
    %1265 = vmatpush1.bf16.msra.mxu0 0
    %1266 = vmatprep.subr.bf16.mxu0 0
    %1267 = vmatpush1.bf16.msra.mxu0 0
    %1268 = vmatprep.subr.bf16.mxu0 0
    %1269 = vmatpush1.bf16.msra.mxu0 0
    %1270 = vmatprep.subr.bf16.mxu0 0
    %1271 = vmatpush1.bf16.msra.mxu0 0
    %1272 = vmatprep.subr.bf16.mxu0 0
    %1273 = vmatpush1.bf16.msra.mxu0 0
    %1274 = vmatprep.mubr.bf16.mxu0 0
    %1275 = vmatmul.mubr.bf16.gmra.mrb[0].mxu0 %v1237
    %v1276 = vpop.f32.mrb[0].mxu0
    %v1277 = vadd.f32 0.0, %v1276
    %v1278 = vpop.f32.mrb[0].mxu0
    %v1279 = vpop.f32.mrb[0].mxu0
    %v1280 = vpop.f32.mrb[0].mxu0
    %1281 = vdwg.mxu0
    %1282 = vrot.lane.b32.xlu0 %v353, 104
    %v1283 = vpop.permute.xlu0 %1282
    %1284 = vrot.lane.b32.xlu0 %v355, 104
    %v1285 = vpop.permute.xlu0 %1284
    %v1287 = vsel %vm357, %v1283, 0
    %v1290 = vsel %vm357, %v1285, 0
    %1292 = vmatprep.subr.bf16.mxu0 0
    %1293 = vmatpush1.bf16.xpose.msra.mxu0 %v1290
    %1294 = vmatprep.subr.bf16.mxu0 0
    %1295 = vmatpush1.bf16.xpose.msra.mxu0 0
    %1296 = vmatprep.subr.bf16.mxu0 0
    %1297 = vmatpush1.bf16.xpose.msra.mxu0 0
    %1298 = vmatprep.subr.bf16.mxu0 0
    %1299 = vmatpush1.bf16.xpose.msra.mxu0 0
    %1300 = vmatprep.subr.bf16.mxu0 0
    %1301 = vmatpush1.bf16.xpose.msra.mxu0 0
    %1302 = vmatprep.subr.bf16.mxu0 0
    %1303 = vmatpush1.bf16.xpose.msra.mxu0 0
    %1304 = vmatprep.subr.bf16.mxu0 0
    %1305 = vmatpush1.bf16.xpose.msra.mxu0 0
    %1306 = vmatprep.subr.bf16.mxu0 0
    %1307 = vmatpush1.bf16.xpose.msra.mxu0 0
    %1308 = vmatprep.subr.bf16.mxu0 0
    %1309 = vmatpush1.bf16.xpose.msra.mxu0 0
    %1310 = vmatprep.subr.bf16.mxu0 0
    %1311 = vmatpush1.bf16.xpose.msra.mxu0 0
    %1312 = vmatprep.subr.bf16.mxu0 0
    %1313 = vmatpush1.bf16.xpose.msra.mxu0 0
    %1314 = vmatprep.subr.bf16.mxu0 0
    %1315 = vmatpush1.bf16.xpose.msra.mxu0 0
    %1316 = vmatprep.subr.bf16.mxu0 0
    %1317 = vmatpush1.bf16.xpose.msra.mxu0 0
    %1318 = vmatprep.subr.bf16.mxu0 0
    %1319 = vmatpush1.bf16.xpose.msra.mxu0 0
    %1320 = vmatprep.subr.bf16.mxu0 0
    %1321 = vmatpush1.bf16.xpose.msra.mxu0 0
    %1322 = vmatprep.subr.bf16.mxu0 0
    %1323 = vmatpush1.bf16.xpose.msra.mxu0 0
    %1324 = vmatprep.mubr.bf16.mxu0 0
    %1325 = vmatmul.mubr.bf16.gmra.mrb[0].mxu0 %v1287
    %v1326 = vpop.f32.mrb[0].mxu0
    %v1327 = vadd.f32 0.0, %v1326
    %v1328 = vpop.f32.mrb[0].mxu0
    %v1329 = vpop.f32.mrb[0].mxu0
    %v1330 = vpop.f32.mrb[0].mxu0
    %1331 = vdwg.mxu0
    %1332 = vrot.lane.b32.xlu0 %v354, 104
    %v1333 = vpop.permute.xlu0 %1332
    %1334 = vrot.lane.b32.xlu0 %v356, 104
    %v1335 = vpop.permute.xlu0 %1334
    %v1337 = vsel %vm357, %v1333, 0
    %v1340 = vsel %vm357, %v1335, 0
    %1342 = vmatprep.subr.bf16.mxu0 0
    %1343 = vmatpush1.bf16.xpose.msra.mxu0 %v1340
    %1344 = vmatprep.subr.bf16.mxu0 0
    %1345 = vmatpush1.bf16.xpose.msra.mxu0 0
    %1346 = vmatprep.subr.bf16.mxu0 0
    %1347 = vmatpush1.bf16.xpose.msra.mxu0 0
    %1348 = vmatprep.subr.bf16.mxu0 0
    %1349 = vmatpush1.bf16.xpose.msra.mxu0 0
    %1350 = vmatprep.subr.bf16.mxu0 0
    %1351 = vmatpush1.bf16.xpose.msra.mxu0 0
    %1352 = vmatprep.subr.bf16.mxu0 0
    %1353 = vmatpush1.bf16.xpose.msra.mxu0 0
    %1354 = vmatprep.subr.bf16.mxu0 0
    %1355 = vmatpush1.bf16.xpose.msra.mxu0 0
    %1356 = vmatprep.subr.bf16.mxu0 0
    %1357 = vmatpush1.bf16.xpose.msra.mxu0 0
    %1358 = vmatprep.subr.bf16.mxu0 0
    %1359 = vmatpush1.bf16.xpose.msra.mxu0 0
    %1360 = vmatprep.subr.bf16.mxu0 0
    %1361 = vmatpush1.bf16.xpose.msra.mxu0 0
    %1362 = vmatprep.subr.bf16.mxu0 0
    %1363 = vmatpush1.bf16.xpose.msra.mxu0 0
    %1364 = vmatprep.subr.bf16.mxu0 0
    %1365 = vmatpush1.bf16.xpose.msra.mxu0 0
    %1366 = vmatprep.subr.bf16.mxu0 0
    %1367 = vmatpush1.bf16.xpose.msra.mxu0 0
    %1368 = vmatprep.subr.bf16.mxu0 0
    %1369 = vmatpush1.bf16.xpose.msra.mxu0 0
    %1370 = vmatprep.subr.bf16.mxu0 0
    %1371 = vmatpush1.bf16.xpose.msra.mxu0 0
    %1372 = vmatprep.subr.bf16.mxu0 0
    %1373 = vmatpush1.bf16.xpose.msra.mxu0 0
    %1374 = vmatprep.mubr.bf16.mxu0 0
    %1375 = vmatmul.mubr.bf16.gmra.mrb[0].mxu0 %v1337
    %v1376 = vpop.f32.mrb[0].mxu0
    %v1377 = vadd.f32 0.0, %v1376
    %v1378 = vpop.f32.mrb[0].mxu0
    %v1379 = vpop.f32.mrb[0].mxu0
    %v1380 = vpop.f32.mrb[0].mxu0
    %1381 = vdwg.mxu0
    %v1382 = vmul.f32 %v1327, 0.35355338
    %v1383 = vmul.f32 %v1377, 0.35355338
    %v1384 = vadd.f32 %v1382, %v148
    %v1385 = vadd.f32 %v1383, %v152
    %v1386 = vsel %vm357, %v1384, -inf
    %1387 = vmax.xlane.f32.xlu0 %v1386
    %v1388 = vpop.xlane.xlu0 %1387
    %v1389 = vsel %vm357, %v1385, -inf
    %1390 = vmax.xlane.f32.xlu0 %v1389
    %v1391 = vpop.xlane.xlu0 %1390
    %v1392 = vsub.f32 %v1384, %v1388
    %v1393 = vsub.f32 %v1385, %v1391
    %v1394 = vmul.f32 %v1392, 1.442695
    %v1395 = vpow.pop %v1394
    %v1396 = vmul.f32 %v1393, 1.442695
    %v1397 = vpow.pop %v1396
    %v1399 = vsel %vm357, %v1395, 0
    %v1402 = vsel %vm357, %v1397, 0
    %1404 = vmatprep.subr.mxu0 0.0
    %1405 = vmatpush1.msra.mxu0 1.0
    %1406 = vmatprep.subr.mxu0 0.0
    %1407 = vmatpush1.msra.mxu0 0.0
    %1408 = vmatprep.subr.mxu0 0.0
    %1409 = vmatpush1.msra.mxu0 0.0
    %1410 = vmatprep.subr.mxu0 0.0
    %1411 = vmatpush1.msra.mxu0 0.0
    %1412 = vmatprep.subr.mxu0 0.0
    %1413 = vmatpush1.msra.mxu0 0.0
    %1414 = vmatprep.subr.mxu0 0.0
    %1415 = vmatpush1.msra.mxu0 0.0
    %1416 = vmatprep.subr.mxu0 0.0
    %1417 = vmatpush1.msra.mxu0 0.0
    %1418 = vmatprep.subr.mxu0 0.0
    %1419 = vmatpush1.msra.mxu0 0.0
    %1420 = vmatprep.subr.mxu0 0.0
    %1421 = vmatpush1.msra.mxu0 0.0
    %1422 = vmatprep.subr.mxu0 0.0
    %1423 = vmatpush1.msra.mxu0 0.0
    %1424 = vmatprep.subr.mxu0 0.0
    %1425 = vmatpush1.msra.mxu0 0.0
    %1426 = vmatprep.subr.mxu0 0.0
    %1427 = vmatpush1.msra.mxu0 0.0
    %1428 = vmatprep.subr.mxu0 0.0
    %1429 = vmatpush1.msra.mxu0 0.0
    %1430 = vmatprep.subr.mxu0 0.0
    %1431 = vmatpush1.msra.mxu0 0.0
    %1432 = vmatprep.subr.mxu0 0.0
    %1433 = vmatpush1.msra.mxu0 0.0
    %1434 = vmatprep.subr.mxu0 0.0
    %1435 = vmatpush1.msra.mxu0 0.0
    %1436 = vmatprep.subr.mxu0 0.0
    %1437 = vmatpush1.msra.mxu0 0.0
    %1438 = vmatprep.subr.mxu0 0.0
    %1439 = vmatpush1.msra.mxu0 0.0
    %1440 = vmatprep.subr.mxu0 0.0
    %1441 = vmatpush1.msra.mxu0 0.0
    %1442 = vmatprep.subr.mxu0 0.0
    %1443 = vmatpush1.msra.mxu0 0.0
    %1444 = vmatprep.subr.mxu0 0.0
    %1445 = vmatpush1.msra.mxu0 0.0
    %1446 = vmatprep.subr.mxu0 0.0
    %1447 = vmatpush1.msra.mxu0 0.0
    %1448 = vmatprep.subr.mxu0 0.0
    %1449 = vmatpush1.msra.mxu0 0.0
    %1450 = vmatprep.subr.mxu0 0.0
    %1451 = vmatpush1.msra.mxu0 0.0
    %1452 = vmatprep.subr.mxu0 0.0
    %1453 = vmatpush1.msra.mxu0 0.0
    %1454 = vmatprep.subr.mxu0 0.0
    %1455 = vmatpush1.msra.mxu0 0.0
    %1456 = vmatprep.subr.mxu0 0.0
    %1457 = vmatpush1.msra.mxu0 0.0
    %1458 = vmatprep.subr.mxu0 0.0
    %1459 = vmatpush1.msra.mxu0 0.0
    %1460 = vmatprep.subr.mxu0 0.0
    %1461 = vmatpush1.msra.mxu0 0.0
    %1462 = vmatprep.subr.mxu0 0.0
    %1463 = vmatpush1.msra.mxu0 0.0
    %1464 = vmatprep.subr.mxu0 0.0
    %1465 = vmatpush1.msra.mxu0 0.0
    %1466 = vmatprep.subr.mxu0 0.0
    %1467 = vmatpush1.msra.mxu0 0.0
    %1468 = vmatprep.mubr.f32.mxu0 0.0
    %1469 = vmatmul.mubr.f32.gmra.mrb[0].mxu0 %v1399
    %v1470 = vpop.f32.mrb[0].mxu0
    %v1471 = vadd.f32 0.0, %v1470
    %v1472 = vpop.f32.mrb[0].mxu0
    %1473 = vmatprep.mubr.f32.mxu0 0.0
    %1474 = vmatmul.mubr.f32.gmra.mrb[0].mxu0 %v1402
    %v1475 = vpop.f32.mrb[0].mxu0
    %v1476 = vadd.f32 0.0, %v1475
    %v1477 = vpop.f32.mrb[0].mxu0
    %1478 = vdwg.mxu0
    %v1479 = vrcp.pop %v1471
    %v1480 = vrcp.pop %v1476
    %1482 = vset.pattern.permute.xlu0 0
    %1483 = vperm.xlu0 %1482, %v1479
    %v1484 = vpop.permute.xlu0 %1483
    %1487 = vset.pattern.permute.xlu0 0
    %1488 = vperm.xlu0 %1487, %v1480
    %v1489 = vpop.permute.xlu0 %1488
    %v1491 = vmul.f32 %v1395, %v1484
    %v1492 = vmul.f32 %v1397, %v1489
    %v1493 = vpack.c.bf16 %v1491, %v1491
    %v1494 = vpack.c.bf16 %v1492, %v1492
    %1495 = vrot.lane.b32.xlu0 %v563, 104
    %v1496 = vpop.permute.xlu0 %1495
    %v1498 = vsel %vm357, %v1493, 0
    %v1501 = vsel %vm568, %v1496, 0
    %1503 = vmatprep.subr.bf16.mxu0 0
    %1504 = vmatpush1.bf16.msra.mxu0 %v1501
    %1505 = vmatprep.subr.bf16.mxu0 0
    %1506 = vmatpush1.bf16.msra.mxu0 0
    %1507 = vmatprep.subr.bf16.mxu0 0
    %1508 = vmatpush1.bf16.msra.mxu0 0
    %1509 = vmatprep.subr.bf16.mxu0 0
    %1510 = vmatpush1.bf16.msra.mxu0 0
    %1511 = vmatprep.subr.bf16.mxu0 0
    %1512 = vmatpush1.bf16.msra.mxu0 0
    %1513 = vmatprep.subr.bf16.mxu0 0
    %1514 = vmatpush1.bf16.msra.mxu0 0
    %1515 = vmatprep.subr.bf16.mxu0 0
    %1516 = vmatpush1.bf16.msra.mxu0 0
    %1517 = vmatprep.subr.bf16.mxu0 0
    %1518 = vmatpush1.bf16.msra.mxu0 0
    %1519 = vmatprep.subr.bf16.mxu0 0
    %1520 = vmatpush1.bf16.msra.mxu0 0
    %1521 = vmatprep.subr.bf16.mxu0 0
    %1522 = vmatpush1.bf16.msra.mxu0 0
    %1523 = vmatprep.subr.bf16.mxu0 0
    %1524 = vmatpush1.bf16.msra.mxu0 0
    %1525 = vmatprep.subr.bf16.mxu0 0
    %1526 = vmatpush1.bf16.msra.mxu0 0
    %1527 = vmatprep.subr.bf16.mxu0 0
    %1528 = vmatpush1.bf16.msra.mxu0 0
    %1529 = vmatprep.subr.bf16.mxu0 0
    %1530 = vmatpush1.bf16.msra.mxu0 0
    %1531 = vmatprep.subr.bf16.mxu0 0
    %1532 = vmatpush1.bf16.msra.mxu0 0
    %1533 = vmatprep.subr.bf16.mxu0 0
    %1534 = vmatpush1.bf16.msra.mxu0 0
    %1535 = vmatprep.mubr.bf16.mxu0 0
    %1536 = vmatmul.mubr.bf16.gmra.mrb[0].mxu0 %v1498
    %v1537 = vpop.f32.mrb[0].mxu0
    %v1538 = vadd.f32 0.0, %v1537
    %v1539 = vpop.f32.mrb[0].mxu0
    %v1540 = vpop.f32.mrb[0].mxu0
    %v1541 = vpop.f32.mrb[0].mxu0
    %1542 = vdwg.mxu0
    %1543 = vrot.lane.b32.xlu0 %v564, 104
    %v1544 = vpop.permute.xlu0 %1543
    %v1546 = vsel %vm357, %v1494, 0
    %v1549 = vsel %vm568, %v1544, 0
    %1551 = vmatprep.subr.bf16.mxu0 0
    %1552 = vmatpush1.bf16.msra.mxu0 %v1549
    %1553 = vmatprep.subr.bf16.mxu0 0
    %1554 = vmatpush1.bf16.msra.mxu0 0
    %1555 = vmatprep.subr.bf16.mxu0 0
    %1556 = vmatpush1.bf16.msra.mxu0 0
    %1557 = vmatprep.subr.bf16.mxu0 0
    %1558 = vmatpush1.bf16.msra.mxu0 0
    %1559 = vmatprep.subr.bf16.mxu0 0
    %1560 = vmatpush1.bf16.msra.mxu0 0
    %1561 = vmatprep.subr.bf16.mxu0 0
    %1562 = vmatpush1.bf16.msra.mxu0 0
    %1563 = vmatprep.subr.bf16.mxu0 0
    %1564 = vmatpush1.bf16.msra.mxu0 0
    %1565 = vmatprep.subr.bf16.mxu0 0
    %1566 = vmatpush1.bf16.msra.mxu0 0
    %1567 = vmatprep.subr.bf16.mxu0 0
    %1568 = vmatpush1.bf16.msra.mxu0 0
    %1569 = vmatprep.subr.bf16.mxu0 0
    %1570 = vmatpush1.bf16.msra.mxu0 0
    %1571 = vmatprep.subr.bf16.mxu0 0
    %1572 = vmatpush1.bf16.msra.mxu0 0
    %1573 = vmatprep.subr.bf16.mxu0 0
    %1574 = vmatpush1.bf16.msra.mxu0 0
    %1575 = vmatprep.subr.bf16.mxu0 0
    %1576 = vmatpush1.bf16.msra.mxu0 0
    %1577 = vmatprep.subr.bf16.mxu0 0
    %1578 = vmatpush1.bf16.msra.mxu0 0
    %1579 = vmatprep.subr.bf16.mxu0 0
    %1580 = vmatpush1.bf16.msra.mxu0 0
    %1581 = vmatprep.subr.bf16.mxu0 0
    %1582 = vmatpush1.bf16.msra.mxu0 0
    %1583 = vmatprep.mubr.bf16.mxu0 0
    %1584 = vmatmul.mubr.bf16.gmra.mrb[0].mxu0 %v1546
    %v1585 = vpop.f32.mrb[0].mxu0
    %v1586 = vadd.f32 0.0, %v1585
    %v1587 = vpop.f32.mrb[0].mxu0
    %v1588 = vpop.f32.mrb[0].mxu0
    %v1589 = vpop.f32.mrb[0].mxu0
    %1590 = vdwg.mxu0
    %1593 = vrot.lane.b32.xlu0 %v919, 8
    %v1594 = vpop.permute.xlu0 %1593
    %1595 = vrot.lane.b32.xlu0 %v968, 8
    %v1596 = vpop.permute.xlu0 %1595
    %1601 = vrot.lane.b32.xlu0 %v1229, 16
    %v1602 = vpop.permute.xlu0 %1601
    %1603 = vrot.lane.b32.xlu0 %v1277, 16
    %v1604 = vpop.permute.xlu0 %1603
    %1609 = vrot.lane.b32.xlu0 %v1538, 24
    %v1610 = vpop.permute.xlu0 %1609
    %1611 = vrot.lane.b32.xlu0 %v1586, 24
    %v1612 = vpop.permute.xlu0 %1611
    %v1615 = vsel %vm357, %v607, %v1594
    %v1616 = vsel %vm357, %v653, %v1596
    %vm1617 = vcmask 130048
    %v1618 = vsel %vm1617, %v1615, %v1602
    %v1619 = vsel %vm1617, %v1616, %v1604
    %vm1620 = vcmask 195584
    %v1621 = vsel %vm1620, %v1618, %v1610
    %v1622 = vsel %vm1620, %v1619, %v1612
    %v1623 = vpack.c.bf16 %v1622, %v1621
    %v1624 = vpack.c.bf16 %v171, %v170
    %v1625 = vpack.c.bf16 %v173, %v172
    %v1627 = vlaneseq
    %v1628 = vshrl.u32 %v1627, 7
    %v1629 = vsub.s32 0, %v1628
    %v1630 = vrot.slane %v174, %v1629
    %v1633 = vsel %vm210, %v1623, 0
    %1635 = vmatprep.subr.bf16.mxu0 0
    %1636 = vmatpush1.bf16.msra.mxu0 %v1624
    %1637 = vmatprep.subr.bf16.mxu0 0
    %1638 = vmatpush1.bf16.msra.mxu0 %v1625
    %1639 = vmatprep.subr.bf16.mxu0 0
    %1640 = vmatpush1.bf16.msra.mxu0 0
    %1641 = vmatprep.subr.bf16.mxu0 0
    %1642 = vmatpush1.bf16.msra.mxu0 0
    %1643 = vmatprep.subr.bf16.mxu0 0
    %1644 = vmatpush1.bf16.msra.mxu0 0
    %1645 = vmatprep.subr.bf16.mxu0 0
    %1646 = vmatpush1.bf16.msra.mxu0 0
    %1647 = vmatprep.subr.bf16.mxu0 0
    %1648 = vmatpush1.bf16.msra.mxu0 0
    %1649 = vmatprep.subr.bf16.mxu0 0
    %1650 = vmatpush1.bf16.msra.mxu0 0
    %1651 = vmatprep.subr.bf16.mxu0 0
    %1652 = vmatpush1.bf16.msra.mxu0 0
    %1653 = vmatprep.subr.bf16.mxu0 0
    %1654 = vmatpush1.bf16.msra.mxu0 0
    %1655 = vmatprep.subr.bf16.mxu0 0
    %1656 = vmatpush1.bf16.msra.mxu0 0
    %1657 = vmatprep.subr.bf16.mxu0 0
    %1658 = vmatpush1.bf16.msra.mxu0 0
    %1659 = vmatprep.subr.bf16.mxu0 0
    %1660 = vmatpush1.bf16.msra.mxu0 0
    %1661 = vmatprep.subr.bf16.mxu0 0
    %1662 = vmatpush1.bf16.msra.mxu0 0
    %1663 = vmatprep.subr.bf16.mxu0 0
    %1664 = vmatpush1.bf16.msra.mxu0 0
    %1665 = vmatprep.subr.bf16.mxu0 0
    %1666 = vmatpush1.bf16.msra.mxu0 0
    %1667 = vmatprep.mubr.bf16.mxu0 0
    %1668 = vmatmul.mubr.bf16.gmra.mrb[0].mxu0 %v1633
    %v1669 = vpop.f32.mrb[0].mxu0
    %v1670 = vadd.f32 %v1630, %v1669
    %v1671 = vpop.f32.mrb[0].mxu0
    %v1672 = vpop.f32.mrb[0].mxu0
    %v1673 = vadd.f32 %v1630, %v1672
    %v1674 = vpop.f32.mrb[0].mxu0
    %1675 = vdwg.mxu0
    %v1676 = vadd.f32 %v135, %v1670
    %v1677 = vadd.f32 %v136, %v1673
    %v1679 = vsel %vm210, %v1676, 0
    %v1682 = vsel %vm210, %v1677, 0
    %1684 = vmatprep.subr.mxu0 0.0
    %1685 = vmatpush1.msra.mxu0 1.0
    %1686 = vmatprep.subr.mxu0 0.0
    %1687 = vmatpush1.msra.mxu0 1.0
    %1688 = vmatprep.subr.mxu0 0.0
    %1689 = vmatpush1.msra.mxu0 1.0
    %1690 = vmatprep.subr.mxu0 0.0
    %1691 = vmatpush1.msra.mxu0 1.0
    %1692 = vmatprep.subr.mxu0 0.0
    %1693 = vmatpush1.msra.mxu0 0.0
    %1694 = vmatprep.subr.mxu0 0.0
    %1695 = vmatpush1.msra.mxu0 0.0
    %1696 = vmatprep.subr.mxu0 0.0
    %1697 = vmatpush1.msra.mxu0 0.0
    %1698 = vmatprep.subr.mxu0 0.0
    %1699 = vmatpush1.msra.mxu0 0.0
    %1700 = vmatprep.subr.mxu0 0.0
    %1701 = vmatpush1.msra.mxu0 0.0
    %1702 = vmatprep.subr.mxu0 0.0
    %1703 = vmatpush1.msra.mxu0 0.0
    %1704 = vmatprep.subr.mxu0 0.0
    %1705 = vmatpush1.msra.mxu0 0.0
    %1706 = vmatprep.subr.mxu0 0.0
    %1707 = vmatpush1.msra.mxu0 0.0
    %1708 = vmatprep.subr.mxu0 0.0
    %1709 = vmatpush1.msra.mxu0 0.0
    %1710 = vmatprep.subr.mxu0 0.0
    %1711 = vmatpush1.msra.mxu0 0.0
    %1712 = vmatprep.subr.mxu0 0.0
    %1713 = vmatpush1.msra.mxu0 0.0
    %1714 = vmatprep.subr.mxu0 0.0
    %1715 = vmatpush1.msra.mxu0 0.0
    %1716 = vmatprep.subr.mxu0 0.0
    %1717 = vmatpush1.msra.mxu0 0.0
    %1718 = vmatprep.subr.mxu0 0.0
    %1719 = vmatpush1.msra.mxu0 0.0
    %1720 = vmatprep.subr.mxu0 0.0
    %1721 = vmatpush1.msra.mxu0 0.0
    %1722 = vmatprep.subr.mxu0 0.0
    %1723 = vmatpush1.msra.mxu0 0.0
    %1724 = vmatprep.subr.mxu0 0.0
    %1725 = vmatpush1.msra.mxu0 0.0
    %1726 = vmatprep.subr.mxu0 0.0
    %1727 = vmatpush1.msra.mxu0 0.0
    %1728 = vmatprep.subr.mxu0 0.0
    %1729 = vmatpush1.msra.mxu0 0.0
    %1730 = vmatprep.subr.mxu0 0.0
    %1731 = vmatpush1.msra.mxu0 0.0
    %1732 = vmatprep.subr.mxu0 0.0
    %1733 = vmatpush1.msra.mxu0 0.0
    %1734 = vmatprep.subr.mxu0 0.0
    %1735 = vmatpush1.msra.mxu0 0.0
    %1736 = vmatprep.subr.mxu0 0.0
    %1737 = vmatpush1.msra.mxu0 0.0
    %1738 = vmatprep.subr.mxu0 0.0
    %1739 = vmatpush1.msra.mxu0 0.0
    %1740 = vmatprep.subr.mxu0 0.0
    %1741 = vmatpush1.msra.mxu0 0.0
    %1742 = vmatprep.subr.mxu0 0.0
    %1743 = vmatpush1.msra.mxu0 0.0
    %1744 = vmatprep.subr.mxu0 0.0
    %1745 = vmatpush1.msra.mxu0 0.0
    %1746 = vmatprep.subr.mxu0 0.0
    %1747 = vmatpush1.msra.mxu0 0.0
    %1748 = vmatprep.mubr.f32.mxu0 0.0
    %1749 = vmatmul.mubr.f32.gmra.mrb[0].mxu0 %v1679
    %v1750 = vpop.f32.mrb[0].mxu0
    %v1751 = vadd.f32 0.0, %v1750
    %v1752 = vpop.f32.mrb[0].mxu0
    %1753 = vmatprep.mubr.f32.mxu0 0.0
    %1754 = vmatmul.mubr.f32.gmra.mrb[0].mxu0 %v1682
    %v1755 = vpop.f32.mrb[0].mxu0
    %v1756 = vadd.f32 0.0, %v1755
    %v1757 = vpop.f32.mrb[0].mxu0
    %1758 = vdwg.mxu0
    %v1759 = vmul.f32 %v1676, %v1676
    %v1760 = vmul.f32 %v1677, %v1677
    %v1762 = vsel %vm210, %v1759, 0
    %v1765 = vsel %vm210, %v1760, 0
    %1767 = vmatprep.subr.mxu0 0.0
    %1768 = vmatpush1.msra.mxu0 1.0
    %1769 = vmatprep.subr.mxu0 0.0
    %1770 = vmatpush1.msra.mxu0 1.0
    %1771 = vmatprep.subr.mxu0 0.0
    %1772 = vmatpush1.msra.mxu0 1.0
    %1773 = vmatprep.subr.mxu0 0.0
    %1774 = vmatpush1.msra.mxu0 1.0
    %1775 = vmatprep.subr.mxu0 0.0
    %1776 = vmatpush1.msra.mxu0 0.0
    %1777 = vmatprep.subr.mxu0 0.0
    %1778 = vmatpush1.msra.mxu0 0.0
    %1779 = vmatprep.subr.mxu0 0.0
    %1780 = vmatpush1.msra.mxu0 0.0
    %1781 = vmatprep.subr.mxu0 0.0
    %1782 = vmatpush1.msra.mxu0 0.0
    %1783 = vmatprep.subr.mxu0 0.0
    %1784 = vmatpush1.msra.mxu0 0.0
    %1785 = vmatprep.subr.mxu0 0.0
    %1786 = vmatpush1.msra.mxu0 0.0
    %1787 = vmatprep.subr.mxu0 0.0
    %1788 = vmatpush1.msra.mxu0 0.0
    %1789 = vmatprep.subr.mxu0 0.0
    %1790 = vmatpush1.msra.mxu0 0.0
    %1791 = vmatprep.subr.mxu0 0.0
    %1792 = vmatpush1.msra.mxu0 0.0
    %1793 = vmatprep.subr.mxu0 0.0
    %1794 = vmatpush1.msra.mxu0 0.0
    %1795 = vmatprep.subr.mxu0 0.0
    %1796 = vmatpush1.msra.mxu0 0.0
    %1797 = vmatprep.subr.mxu0 0.0
    %1798 = vmatpush1.msra.mxu0 0.0
    %1799 = vmatprep.subr.mxu0 0.0
    %1800 = vmatpush1.msra.mxu0 0.0
    %1801 = vmatprep.subr.mxu0 0.0
    %1802 = vmatpush1.msra.mxu0 0.0
    %1803 = vmatprep.subr.mxu0 0.0
    %1804 = vmatpush1.msra.mxu0 0.0
    %1805 = vmatprep.subr.mxu0 0.0
    %1806 = vmatpush1.msra.mxu0 0.0
    %1807 = vmatprep.subr.mxu0 0.0
    %1808 = vmatpush1.msra.mxu0 0.0
    %1809 = vmatprep.subr.mxu0 0.0
    %1810 = vmatpush1.msra.mxu0 0.0
    %1811 = vmatprep.subr.mxu0 0.0
    %1812 = vmatpush1.msra.mxu0 0.0
    %1813 = vmatprep.subr.mxu0 0.0
    %1814 = vmatpush1.msra.mxu0 0.0
    %1815 = vmatprep.subr.mxu0 0.0
    %1816 = vmatpush1.msra.mxu0 0.0
    %1817 = vmatprep.subr.mxu0 0.0
    %1818 = vmatpush1.msra.mxu0 0.0
    %1819 = vmatprep.subr.mxu0 0.0
    %1820 = vmatpush1.msra.mxu0 0.0
    %1821 = vmatprep.subr.mxu0 0.0
    %1822 = vmatpush1.msra.mxu0 0.0
    %1823 = vmatprep.subr.mxu0 0.0
    %1824 = vmatpush1.msra.mxu0 0.0
    %1825 = vmatprep.subr.mxu0 0.0
    %1826 = vmatpush1.msra.mxu0 0.0
    %1827 = vmatprep.subr.mxu0 0.0
    %1828 = vmatpush1.msra.mxu0 0.0
    %1829 = vmatprep.subr.mxu0 0.0
    %1830 = vmatpush1.msra.mxu0 0.0
    %1831 = vmatprep.mubr.f32.mxu0 0.0
    %1832 = vmatmul.mubr.f32.gmra.mrb[0].mxu0 %v1762
    %v1833 = vpop.f32.mrb[0].mxu0
    %v1834 = vadd.f32 0.0, %v1833
    %v1835 = vpop.f32.mrb[0].mxu0
    %1836 = vmatprep.mubr.f32.mxu0 0.0
    %1837 = vmatmul.mubr.f32.gmra.mrb[0].mxu0 %v1765
    %v1838 = vpop.f32.mrb[0].mxu0
    %v1839 = vadd.f32 0.0, %v1838
    %v1840 = vpop.f32.mrb[0].mxu0
    %1841 = vdwg.mxu0
    %v1842 = vmul.f32 %v1751, 0.03125
    %v1843 = vmul.f32 %v1756, 0.03125
    %v1844 = vmul.f32 %v1834, 0.03125
    %v1845 = vmul.f32 %v1839, 0.03125
    %v1846 = vmul.f32 %v1842, %v1842
    %v1847 = vmul.f32 %v1843, %v1843
    %v1848 = vsub.f32 %v1844, %v1846
    %v1849 = vsub.f32 %v1845, %v1847
    %v1850 = vmax.f32 %v1848, 0.0
    %v1851 = vmax.f32 %v1849, 0.0
    %1853 = vset.pattern.permute.xlu0 0
    %1854 = vperm.xlu0 %1853, %v1842
    %v1855 = vpop.permute.xlu0 %1854
    %1858 = vset.pattern.permute.xlu0 0
    %1859 = vperm.xlu0 %1858, %v1843
    %v1860 = vpop.permute.xlu0 %1859
    %v1862 = vsub.f32 %v1676, %v1855
    %v1863 = vsub.f32 %v1677, %v1860
    %v1864 = vadd.f32 %v1850, 1e-05
    %v1865 = vadd.f32 %v1851, 1e-05
    %v1866 = vrsqrt.pop %v1864
    %v1867 = vrsqrt.pop %v1865
    %1869 = vset.pattern.permute.xlu0 0
    %1870 = vperm.xlu0 %1869, %v1866
    %v1871 = vpop.permute.xlu0 %1870
    %1874 = vset.pattern.permute.xlu0 0
    %1875 = vperm.xlu0 %1874, %v1867
    %v1876 = vpop.permute.xlu0 %1875
    %v1878 = vmul.f32 %v1862, %v1871
    %v1879 = vmul.f32 %v1863, %v1876
    %v1881 = vlaneseq
    %v1882 = vshrl.u32 %v1881, 7
    %v1883 = vsub.s32 0, %v1882
    %v1884 = vrot.slane %v175, %v1883
    %v1886 = vmul.f32 %v1878, %v1884
    %v1887 = vmul.f32 %v1879, %v1884
    %v1889 = vlaneseq
    %v1890 = vshrl.u32 %v1889, 7
    %v1891 = vsub.s32 0, %v1890
    %v1892 = vrot.slane %v176, %v1891
    %v1894 = vadd.f32 %v1886, %v1892
    %v1895 = vadd.f32 %v1887, %v1892
    %v1896 = vpack.c.bf16 %v1895, %v1894
    %v1897 = vpack.c.bf16 %v178, %v177
    %v1898 = vpack.c.bf16 %v180, %v179
    %v1900 = vlaneseq
    %v1901 = vshrl.u32 %v1900, 7
    %v1902 = vsub.s32 0, %v1901
    %v1903 = vrot.slane %v181, %v1902
    %v1906 = vsel %vm210, %v1896, 0
    %1908 = vmatprep.subr.bf16.mxu0 0
    %1909 = vmatpush1.bf16.msra.mxu0 %v1897
    %1910 = vmatprep.subr.bf16.mxu0 0
    %1911 = vmatpush1.bf16.msra.mxu0 %v1898
    %1912 = vmatprep.subr.bf16.mxu0 0
    %1913 = vmatpush1.bf16.msra.mxu0 0
    %1914 = vmatprep.subr.bf16.mxu0 0
    %1915 = vmatpush1.bf16.msra.mxu0 0
    %1916 = vmatprep.subr.bf16.mxu0 0
    %1917 = vmatpush1.bf16.msra.mxu0 0
    %1918 = vmatprep.subr.bf16.mxu0 0
    %1919 = vmatpush1.bf16.msra.mxu0 0
    %1920 = vmatprep.subr.bf16.mxu0 0
    %1921 = vmatpush1.bf16.msra.mxu0 0
    %1922 = vmatprep.subr.bf16.mxu0 0
    %1923 = vmatpush1.bf16.msra.mxu0 0
    %1924 = vmatprep.subr.bf16.mxu0 0
    %1925 = vmatpush1.bf16.msra.mxu0 0
    %1926 = vmatprep.subr.bf16.mxu0 0
    %1927 = vmatpush1.bf16.msra.mxu0 0
    %1928 = vmatprep.subr.bf16.mxu0 0
    %1929 = vmatpush1.bf16.msra.mxu0 0
    %1930 = vmatprep.subr.bf16.mxu0 0
    %1931 = vmatpush1.bf16.msra.mxu0 0
    %1932 = vmatprep.subr.bf16.mxu0 0
    %1933 = vmatpush1.bf16.msra.mxu0 0
    %1934 = vmatprep.subr.bf16.mxu0 0
    %1935 = vmatpush1.bf16.msra.mxu0 0
    %1936 = vmatprep.subr.bf16.mxu0 0
    %1937 = vmatpush1.bf16.msra.mxu0 0
    %1938 = vmatprep.subr.bf16.mxu0 0
    %1939 = vmatpush1.bf16.msra.mxu0 0
    %1940 = vmatprep.mubr.bf16.mxu0 0
    %1941 = vmatmul.mubr.bf16.gmra.mrb[0].mxu0 %v1906
    %v1942 = vpop.f32.mrb[0].mxu0
    %v1943 = vadd.f32 %v1903, %v1942
    %v1944 = vpop.f32.mrb[0].mxu0
    %v1945 = vpop.f32.mrb[0].mxu0
    %v1946 = vadd.f32 %v1903, %v1945
    %v1947 = vpop.f32.mrb[0].mxu0
    %1948 = vdwg.mxu0
    %v1949 = vmax.f32 %v1943, 0.0
    %v1950 = vmax.f32 %v1946, 0.0
    %v1951 = vpack.c.bf16 %v1950, %v1949
    %v1952 = vpack.c.bf16 %v183, %v182
    %v1953 = vpack.c.bf16 %v185, %v184
    %v1954 = vpack.c.bf16 %v187, %v186
    %v1955 = vpack.c.bf16 %v189, %v188
    %v1956 = vpack.c.bf16 %v191, %v190
    %v1957 = vpack.c.bf16 %v193, %v192
    %v1958 = vpack.c.bf16 %v195, %v194
    %v1959 = vpack.c.bf16 %v197, %v196
    %v1961 = vlaneseq
    %v1962 = vshrl.u32 %v1961, 7
    %v1963 = vsub.s32 0, %v1962
    %v1964 = vrot.slane %v198, %v1963
    %1966 = vmatprep.subr.bf16.mxu0 0
    %1967 = vmatpush1.bf16.msra.mxu0 %v1952
    %1968 = vmatprep.subr.bf16.mxu0 0
    %1969 = vmatpush1.bf16.msra.mxu0 %v1953
    %1970 = vmatprep.subr.bf16.mxu0 0
    %1971 = vmatpush1.bf16.msra.mxu0 %v1954
    %1972 = vmatprep.subr.bf16.mxu0 0
    %1973 = vmatpush1.bf16.msra.mxu0 %v1955
    %1974 = vmatprep.subr.bf16.mxu0 0
    %1975 = vmatpush1.bf16.msra.mxu0 %v1956
    %1976 = vmatprep.subr.bf16.mxu0 0
    %1977 = vmatpush1.bf16.msra.mxu0 %v1957
    %1978 = vmatprep.subr.bf16.mxu0 0
    %1979 = vmatpush1.bf16.msra.mxu0 %v1958
    %1980 = vmatprep.subr.bf16.mxu0 0
    %1981 = vmatpush1.bf16.msra.mxu0 %v1959
    %1982 = vmatprep.subr.bf16.mxu0 0
    %1983 = vmatpush1.bf16.msra.mxu0 0
    %1984 = vmatprep.subr.bf16.mxu0 0
    %1985 = vmatpush1.bf16.msra.mxu0 0
    %1986 = vmatprep.subr.bf16.mxu0 0
    %1987 = vmatpush1.bf16.msra.mxu0 0
    %1988 = vmatprep.subr.bf16.mxu0 0
    %1989 = vmatpush1.bf16.msra.mxu0 0
    %1990 = vmatprep.subr.bf16.mxu0 0
    %1991 = vmatpush1.bf16.msra.mxu0 0
    %1992 = vmatprep.subr.bf16.mxu0 0
    %1993 = vmatpush1.bf16.msra.mxu0 0
    %1994 = vmatprep.subr.bf16.mxu0 0
    %1995 = vmatpush1.bf16.msra.mxu0 0
    %1996 = vmatprep.subr.bf16.mxu0 0
    %1997 = vmatpush1.bf16.msra.mxu0 0
    %1998 = vmatprep.mubr.bf16.mxu0 0
    %1999 = vmatmul.mubr.bf16.gmra.mrb[0].mxu0 %v1951
    %v2000 = vpop.f32.mrb[0].mxu0
    %v2001 = vadd.f32 %v1964, %v2000
    %v2002 = vpop.f32.mrb[0].mxu0
    %v2003 = vpop.f32.mrb[0].mxu0
    %v2004 = vadd.f32 %v1964, %v2003
    %v2005 = vpop.f32.mrb[0].mxu0
    %2006 = vdwg.mxu0
    %v2007 = vadd.f32 %v1894, %v2001
    %v2008 = vadd.f32 %v1895, %v2004
    %v2010 = vsel %vm210, %v2007, 0
    %v2013 = vsel %vm210, %v2008, 0
    %2015 = vmatprep.subr.mxu0 0.0
    %2016 = vmatpush1.msra.mxu0 1.0
    %2017 = vmatprep.subr.mxu0 0.0
    %2018 = vmatpush1.msra.mxu0 1.0
    %2019 = vmatprep.subr.mxu0 0.0
    %2020 = vmatpush1.msra.mxu0 1.0
    %2021 = vmatprep.subr.mxu0 0.0
    %2022 = vmatpush1.msra.mxu0 1.0
    %2023 = vmatprep.subr.mxu0 0.0
    %2024 = vmatpush1.msra.mxu0 0.0
    %2025 = vmatprep.subr.mxu0 0.0
    %2026 = vmatpush1.msra.mxu0 0.0
    %2027 = vmatprep.subr.mxu0 0.0
    %2028 = vmatpush1.msra.mxu0 0.0
    %2029 = vmatprep.subr.mxu0 0.0
    %2030 = vmatpush1.msra.mxu0 0.0
    %2031 = vmatprep.subr.mxu0 0.0
    %2032 = vmatpush1.msra.mxu0 0.0
    %2033 = vmatprep.subr.mxu0 0.0
    %2034 = vmatpush1.msra.mxu0 0.0
    %2035 = vmatprep.subr.mxu0 0.0
    %2036 = vmatpush1.msra.mxu0 0.0
    %2037 = vmatprep.subr.mxu0 0.0
    %2038 = vmatpush1.msra.mxu0 0.0
    %2039 = vmatprep.subr.mxu0 0.0
    %2040 = vmatpush1.msra.mxu0 0.0
    %2041 = vmatprep.subr.mxu0 0.0
    %2042 = vmatpush1.msra.mxu0 0.0
    %2043 = vmatprep.subr.mxu0 0.0
    %2044 = vmatpush1.msra.mxu0 0.0
    %2045 = vmatprep.subr.mxu0 0.0
    %2046 = vmatpush1.msra.mxu0 0.0
    %2047 = vmatprep.subr.mxu0 0.0
    %2048 = vmatpush1.msra.mxu0 0.0
    %2049 = vmatprep.subr.mxu0 0.0
    %2050 = vmatpush1.msra.mxu0 0.0
    %2051 = vmatprep.subr.mxu0 0.0
    %2052 = vmatpush1.msra.mxu0 0.0
    %2053 = vmatprep.subr.mxu0 0.0
    %2054 = vmatpush1.msra.mxu0 0.0
    %2055 = vmatprep.subr.mxu0 0.0
    %2056 = vmatpush1.msra.mxu0 0.0
    %2057 = vmatprep.subr.mxu0 0.0
    %2058 = vmatpush1.msra.mxu0 0.0
    %2059 = vmatprep.subr.mxu0 0.0
    %2060 = vmatpush1.msra.mxu0 0.0
    %2061 = vmatprep.subr.mxu0 0.0
    %2062 = vmatpush1.msra.mxu0 0.0
    %2063 = vmatprep.subr.mxu0 0.0
    %2064 = vmatpush1.msra.mxu0 0.0
    %2065 = vmatprep.subr.mxu0 0.0
    %2066 = vmatpush1.msra.mxu0 0.0
    %2067 = vmatprep.subr.mxu0 0.0
    %2068 = vmatpush1.msra.mxu0 0.0
    %2069 = vmatprep.subr.mxu0 0.0
    %2070 = vmatpush1.msra.mxu0 0.0
    %2071 = vmatprep.subr.mxu0 0.0
    %2072 = vmatpush1.msra.mxu0 0.0
    %2073 = vmatprep.subr.mxu0 0.0
    %2074 = vmatpush1.msra.mxu0 0.0
    %2075 = vmatprep.subr.mxu0 0.0
    %2076 = vmatpush1.msra.mxu0 0.0
    %2077 = vmatprep.subr.mxu0 0.0
    %2078 = vmatpush1.msra.mxu0 0.0
    %2079 = vmatprep.mubr.f32.mxu0 0.0
    %2080 = vmatmul.mubr.f32.gmra.mrb[0].mxu0 %v2010
    %v2081 = vpop.f32.mrb[0].mxu0
    %v2082 = vadd.f32 0.0, %v2081
    %v2083 = vpop.f32.mrb[0].mxu0
    %2084 = vmatprep.mubr.f32.mxu0 0.0
    %2085 = vmatmul.mubr.f32.gmra.mrb[0].mxu0 %v2013
    %v2086 = vpop.f32.mrb[0].mxu0
    %v2087 = vadd.f32 0.0, %v2086
    %v2088 = vpop.f32.mrb[0].mxu0
    %2089 = vdwg.mxu0
    %v2090 = vmul.f32 %v2007, %v2007
    %v2091 = vmul.f32 %v2008, %v2008
    %v2093 = vsel %vm210, %v2090, 0
    %v2096 = vsel %vm210, %v2091, 0
    %2098 = vmatprep.subr.mxu0 0.0
    %2099 = vmatpush1.msra.mxu0 1.0
    %2100 = vmatprep.subr.mxu0 0.0
    %2101 = vmatpush1.msra.mxu0 1.0
    %2102 = vmatprep.subr.mxu0 0.0
    %2103 = vmatpush1.msra.mxu0 1.0
    %2104 = vmatprep.subr.mxu0 0.0
    %2105 = vmatpush1.msra.mxu0 1.0
    %2106 = vmatprep.subr.mxu0 0.0
    %2107 = vmatpush1.msra.mxu0 0.0
    %2108 = vmatprep.subr.mxu0 0.0
    %2109 = vmatpush1.msra.mxu0 0.0
    %2110 = vmatprep.subr.mxu0 0.0
    %2111 = vmatpush1.msra.mxu0 0.0
    %2112 = vmatprep.subr.mxu0 0.0
    %2113 = vmatpush1.msra.mxu0 0.0
    %2114 = vmatprep.subr.mxu0 0.0
    %2115 = vmatpush1.msra.mxu0 0.0
    %2116 = vmatprep.subr.mxu0 0.0
    %2117 = vmatpush1.msra.mxu0 0.0
    %2118 = vmatprep.subr.mxu0 0.0
    %2119 = vmatpush1.msra.mxu0 0.0
    %2120 = vmatprep.subr.mxu0 0.0
    %2121 = vmatpush1.msra.mxu0 0.0
    %2122 = vmatprep.subr.mxu0 0.0
    %2123 = vmatpush1.msra.mxu0 0.0
    %2124 = vmatprep.subr.mxu0 0.0
    %2125 = vmatpush1.msra.mxu0 0.0
    %2126 = vmatprep.subr.mxu0 0.0
    %2127 = vmatpush1.msra.mxu0 0.0
    %2128 = vmatprep.subr.mxu0 0.0
    %2129 = vmatpush1.msra.mxu0 0.0
    %2130 = vmatprep.subr.mxu0 0.0
    %2131 = vmatpush1.msra.mxu0 0.0
    %2132 = vmatprep.subr.mxu0 0.0
    %2133 = vmatpush1.msra.mxu0 0.0
    %2134 = vmatprep.subr.mxu0 0.0
    %2135 = vmatpush1.msra.mxu0 0.0
    %2136 = vmatprep.subr.mxu0 0.0
    %2137 = vmatpush1.msra.mxu0 0.0
    %2138 = vmatprep.subr.mxu0 0.0
    %2139 = vmatpush1.msra.mxu0 0.0
    %2140 = vmatprep.subr.mxu0 0.0
    %2141 = vmatpush1.msra.mxu0 0.0
    %2142 = vmatprep.subr.mxu0 0.0
    %2143 = vmatpush1.msra.mxu0 0.0
    %2144 = vmatprep.subr.mxu0 0.0
    %2145 = vmatpush1.msra.mxu0 0.0
    %2146 = vmatprep.subr.mxu0 0.0
    %2147 = vmatpush1.msra.mxu0 0.0
    %2148 = vmatprep.subr.mxu0 0.0
    %2149 = vmatpush1.msra.mxu0 0.0
    %2150 = vmatprep.subr.mxu0 0.0
    %2151 = vmatpush1.msra.mxu0 0.0
    %2152 = vmatprep.subr.mxu0 0.0
    %2153 = vmatpush1.msra.mxu0 0.0
    %2154 = vmatprep.subr.mxu0 0.0
    %2155 = vmatpush1.msra.mxu0 0.0
    %2156 = vmatprep.subr.mxu0 0.0
    %2157 = vmatpush1.msra.mxu0 0.0
    %2158 = vmatprep.subr.mxu0 0.0
    %2159 = vmatpush1.msra.mxu0 0.0
    %2160 = vmatprep.subr.mxu0 0.0
    %2161 = vmatpush1.msra.mxu0 0.0
    %2162 = vmatprep.mubr.f32.mxu0 0.0
    %2163 = vmatmul.mubr.f32.gmra.mrb[0].mxu0 %v2093
    %v2164 = vpop.f32.mrb[0].mxu0
    %v2165 = vadd.f32 0.0, %v2164
    %v2166 = vpop.f32.mrb[0].mxu0
    %2167 = vmatprep.mubr.f32.mxu0 0.0
    %2168 = vmatmul.mubr.f32.gmra.mrb[0].mxu0 %v2096
    %v2169 = vpop.f32.mrb[0].mxu0
    %v2170 = vadd.f32 0.0, %v2169
    %v2171 = vpop.f32.mrb[0].mxu0
    %2172 = vdwg.mxu0
    %v2173 = vmul.f32 %v2082, 0.03125
    %v2174 = vmul.f32 %v2087, 0.03125
    %v2175 = vmul.f32 %v2165, 0.03125
    %v2176 = vmul.f32 %v2170, 0.03125
    %v2177 = vmul.f32 %v2173, %v2173
    %v2178 = vmul.f32 %v2174, %v2174
    %v2179 = vsub.f32 %v2175, %v2177
    %v2180 = vsub.f32 %v2176, %v2178
    %v2181 = vmax.f32 %v2179, 0.0
    %v2182 = vmax.f32 %v2180, 0.0
    %2184 = vset.pattern.permute.xlu0 0
    %2185 = vperm.xlu0 %2184, %v2173
    %v2186 = vpop.permute.xlu0 %2185
    %2189 = vset.pattern.permute.xlu0 0
    %2190 = vperm.xlu0 %2189, %v2174
    %v2191 = vpop.permute.xlu0 %2190
    %v2193 = vsub.f32 %v2007, %v2186
    %v2194 = vsub.f32 %v2008, %v2191
    %v2195 = vadd.f32 %v2181, 1e-05
    %v2196 = vadd.f32 %v2182, 1e-05
    %v2197 = vrsqrt.pop %v2195
    %v2198 = vrsqrt.pop %v2196
    %2200 = vset.pattern.permute.xlu0 0
    %2201 = vperm.xlu0 %2200, %v2197
    %v2202 = vpop.permute.xlu0 %2201
    %2205 = vset.pattern.permute.xlu0 0
    %2206 = vperm.xlu0 %2205, %v2198
    %v2207 = vpop.permute.xlu0 %2206
    %v2209 = vmul.f32 %v2193, %v2202
    %v2210 = vmul.f32 %v2194, %v2207
    %v2212 = vlaneseq
    %v2213 = vshrl.u32 %v2212, 7
    %v2214 = vsub.s32 0, %v2213
    %v2215 = vrot.slane %v199, %v2214
    %v2217 = vmul.f32 %v2209, %v2215
    %v2218 = vmul.f32 %v2210, %v2215
    %v2220 = vlaneseq
    %v2221 = vshrl.u32 %v2220, 7
    %v2222 = vsub.s32 0, %v2221
    %v2223 = vrot.slane %v200, %v2222
    %v2225 = vadd.f32 %v2217, %v2223
    %v2226 = vadd.f32 %v2218, %v2223
    %s2227 = scalar_lea.vmem %s2, 32
    %v2228 = vld [vmem:[%s2227] sm:$0xff]
    %v2229 = vld [vmem:[%s2227 + $0x8] sm:$0xff]
    %v2230 = vld [vmem:[%s2227 + $0x10] sm:$0xff]
    %v2231 = vld [vmem:[%s2227 + $0x18] sm:$0xff]
    %s2232 = scalar_lea.vmem %s3, 1
    %v2233 = vld [vmem:[%s2232] sm:$0x1]
    %s2234 = scalar_lea.vmem %s4, 32
    %v2235 = vld [vmem:[%s2234] sm:$0xff]
    %v2236 = vld [vmem:[%s2234 + $0x8] sm:$0xff]
    %v2237 = vld [vmem:[%s2234 + $0x10] sm:$0xff]
    %v2238 = vld [vmem:[%s2234 + $0x18] sm:$0xff]
    %s2239 = scalar_lea.vmem [#allocation5], 1
    %v2240 = vld [vmem:[%s2239] sm:$0x1]
    %s2241 = scalar_lea.vmem %s6, 32
    %v2242 = vld [vmem:[%s2241] sm:$0xff]
    %v2243 = vld [vmem:[%s2241 + $0x8] sm:$0xff]
    %v2244 = vld [vmem:[%s2241 + $0x10] sm:$0xff]
    %v2245 = vld [vmem:[%s2241 + $0x18] sm:$0xff]
    %s2246 = scalar_lea.vmem [#allocation7], 1
    %v2247 = vld [vmem:[%s2246] sm:$0x1]
    %s2248 = scalar_lea.vmem %s8, 32
    %v2249 = vld [vmem:[%s2248] sm:$0xff]
    %v2250 = vld [vmem:[%s2248 + $0x8] sm:$0xff]
    %v2251 = vld [vmem:[%s2248 + $0x10] sm:$0xff]
    %v2252 = vld [vmem:[%s2248 + $0x18] sm:$0xff]
    %s2253 = scalar_lea.vmem [#allocation8], 1
    %v2254 = vld [vmem:[%s2253] sm:$0x1]
    %s2255 = scalar_lea.vmem [#allocation10], 1
    %v2256 = vld [vmem:[%s2255] sm:$0x1]
    %s2257 = scalar_lea.vmem %s11, 1
    %v2258 = vld [vmem:[%s2257] sm:$0x1]
    %s2259 = scalar_lea.vmem %s12, 32
    %v2260 = vld [vmem:[%s2259] sm:$0xff]
    %v2261 = vld [vmem:[%s2259 + $0x8] sm:$0xff]
    %v2262 = vld [vmem:[%s2259 + $0x10] sm:$0xff]
    %v2263 = vld [vmem:[%s2259 + $0x18] sm:$0xff]
    %s2264 = scalar_lea.vmem %s13, 1
    %v2265 = vld [vmem:[%s2264] sm:$0x1]
    %s2266 = scalar_lea.vmem %s14, 128
    %v2267 = vld [vmem:[%s2266] sm:$0xff]
    %v2268 = vld [vmem:[%s2266 + $0x8] sm:$0xff]
    %v2269 = vld [vmem:[%s2266 + $0x10] sm:$0xff]
    %v2270 = vld [vmem:[%s2266 + $0x18] sm:$0xff]
    %v2271 = vld [vmem:[%s2266 + $0x20] sm:$0xff]
    %v2272 = vld [vmem:[%s2266 + $0x28] sm:$0xff]
    %v2273 = vld [vmem:[%s2266 + $0x30] sm:$0xff]
    %v2274 = vld [vmem:[%s2266 + $0x38] sm:$0xff]
    %v2275 = vld [vmem:[%s2266 + $0x40] sm:$0xff]
    %v2276 = vld [vmem:[%s2266 + $0x48] sm:$0xff]
    %v2277 = vld [vmem:[%s2266 + $0x50] sm:$0xff]
    %v2278 = vld [vmem:[%s2266 + $0x58] sm:$0xff]
    %v2279 = vld [vmem:[%s2266 + $0x60] sm:$0xff]
    %v2280 = vld [vmem:[%s2266 + $0x68] sm:$0xff]
    %v2281 = vld [vmem:[%s2266 + $0x70] sm:$0xff]
    %v2282 = vld [vmem:[%s2266 + $0x78] sm:$0xff]
    %s2283 = scalar_lea.vmem %s15, 1
    %v2284 = vld [vmem:[%s2283] sm:$0x1]
    %s2285 = scalar_lea.vmem %s16, 1
    %v2286 = vld [vmem:[%s2285] sm:$0x1]
    %s2287 = scalar_lea.vmem %s17, 1
    %v2288 = vld [vmem:[%s2287] sm:$0x1]
    %v2289 = vpack.c.bf16 %v2226, %v2225
    %v2290 = vpack.c.bf16 %v2229, %v2228
    %v2291 = vpack.c.bf16 %v2231, %v2230
    %v2293 = vlaneseq
    %v2294 = vshrl.u32 %v2293, 7
    %v2295 = vsub.s32 0, %v2294
    %v2296 = vrot.slane %v2233, %v2295
    %v2299 = vsel %vm210, %v2289, 0
    %2301 = vmatprep.subr.bf16.mxu0 0
    %2302 = vmatpush1.bf16.msra.mxu0 %v2290
    %2303 = vmatprep.subr.bf16.mxu0 0
    %2304 = vmatpush1.bf16.msra.mxu0 %v2291
    %2305 = vmatprep.subr.bf16.mxu0 0
    %2306 = vmatpush1.bf16.msra.mxu0 0
    %2307 = vmatprep.subr.bf16.mxu0 0
    %2308 = vmatpush1.bf16.msra.mxu0 0
    %2309 = vmatprep.subr.bf16.mxu0 0
    %2310 = vmatpush1.bf16.msra.mxu0 0
    %2311 = vmatprep.subr.bf16.mxu0 0
    %2312 = vmatpush1.bf16.msra.mxu0 0
    %2313 = vmatprep.subr.bf16.mxu0 0
    %2314 = vmatpush1.bf16.msra.mxu0 0
    %2315 = vmatprep.subr.bf16.mxu0 0
    %2316 = vmatpush1.bf16.msra.mxu0 0
    %2317 = vmatprep.subr.bf16.mxu0 0
    %2318 = vmatpush1.bf16.msra.mxu0 0
    %2319 = vmatprep.subr.bf16.mxu0 0
    %2320 = vmatpush1.bf16.msra.mxu0 0
    %2321 = vmatprep.subr.bf16.mxu0 0
    %2322 = vmatpush1.bf16.msra.mxu0 0
    %2323 = vmatprep.subr.bf16.mxu0 0
    %2324 = vmatpush1.bf16.msra.mxu0 0
    %2325 = vmatprep.subr.bf16.mxu0 0
    %2326 = vmatpush1.bf16.msra.mxu0 0
    %2327 = vmatprep.subr.bf16.mxu0 0
    %2328 = vmatpush1.bf16.msra.mxu0 0
    %2329 = vmatprep.subr.bf16.mxu0 0
    %2330 = vmatpush1.bf16.msra.mxu0 0
    %2331 = vmatprep.subr.bf16.mxu0 0
    %2332 = vmatpush1.bf16.msra.mxu0 0
    %2333 = vmatprep.mubr.bf16.mxu0 0
    %2334 = vmatmul.mubr.bf16.gmra.mrb[0].mxu0 %v2299
    %v2335 = vpop.f32.mrb[0].mxu0
    %v2336 = vadd.f32 %v2296, %v2335
    %v2337 = vpop.f32.mrb[0].mxu0
    %v2338 = vpop.f32.mrb[0].mxu0
    %v2339 = vadd.f32 %v2296, %v2338
    %v2340 = vpop.f32.mrb[0].mxu0
    %2341 = vdwg.mxu0
    %v2342 = vpack.c.bf16 %v2236, %v2235
    %v2343 = vpack.c.bf16 %v2238, %v2237
    %v2345 = vlaneseq
    %v2346 = vshrl.u32 %v2345, 7
    %v2347 = vsub.s32 0, %v2346
    %v2348 = vrot.slane %v2240, %v2347
    %2350 = vmatprep.subr.bf16.mxu0 0
    %2351 = vmatpush1.bf16.msra.mxu0 %v2342
    %2352 = vmatprep.subr.bf16.mxu0 0
    %2353 = vmatpush1.bf16.msra.mxu0 %v2343
    %2354 = vmatprep.subr.bf16.mxu0 0
    %2355 = vmatpush1.bf16.msra.mxu0 0
    %2356 = vmatprep.subr.bf16.mxu0 0
    %2357 = vmatpush1.bf16.msra.mxu0 0
    %2358 = vmatprep.subr.bf16.mxu0 0
    %2359 = vmatpush1.bf16.msra.mxu0 0
    %2360 = vmatprep.subr.bf16.mxu0 0
    %2361 = vmatpush1.bf16.msra.mxu0 0
    %2362 = vmatprep.subr.bf16.mxu0 0
    %2363 = vmatpush1.bf16.msra.mxu0 0
    %2364 = vmatprep.subr.bf16.mxu0 0
    %2365 = vmatpush1.bf16.msra.mxu0 0
    %2366 = vmatprep.subr.bf16.mxu0 0
    %2367 = vmatpush1.bf16.msra.mxu0 0
    %2368 = vmatprep.subr.bf16.mxu0 0
    %2369 = vmatpush1.bf16.msra.mxu0 0
    %2370 = vmatprep.subr.bf16.mxu0 0
    %2371 = vmatpush1.bf16.msra.mxu0 0
    %2372 = vmatprep.subr.bf16.mxu0 0
    %2373 = vmatpush1.bf16.msra.mxu0 0
    %2374 = vmatprep.subr.bf16.mxu0 0
    %2375 = vmatpush1.bf16.msra.mxu0 0
    %2376 = vmatprep.subr.bf16.mxu0 0
    %2377 = vmatpush1.bf16.msra.mxu0 0
    %2378 = vmatprep.subr.bf16.mxu0 0
    %2379 = vmatpush1.bf16.msra.mxu0 0
    %2380 = vmatprep.subr.bf16.mxu0 0
    %2381 = vmatpush1.bf16.msra.mxu0 0
    %2382 = vmatprep.mubr.bf16.mxu0 0
    %2383 = vmatmul.mubr.bf16.gmra.mrb[0].mxu0 %v2299
    %v2384 = vpop.f32.mrb[0].mxu0
    %v2385 = vadd.f32 %v2348, %v2384
    %v2386 = vpop.f32.mrb[0].mxu0
    %v2387 = vpop.f32.mrb[0].mxu0
    %v2388 = vadd.f32 %v2348, %v2387
    %v2389 = vpop.f32.mrb[0].mxu0
    %2390 = vdwg.mxu0
    %v2391 = vpack.c.bf16 %v2243, %v2242
    %v2392 = vpack.c.bf16 %v2245, %v2244
    %v2394 = vlaneseq
    %v2395 = vshrl.u32 %v2394, 7
    %v2396 = vsub.s32 0, %v2395
    %v2397 = vrot.slane %v2247, %v2396
    %2399 = vmatprep.subr.bf16.mxu0 0
    %2400 = vmatpush1.bf16.msra.mxu0 %v2391
    %2401 = vmatprep.subr.bf16.mxu0 0
    %2402 = vmatpush1.bf16.msra.mxu0 %v2392
    %2403 = vmatprep.subr.bf16.mxu0 0
    %2404 = vmatpush1.bf16.msra.mxu0 0
    %2405 = vmatprep.subr.bf16.mxu0 0
    %2406 = vmatpush1.bf16.msra.mxu0 0
    %2407 = vmatprep.subr.bf16.mxu0 0
    %2408 = vmatpush1.bf16.msra.mxu0 0
    %2409 = vmatprep.subr.bf16.mxu0 0
    %2410 = vmatpush1.bf16.msra.mxu0 0
    %2411 = vmatprep.subr.bf16.mxu0 0
    %2412 = vmatpush1.bf16.msra.mxu0 0
    %2413 = vmatprep.subr.bf16.mxu0 0
    %2414 = vmatpush1.bf16.msra.mxu0 0
    %2415 = vmatprep.subr.bf16.mxu0 0
    %2416 = vmatpush1.bf16.msra.mxu0 0
    %2417 = vmatprep.subr.bf16.mxu0 0
    %2418 = vmatpush1.bf16.msra.mxu0 0
    %2419 = vmatprep.subr.bf16.mxu0 0
    %2420 = vmatpush1.bf16.msra.mxu0 0
    %2421 = vmatprep.subr.bf16.mxu0 0
    %2422 = vmatpush1.bf16.msra.mxu0 0
    %2423 = vmatprep.subr.bf16.mxu0 0
    %2424 = vmatpush1.bf16.msra.mxu0 0
    %2425 = vmatprep.subr.bf16.mxu0 0
    %2426 = vmatpush1.bf16.msra.mxu0 0
    %2427 = vmatprep.subr.bf16.mxu0 0
    %2428 = vmatpush1.bf16.msra.mxu0 0
    %2429 = vmatprep.subr.bf16.mxu0 0
    %2430 = vmatpush1.bf16.msra.mxu0 0
    %2431 = vmatprep.mubr.bf16.mxu0 0
    %2432 = vmatmul.mubr.bf16.gmra.mrb[0].mxu0 %v2299
    %v2433 = vpop.f32.mrb[0].mxu0
    %v2434 = vadd.f32 %v2397, %v2433
    %v2435 = vpop.f32.mrb[0].mxu0
    %v2436 = vpop.f32.mrb[0].mxu0
    %v2437 = vadd.f32 %v2397, %v2436
    %v2438 = vpop.f32.mrb[0].mxu0
    %2439 = vdwg.mxu0
    %v2440 = vpack.c.bf16 %v2336, %v2336
    %v2441 = vpack.c.bf16 %v2339, %v2339
    %v2442 = vpack.c.bf16 %v2385, %v2385
    %v2443 = vpack.c.bf16 %v2388, %v2388
    %v2445 = vsel %vm357, %v2440, 0
    %v2448 = vsel %vm357, %v2442, 0
    %2450 = vmatprep.subr.bf16.mxu0 0
    %2451 = vmatpush1.bf16.xpose.msra.mxu0 %v2448
    %2452 = vmatprep.subr.bf16.mxu0 0
    %2453 = vmatpush1.bf16.xpose.msra.mxu0 0
    %2454 = vmatprep.subr.bf16.mxu0 0
    %2455 = vmatpush1.bf16.xpose.msra.mxu0 0
    %2456 = vmatprep.subr.bf16.mxu0 0
    %2457 = vmatpush1.bf16.xpose.msra.mxu0 0
    %2458 = vmatprep.subr.bf16.mxu0 0
    %2459 = vmatpush1.bf16.xpose.msra.mxu0 0
    %2460 = vmatprep.subr.bf16.mxu0 0
    %2461 = vmatpush1.bf16.xpose.msra.mxu0 0
    %2462 = vmatprep.subr.bf16.mxu0 0
    %2463 = vmatpush1.bf16.xpose.msra.mxu0 0
    %2464 = vmatprep.subr.bf16.mxu0 0
    %2465 = vmatpush1.bf16.xpose.msra.mxu0 0
    %2466 = vmatprep.subr.bf16.mxu0 0
    %2467 = vmatpush1.bf16.xpose.msra.mxu0 0
    %2468 = vmatprep.subr.bf16.mxu0 0
    %2469 = vmatpush1.bf16.xpose.msra.mxu0 0
    %2470 = vmatprep.subr.bf16.mxu0 0
    %2471 = vmatpush1.bf16.xpose.msra.mxu0 0
    %2472 = vmatprep.subr.bf16.mxu0 0
    %2473 = vmatpush1.bf16.xpose.msra.mxu0 0
    %2474 = vmatprep.subr.bf16.mxu0 0
    %2475 = vmatpush1.bf16.xpose.msra.mxu0 0
    %2476 = vmatprep.subr.bf16.mxu0 0
    %2477 = vmatpush1.bf16.xpose.msra.mxu0 0
    %2478 = vmatprep.subr.bf16.mxu0 0
    %2479 = vmatpush1.bf16.xpose.msra.mxu0 0
    %2480 = vmatprep.subr.bf16.mxu0 0
    %2481 = vmatpush1.bf16.xpose.msra.mxu0 0
    %2482 = vmatprep.mubr.bf16.mxu0 0
    %2483 = vmatmul.mubr.bf16.gmra.mrb[0].mxu0 %v2445
    %v2484 = vpop.f32.mrb[0].mxu0
    %v2485 = vadd.f32 0.0, %v2484
    %v2486 = vpop.f32.mrb[0].mxu0
    %v2487 = vpop.f32.mrb[0].mxu0
    %v2488 = vpop.f32.mrb[0].mxu0
    %2489 = vdwg.mxu0
    %v2491 = vsel %vm357, %v2441, 0
    %v2494 = vsel %vm357, %v2443, 0
    %2496 = vmatprep.subr.bf16.mxu0 0
    %2497 = vmatpush1.bf16.xpose.msra.mxu0 %v2494
    %2498 = vmatprep.subr.bf16.mxu0 0
    %2499 = vmatpush1.bf16.xpose.msra.mxu0 0
    %2500 = vmatprep.subr.bf16.mxu0 0
    %2501 = vmatpush1.bf16.xpose.msra.mxu0 0
    %2502 = vmatprep.subr.bf16.mxu0 0
    %2503 = vmatpush1.bf16.xpose.msra.mxu0 0
    %2504 = vmatprep.subr.bf16.mxu0 0
    %2505 = vmatpush1.bf16.xpose.msra.mxu0 0
    %2506 = vmatprep.subr.bf16.mxu0 0
    %2507 = vmatpush1.bf16.xpose.msra.mxu0 0
    %2508 = vmatprep.subr.bf16.mxu0 0
    %2509 = vmatpush1.bf16.xpose.msra.mxu0 0
    %2510 = vmatprep.subr.bf16.mxu0 0
    %2511 = vmatpush1.bf16.xpose.msra.mxu0 0
    %2512 = vmatprep.subr.bf16.mxu0 0
    %2513 = vmatpush1.bf16.xpose.msra.mxu0 0
    %2514 = vmatprep.subr.bf16.mxu0 0
    %2515 = vmatpush1.bf16.xpose.msra.mxu0 0
    %2516 = vmatprep.subr.bf16.mxu0 0
    %2517 = vmatpush1.bf16.xpose.msra.mxu0 0
    %2518 = vmatprep.subr.bf16.mxu0 0
    %2519 = vmatpush1.bf16.xpose.msra.mxu0 0
    %2520 = vmatprep.subr.bf16.mxu0 0
    %2521 = vmatpush1.bf16.xpose.msra.mxu0 0
    %2522 = vmatprep.subr.bf16.mxu0 0
    %2523 = vmatpush1.bf16.xpose.msra.mxu0 0
    %2524 = vmatprep.subr.bf16.mxu0 0
    %2525 = vmatpush1.bf16.xpose.msra.mxu0 0
    %2526 = vmatprep.subr.bf16.mxu0 0
    %2527 = vmatpush1.bf16.xpose.msra.mxu0 0
    %2528 = vmatprep.mubr.bf16.mxu0 0
    %2529 = vmatmul.mubr.bf16.gmra.mrb[0].mxu0 %v2491
    %v2530 = vpop.f32.mrb[0].mxu0
    %v2531 = vadd.f32 0.0, %v2530
    %v2532 = vpop.f32.mrb[0].mxu0
    %v2533 = vpop.f32.mrb[0].mxu0
    %v2534 = vpop.f32.mrb[0].mxu0
    %2535 = vdwg.mxu0
    %v2536 = vmul.f32 %v2485, 0.35355338
    %v2537 = vmul.f32 %v2531, 0.35355338
    %v2538 = vadd.f32 %v2536, %v148
    %v2539 = vadd.f32 %v2537, %v152
    %v2540 = vsel %vm357, %v2538, -inf
    %2541 = vmax.xlane.f32.xlu0 %v2540
    %v2542 = vpop.xlane.xlu0 %2541
    %v2543 = vsel %vm357, %v2539, -inf
    %2544 = vmax.xlane.f32.xlu0 %v2543
    %v2545 = vpop.xlane.xlu0 %2544
    %v2546 = vsub.f32 %v2538, %v2542
    %v2547 = vsub.f32 %v2539, %v2545
    %v2548 = vmul.f32 %v2546, 1.442695
    %v2549 = vpow.pop %v2548
    %v2550 = vmul.f32 %v2547, 1.442695
    %v2551 = vpow.pop %v2550
    %v2553 = vsel %vm357, %v2549, 0
    %v2556 = vsel %vm357, %v2551, 0
    %2558 = vmatprep.subr.mxu0 0.0
    %2559 = vmatpush1.msra.mxu0 1.0
    %2560 = vmatprep.subr.mxu0 0.0
    %2561 = vmatpush1.msra.mxu0 0.0
    %2562 = vmatprep.subr.mxu0 0.0
    %2563 = vmatpush1.msra.mxu0 0.0
    %2564 = vmatprep.subr.mxu0 0.0
    %2565 = vmatpush1.msra.mxu0 0.0
    %2566 = vmatprep.subr.mxu0 0.0
    %2567 = vmatpush1.msra.mxu0 0.0
    %2568 = vmatprep.subr.mxu0 0.0
    %2569 = vmatpush1.msra.mxu0 0.0
    %2570 = vmatprep.subr.mxu0 0.0
    %2571 = vmatpush1.msra.mxu0 0.0
    %2572 = vmatprep.subr.mxu0 0.0
    %2573 = vmatpush1.msra.mxu0 0.0
    %2574 = vmatprep.subr.mxu0 0.0
    %2575 = vmatpush1.msra.mxu0 0.0
    %2576 = vmatprep.subr.mxu0 0.0
    %2577 = vmatpush1.msra.mxu0 0.0
    %2578 = vmatprep.subr.mxu0 0.0
    %2579 = vmatpush1.msra.mxu0 0.0
    %2580 = vmatprep.subr.mxu0 0.0
    %2581 = vmatpush1.msra.mxu0 0.0
    %2582 = vmatprep.subr.mxu0 0.0
    %2583 = vmatpush1.msra.mxu0 0.0
    %2584 = vmatprep.subr.mxu0 0.0
    %2585 = vmatpush1.msra.mxu0 0.0
    %2586 = vmatprep.subr.mxu0 0.0
    %2587 = vmatpush1.msra.mxu0 0.0
    %2588 = vmatprep.subr.mxu0 0.0
    %2589 = vmatpush1.msra.mxu0 0.0
    %2590 = vmatprep.subr.mxu0 0.0
    %2591 = vmatpush1.msra.mxu0 0.0
    %2592 = vmatprep.subr.mxu0 0.0
    %2593 = vmatpush1.msra.mxu0 0.0
    %2594 = vmatprep.subr.mxu0 0.0
    %2595 = vmatpush1.msra.mxu0 0.0
    %2596 = vmatprep.subr.mxu0 0.0
    %2597 = vmatpush1.msra.mxu0 0.0
    %2598 = vmatprep.subr.mxu0 0.0
    %2599 = vmatpush1.msra.mxu0 0.0
    %2600 = vmatprep.subr.mxu0 0.0
    %2601 = vmatpush1.msra.mxu0 0.0
    %2602 = vmatprep.subr.mxu0 0.0
    %2603 = vmatpush1.msra.mxu0 0.0
    %2604 = vmatprep.subr.mxu0 0.0
    %2605 = vmatpush1.msra.mxu0 0.0
    %2606 = vmatprep.subr.mxu0 0.0
    %2607 = vmatpush1.msra.mxu0 0.0
    %2608 = vmatprep.subr.mxu0 0.0
    %2609 = vmatpush1.msra.mxu0 0.0
    %2610 = vmatprep.subr.mxu0 0.0
    %2611 = vmatpush1.msra.mxu0 0.0
    %2612 = vmatprep.subr.mxu0 0.0
    %2613 = vmatpush1.msra.mxu0 0.0
    %2614 = vmatprep.subr.mxu0 0.0
    %2615 = vmatpush1.msra.mxu0 0.0
    %2616 = vmatprep.subr.mxu0 0.0
    %2617 = vmatpush1.msra.mxu0 0.0
    %2618 = vmatprep.subr.mxu0 0.0
    %2619 = vmatpush1.msra.mxu0 0.0
    %2620 = vmatprep.subr.mxu0 0.0
    %2621 = vmatpush1.msra.mxu0 0.0
    %2622 = vmatprep.mubr.f32.mxu0 0.0
    %2623 = vmatmul.mubr.f32.gmra.mrb[0].mxu0 %v2553
    %v2624 = vpop.f32.mrb[0].mxu0
    %v2625 = vadd.f32 0.0, %v2624
    %v2626 = vpop.f32.mrb[0].mxu0
    %2627 = vmatprep.mubr.f32.mxu0 0.0
    %2628 = vmatmul.mubr.f32.gmra.mrb[0].mxu0 %v2556
    %v2629 = vpop.f32.mrb[0].mxu0
    %v2630 = vadd.f32 0.0, %v2629
    %v2631 = vpop.f32.mrb[0].mxu0
    %2632 = vdwg.mxu0
    %v2633 = vrcp.pop %v2625
    %v2634 = vrcp.pop %v2630
    %2636 = vset.pattern.permute.xlu0 0
    %2637 = vperm.xlu0 %2636, %v2633
    %v2638 = vpop.permute.xlu0 %2637
    %2641 = vset.pattern.permute.xlu0 0
    %2642 = vperm.xlu0 %2641, %v2634
    %v2643 = vpop.permute.xlu0 %2642
    %v2645 = vmul.f32 %v2549, %v2638
    %v2646 = vmul.f32 %v2551, %v2643
    %v2647 = vpack.c.bf16 %v2645, %v2645
    %v2648 = vpack.c.bf16 %v2646, %v2646
    %v2649 = vpack.c.bf16 %v2434, %v2434
    %v2650 = vpack.c.bf16 %v2437, %v2437
    %v2652 = vsel %vm357, %v2647, 0
    %v2655 = vsel %vm568, %v2649, 0
    %2657 = vmatprep.subr.bf16.mxu0 0
    %2658 = vmatpush1.bf16.msra.mxu0 %v2655
    %2659 = vmatprep.subr.bf16.mxu0 0
    %2660 = vmatpush1.bf16.msra.mxu0 0
    %2661 = vmatprep.subr.bf16.mxu0 0
    %2662 = vmatpush1.bf16.msra.mxu0 0
    %2663 = vmatprep.subr.bf16.mxu0 0
    %2664 = vmatpush1.bf16.msra.mxu0 0
    %2665 = vmatprep.subr.bf16.mxu0 0
    %2666 = vmatpush1.bf16.msra.mxu0 0
    %2667 = vmatprep.subr.bf16.mxu0 0
    %2668 = vmatpush1.bf16.msra.mxu0 0
    %2669 = vmatprep.subr.bf16.mxu0 0
    %2670 = vmatpush1.bf16.msra.mxu0 0
    %2671 = vmatprep.subr.bf16.mxu0 0
    %2672 = vmatpush1.bf16.msra.mxu0 0
    %2673 = vmatprep.subr.bf16.mxu0 0
    %2674 = vmatpush1.bf16.msra.mxu0 0
    %2675 = vmatprep.subr.bf16.mxu0 0
    %2676 = vmatpush1.bf16.msra.mxu0 0
    %2677 = vmatprep.subr.bf16.mxu0 0
    %2678 = vmatpush1.bf16.msra.mxu0 0
    %2679 = vmatprep.subr.bf16.mxu0 0
    %2680 = vmatpush1.bf16.msra.mxu0 0
    %2681 = vmatprep.subr.bf16.mxu0 0
    %2682 = vmatpush1.bf16.msra.mxu0 0
    %2683 = vmatprep.subr.bf16.mxu0 0
    %2684 = vmatpush1.bf16.msra.mxu0 0
    %2685 = vmatprep.subr.bf16.mxu0 0
    %2686 = vmatpush1.bf16.msra.mxu0 0
    %2687 = vmatprep.subr.bf16.mxu0 0
    %2688 = vmatpush1.bf16.msra.mxu0 0
    %2689 = vmatprep.mubr.bf16.mxu0 0
    %2690 = vmatmul.mubr.bf16.gmra.mrb[0].mxu0 %v2652
    %v2691 = vpop.f32.mrb[0].mxu0
    %v2692 = vadd.f32 0.0, %v2691
    %v2693 = vpop.f32.mrb[0].mxu0
    %v2694 = vpop.f32.mrb[0].mxu0
    %v2695 = vpop.f32.mrb[0].mxu0
    %2696 = vdwg.mxu0
    %v2698 = vsel %vm357, %v2648, 0
    %v2701 = vsel %vm568, %v2650, 0
    %2703 = vmatprep.subr.bf16.mxu0 0
    %2704 = vmatpush1.bf16.msra.mxu0 %v2701
    %2705 = vmatprep.subr.bf16.mxu0 0
    %2706 = vmatpush1.bf16.msra.mxu0 0
    %2707 = vmatprep.subr.bf16.mxu0 0
    %2708 = vmatpush1.bf16.msra.mxu0 0
    %2709 = vmatprep.subr.bf16.mxu0 0
    %2710 = vmatpush1.bf16.msra.mxu0 0
    %2711 = vmatprep.subr.bf16.mxu0 0
    %2712 = vmatpush1.bf16.msra.mxu0 0
    %2713 = vmatprep.subr.bf16.mxu0 0
    %2714 = vmatpush1.bf16.msra.mxu0 0
    %2715 = vmatprep.subr.bf16.mxu0 0
    %2716 = vmatpush1.bf16.msra.mxu0 0
    %2717 = vmatprep.subr.bf16.mxu0 0
    %2718 = vmatpush1.bf16.msra.mxu0 0
    %2719 = vmatprep.subr.bf16.mxu0 0
    %2720 = vmatpush1.bf16.msra.mxu0 0
    %2721 = vmatprep.subr.bf16.mxu0 0
    %2722 = vmatpush1.bf16.msra.mxu0 0
    %2723 = vmatprep.subr.bf16.mxu0 0
    %2724 = vmatpush1.bf16.msra.mxu0 0
    %2725 = vmatprep.subr.bf16.mxu0 0
    %2726 = vmatpush1.bf16.msra.mxu0 0
    %2727 = vmatprep.subr.bf16.mxu0 0
    %2728 = vmatpush1.bf16.msra.mxu0 0
    %2729 = vmatprep.subr.bf16.mxu0 0
    %2730 = vmatpush1.bf16.msra.mxu0 0
    %2731 = vmatprep.subr.bf16.mxu0 0
    %2732 = vmatpush1.bf16.msra.mxu0 0
    %2733 = vmatprep.subr.bf16.mxu0 0
    %2734 = vmatpush1.bf16.msra.mxu0 0
    %2735 = vmatprep.mubr.bf16.mxu0 0
    %2736 = vmatmul.mubr.bf16.gmra.mrb[0].mxu0 %v2698
    %v2737 = vpop.f32.mrb[0].mxu0
    %v2738 = vadd.f32 0.0, %v2737
    %v2739 = vpop.f32.mrb[0].mxu0
    %v2740 = vpop.f32.mrb[0].mxu0
    %v2741 = vpop.f32.mrb[0].mxu0
    %2742 = vdwg.mxu0
    %2744 = vrot.lane.b32.xlu0 %v2440, 120
    %v2745 = vpop.permute.xlu0 %2744
    %2747 = vrot.lane.b32.xlu0 %v2442, 120
    %v2748 = vpop.permute.xlu0 %2747
    %v2750 = vsel %vm357, %v2745, 0
    %v2753 = vsel %vm357, %v2748, 0
    %2755 = vmatprep.subr.bf16.mxu0 0
    %2756 = vmatpush1.bf16.xpose.msra.mxu0 %v2753
    %2757 = vmatprep.subr.bf16.mxu0 0
    %2758 = vmatpush1.bf16.xpose.msra.mxu0 0
    %2759 = vmatprep.subr.bf16.mxu0 0
    %2760 = vmatpush1.bf16.xpose.msra.mxu0 0
    %2761 = vmatprep.subr.bf16.mxu0 0
    %2762 = vmatpush1.bf16.xpose.msra.mxu0 0
    %2763 = vmatprep.subr.bf16.mxu0 0
    %2764 = vmatpush1.bf16.xpose.msra.mxu0 0
    %2765 = vmatprep.subr.bf16.mxu0 0
    %2766 = vmatpush1.bf16.xpose.msra.mxu0 0
    %2767 = vmatprep.subr.bf16.mxu0 0
    %2768 = vmatpush1.bf16.xpose.msra.mxu0 0
    %2769 = vmatprep.subr.bf16.mxu0 0
    %2770 = vmatpush1.bf16.xpose.msra.mxu0 0
    %2771 = vmatprep.subr.bf16.mxu0 0
    %2772 = vmatpush1.bf16.xpose.msra.mxu0 0
    %2773 = vmatprep.subr.bf16.mxu0 0
    %2774 = vmatpush1.bf16.xpose.msra.mxu0 0
    %2775 = vmatprep.subr.bf16.mxu0 0
    %2776 = vmatpush1.bf16.xpose.msra.mxu0 0
    %2777 = vmatprep.subr.bf16.mxu0 0
    %2778 = vmatpush1.bf16.xpose.msra.mxu0 0
    %2779 = vmatprep.subr.bf16.mxu0 0
    %2780 = vmatpush1.bf16.xpose.msra.mxu0 0
    %2781 = vmatprep.subr.bf16.mxu0 0
    %2782 = vmatpush1.bf16.xpose.msra.mxu0 0
    %2783 = vmatprep.subr.bf16.mxu0 0
    %2784 = vmatpush1.bf16.xpose.msra.mxu0 0
    %2785 = vmatprep.subr.bf16.mxu0 0
    %2786 = vmatpush1.bf16.xpose.msra.mxu0 0
    %2787 = vmatprep.mubr.bf16.mxu0 0
    %2788 = vmatmul.mubr.bf16.gmra.mrb[0].mxu0 %v2750
    %v2789 = vpop.f32.mrb[0].mxu0
    %v2790 = vadd.f32 0.0, %v2789
    %v2791 = vpop.f32.mrb[0].mxu0
    %v2792 = vpop.f32.mrb[0].mxu0
    %v2793 = vpop.f32.mrb[0].mxu0
    %2794 = vdwg.mxu0
    %2796 = vrot.lane.b32.xlu0 %v2441, 120
    %v2797 = vpop.permute.xlu0 %2796
    %2799 = vrot.lane.b32.xlu0 %v2443, 120
    %v2800 = vpop.permute.xlu0 %2799
    %v2802 = vsel %vm357, %v2797, 0
    %v2805 = vsel %vm357, %v2800, 0
    %2807 = vmatprep.subr.bf16.mxu0 0
    %2808 = vmatpush1.bf16.xpose.msra.mxu0 %v2805
    %2809 = vmatprep.subr.bf16.mxu0 0
    %2810 = vmatpush1.bf16.xpose.msra.mxu0 0
    %2811 = vmatprep.subr.bf16.mxu0 0
    %2812 = vmatpush1.bf16.xpose.msra.mxu0 0
    %2813 = vmatprep.subr.bf16.mxu0 0
    %2814 = vmatpush1.bf16.xpose.msra.mxu0 0
    %2815 = vmatprep.subr.bf16.mxu0 0
    %2816 = vmatpush1.bf16.xpose.msra.mxu0 0
    %2817 = vmatprep.subr.bf16.mxu0 0
    %2818 = vmatpush1.bf16.xpose.msra.mxu0 0
    %2819 = vmatprep.subr.bf16.mxu0 0
    %2820 = vmatpush1.bf16.xpose.msra.mxu0 0
    %2821 = vmatprep.subr.bf16.mxu0 0
    %2822 = vmatpush1.bf16.xpose.msra.mxu0 0
    %2823 = vmatprep.subr.bf16.mxu0 0
    %2824 = vmatpush1.bf16.xpose.msra.mxu0 0
    %2825 = vmatprep.subr.bf16.mxu0 0
    %2826 = vmatpush1.bf16.xpose.msra.mxu0 0
    %2827 = vmatprep.subr.bf16.mxu0 0
    %2828 = vmatpush1.bf16.xpose.msra.mxu0 0
    %2829 = vmatprep.subr.bf16.mxu0 0
    %2830 = vmatpush1.bf16.xpose.msra.mxu0 0
    %2831 = vmatprep.subr.bf16.mxu0 0
    %2832 = vmatpush1.bf16.xpose.msra.mxu0 0
    %2833 = vmatprep.subr.bf16.mxu0 0
    %2834 = vmatpush1.bf16.xpose.msra.mxu0 0
    %2835 = vmatprep.subr.bf16.mxu0 0
    %2836 = vmatpush1.bf16.xpose.msra.mxu0 0
    %2837 = vmatprep.subr.bf16.mxu0 0
    %2838 = vmatpush1.bf16.xpose.msra.mxu0 0
    %2839 = vmatprep.mubr.bf16.mxu0 0
    %2840 = vmatmul.mubr.bf16.gmra.mrb[0].mxu0 %v2802
    %v2841 = vpop.f32.mrb[0].mxu0
    %v2842 = vadd.f32 0.0, %v2841
    %v2843 = vpop.f32.mrb[0].mxu0
    %v2844 = vpop.f32.mrb[0].mxu0
    %v2845 = vpop.f32.mrb[0].mxu0
    %2846 = vdwg.mxu0
    %v2847 = vmul.f32 %v2790, 0.35355338
    %v2848 = vmul.f32 %v2842, 0.35355338
    %v2849 = vadd.f32 %v2847, %v148
    %v2850 = vadd.f32 %v2848, %v152
    %v2851 = vsel %vm357, %v2849, -inf
    %2852 = vmax.xlane.f32.xlu0 %v2851
    %v2853 = vpop.xlane.xlu0 %2852
    %v2854 = vsel %vm357, %v2850, -inf
    %2855 = vmax.xlane.f32.xlu0 %v2854
    %v2856 = vpop.xlane.xlu0 %2855
    %v2857 = vsub.f32 %v2849, %v2853
    %v2858 = vsub.f32 %v2850, %v2856
    %v2859 = vmul.f32 %v2857, 1.442695
    %v2860 = vpow.pop %v2859
    %v2861 = vmul.f32 %v2858, 1.442695
    %v2862 = vpow.pop %v2861
    %v2864 = vsel %vm357, %v2860, 0
    %v2867 = vsel %vm357, %v2862, 0
    %2869 = vmatprep.subr.mxu0 0.0
    %2870 = vmatpush1.msra.mxu0 1.0
    %2871 = vmatprep.subr.mxu0 0.0
    %2872 = vmatpush1.msra.mxu0 0.0
    %2873 = vmatprep.subr.mxu0 0.0
    %2874 = vmatpush1.msra.mxu0 0.0
    %2875 = vmatprep.subr.mxu0 0.0
    %2876 = vmatpush1.msra.mxu0 0.0
    %2877 = vmatprep.subr.mxu0 0.0
    %2878 = vmatpush1.msra.mxu0 0.0
    %2879 = vmatprep.subr.mxu0 0.0
    %2880 = vmatpush1.msra.mxu0 0.0
    %2881 = vmatprep.subr.mxu0 0.0
    %2882 = vmatpush1.msra.mxu0 0.0
    %2883 = vmatprep.subr.mxu0 0.0
    %2884 = vmatpush1.msra.mxu0 0.0
    %2885 = vmatprep.subr.mxu0 0.0
    %2886 = vmatpush1.msra.mxu0 0.0
    %2887 = vmatprep.subr.mxu0 0.0
    %2888 = vmatpush1.msra.mxu0 0.0
    %2889 = vmatprep.subr.mxu0 0.0
    %2890 = vmatpush1.msra.mxu0 0.0
    %2891 = vmatprep.subr.mxu0 0.0
    %2892 = vmatpush1.msra.mxu0 0.0
    %2893 = vmatprep.subr.mxu0 0.0
    %2894 = vmatpush1.msra.mxu0 0.0
    %2895 = vmatprep.subr.mxu0 0.0
    %2896 = vmatpush1.msra.mxu0 0.0
    %2897 = vmatprep.subr.mxu0 0.0
    %2898 = vmatpush1.msra.mxu0 0.0
    %2899 = vmatprep.subr.mxu0 0.0
    %2900 = vmatpush1.msra.mxu0 0.0
    %2901 = vmatprep.subr.mxu0 0.0
    %2902 = vmatpush1.msra.mxu0 0.0
    %2903 = vmatprep.subr.mxu0 0.0
    %2904 = vmatpush1.msra.mxu0 0.0
    %2905 = vmatprep.subr.mxu0 0.0
    %2906 = vmatpush1.msra.mxu0 0.0
    %2907 = vmatprep.subr.mxu0 0.0
    %2908 = vmatpush1.msra.mxu0 0.0
    %2909 = vmatprep.subr.mxu0 0.0
    %2910 = vmatpush1.msra.mxu0 0.0
    %2911 = vmatprep.subr.mxu0 0.0
    %2912 = vmatpush1.msra.mxu0 0.0
    %2913 = vmatprep.subr.mxu0 0.0
    %2914 = vmatpush1.msra.mxu0 0.0
    %2915 = vmatprep.subr.mxu0 0.0
    %2916 = vmatpush1.msra.mxu0 0.0
    %2917 = vmatprep.subr.mxu0 0.0
    %2918 = vmatpush1.msra.mxu0 0.0
    %2919 = vmatprep.subr.mxu0 0.0
    %2920 = vmatpush1.msra.mxu0 0.0
    %2921 = vmatprep.subr.mxu0 0.0
    %2922 = vmatpush1.msra.mxu0 0.0
    %2923 = vmatprep.subr.mxu0 0.0
    %2924 = vmatpush1.msra.mxu0 0.0
    %2925 = vmatprep.subr.mxu0 0.0
    %2926 = vmatpush1.msra.mxu0 0.0
    %2927 = vmatprep.subr.mxu0 0.0
    %2928 = vmatpush1.msra.mxu0 0.0
    %2929 = vmatprep.subr.mxu0 0.0
    %2930 = vmatpush1.msra.mxu0 0.0
    %2931 = vmatprep.subr.mxu0 0.0
    %2932 = vmatpush1.msra.mxu0 0.0
    %2933 = vmatprep.mubr.f32.mxu0 0.0
    %2934 = vmatmul.mubr.f32.gmra.mrb[0].mxu0 %v2864
    %v2935 = vpop.f32.mrb[0].mxu0
    %v2936 = vadd.f32 0.0, %v2935
    %v2937 = vpop.f32.mrb[0].mxu0
    %2938 = vmatprep.mubr.f32.mxu0 0.0
    %2939 = vmatmul.mubr.f32.gmra.mrb[0].mxu0 %v2867
    %v2940 = vpop.f32.mrb[0].mxu0
    %v2941 = vadd.f32 0.0, %v2940
    %v2942 = vpop.f32.mrb[0].mxu0
    %2943 = vdwg.mxu0
    %v2944 = vrcp.pop %v2936
    %v2945 = vrcp.pop %v2941
    %2947 = vset.pattern.permute.xlu0 0
    %2948 = vperm.xlu0 %2947, %v2944
    %v2949 = vpop.permute.xlu0 %2948
    %2952 = vset.pattern.permute.xlu0 0
    %2953 = vperm.xlu0 %2952, %v2945
    %v2954 = vpop.permute.xlu0 %2953
    %v2956 = vmul.f32 %v2860, %v2949
    %v2957 = vmul.f32 %v2862, %v2954
    %v2958 = vpack.c.bf16 %v2956, %v2956
    %v2959 = vpack.c.bf16 %v2957, %v2957
    %2961 = vrot.lane.b32.xlu0 %v2649, 120
    %v2962 = vpop.permute.xlu0 %2961
    %v2964 = vsel %vm357, %v2958, 0
    %v2967 = vsel %vm568, %v2962, 0
    %2969 = vmatprep.subr.bf16.mxu0 0
    %2970 = vmatpush1.bf16.msra.mxu0 %v2967
    %2971 = vmatprep.subr.bf16.mxu0 0
    %2972 = vmatpush1.bf16.msra.mxu0 0
    %2973 = vmatprep.subr.bf16.mxu0 0
    %2974 = vmatpush1.bf16.msra.mxu0 0
    %2975 = vmatprep.subr.bf16.mxu0 0
    %2976 = vmatpush1.bf16.msra.mxu0 0
    %2977 = vmatprep.subr.bf16.mxu0 0
    %2978 = vmatpush1.bf16.msra.mxu0 0
    %2979 = vmatprep.subr.bf16.mxu0 0
    %2980 = vmatpush1.bf16.msra.mxu0 0
    %2981 = vmatprep.subr.bf16.mxu0 0
    %2982 = vmatpush1.bf16.msra.mxu0 0
    %2983 = vmatprep.subr.bf16.mxu0 0
    %2984 = vmatpush1.bf16.msra.mxu0 0
    %2985 = vmatprep.subr.bf16.mxu0 0
    %2986 = vmatpush1.bf16.msra.mxu0 0
    %2987 = vmatprep.subr.bf16.mxu0 0
    %2988 = vmatpush1.bf16.msra.mxu0 0
    %2989 = vmatprep.subr.bf16.mxu0 0
    %2990 = vmatpush1.bf16.msra.mxu0 0
    %2991 = vmatprep.subr.bf16.mxu0 0
    %2992 = vmatpush1.bf16.msra.mxu0 0
    %2993 = vmatprep.subr.bf16.mxu0 0
    %2994 = vmatpush1.bf16.msra.mxu0 0
    %2995 = vmatprep.subr.bf16.mxu0 0
    %2996 = vmatpush1.bf16.msra.mxu0 0
    %2997 = vmatprep.subr.bf16.mxu0 0
    %2998 = vmatpush1.bf16.msra.mxu0 0
    %2999 = vmatprep.subr.bf16.mxu0 0
    %3000 = vmatpush1.bf16.msra.mxu0 0
    %3001 = vmatprep.mubr.bf16.mxu0 0
    %3002 = vmatmul.mubr.bf16.gmra.mrb[0].mxu0 %v2964
    %v3003 = vpop.f32.mrb[0].mxu0
    %v3004 = vadd.f32 0.0, %v3003
    %v3005 = vpop.f32.mrb[0].mxu0
    %v3006 = vpop.f32.mrb[0].mxu0
    %v3007 = vpop.f32.mrb[0].mxu0
    %3008 = vdwg.mxu0
    %3010 = vrot.lane.b32.xlu0 %v2650, 120
    %v3011 = vpop.permute.xlu0 %3010
    %v3013 = vsel %vm357, %v2959, 0
    %v3016 = vsel %vm568, %v3011, 0
    %3018 = vmatprep.subr.bf16.mxu0 0
    %3019 = vmatpush1.bf16.msra.mxu0 %v3016
    %3020 = vmatprep.subr.bf16.mxu0 0
    %3021 = vmatpush1.bf16.msra.mxu0 0
    %3022 = vmatprep.subr.bf16.mxu0 0
    %3023 = vmatpush1.bf16.msra.mxu0 0
    %3024 = vmatprep.subr.bf16.mxu0 0
    %3025 = vmatpush1.bf16.msra.mxu0 0
    %3026 = vmatprep.subr.bf16.mxu0 0
    %3027 = vmatpush1.bf16.msra.mxu0 0
    %3028 = vmatprep.subr.bf16.mxu0 0
    %3029 = vmatpush1.bf16.msra.mxu0 0
    %3030 = vmatprep.subr.bf16.mxu0 0
    %3031 = vmatpush1.bf16.msra.mxu0 0
    %3032 = vmatprep.subr.bf16.mxu0 0
    %3033 = vmatpush1.bf16.msra.mxu0 0
    %3034 = vmatprep.subr.bf16.mxu0 0
    %3035 = vmatpush1.bf16.msra.mxu0 0
    %3036 = vmatprep.subr.bf16.mxu0 0
    %3037 = vmatpush1.bf16.msra.mxu0 0
    %3038 = vmatprep.subr.bf16.mxu0 0
    %3039 = vmatpush1.bf16.msra.mxu0 0
    %3040 = vmatprep.subr.bf16.mxu0 0
    %3041 = vmatpush1.bf16.msra.mxu0 0
    %3042 = vmatprep.subr.bf16.mxu0 0
    %3043 = vmatpush1.bf16.msra.mxu0 0
    %3044 = vmatprep.subr.bf16.mxu0 0
    %3045 = vmatpush1.bf16.msra.mxu0 0
    %3046 = vmatprep.subr.bf16.mxu0 0
    %3047 = vmatpush1.bf16.msra.mxu0 0
    %3048 = vmatprep.subr.bf16.mxu0 0
    %3049 = vmatpush1.bf16.msra.mxu0 0
    %3050 = vmatprep.mubr.bf16.mxu0 0
    %3051 = vmatmul.mubr.bf16.gmra.mrb[0].mxu0 %v3013
    %v3052 = vpop.f32.mrb[0].mxu0
    %v3053 = vadd.f32 0.0, %v3052
    %v3054 = vpop.f32.mrb[0].mxu0
    %v3055 = vpop.f32.mrb[0].mxu0
    %v3056 = vpop.f32.mrb[0].mxu0
    %3057 = vdwg.mxu0
    %3058 = vrot.lane.b32.xlu0 %v2440, 112
    %v3059 = vpop.permute.xlu0 %3058
    %3060 = vrot.lane.b32.xlu0 %v2442, 112
    %v3061 = vpop.permute.xlu0 %3060
    %v3063 = vsel %vm357, %v3059, 0
    %v3066 = vsel %vm357, %v3061, 0
    %3068 = vmatprep.subr.bf16.mxu0 0
    %3069 = vmatpush1.bf16.xpose.msra.mxu0 %v3066
    %3070 = vmatprep.subr.bf16.mxu0 0
    %3071 = vmatpush1.bf16.xpose.msra.mxu0 0
    %3072 = vmatprep.subr.bf16.mxu0 0
    %3073 = vmatpush1.bf16.xpose.msra.mxu0 0
    %3074 = vmatprep.subr.bf16.mxu0 0
    %3075 = vmatpush1.bf16.xpose.msra.mxu0 0
    %3076 = vmatprep.subr.bf16.mxu0 0
    %3077 = vmatpush1.bf16.xpose.msra.mxu0 0
    %3078 = vmatprep.subr.bf16.mxu0 0
    %3079 = vmatpush1.bf16.xpose.msra.mxu0 0
    %3080 = vmatprep.subr.bf16.mxu0 0
    %3081 = vmatpush1.bf16.xpose.msra.mxu0 0
    %3082 = vmatprep.subr.bf16.mxu0 0
    %3083 = vmatpush1.bf16.xpose.msra.mxu0 0
    %3084 = vmatprep.subr.bf16.mxu0 0
    %3085 = vmatpush1.bf16.xpose.msra.mxu0 0
    %3086 = vmatprep.subr.bf16.mxu0 0
    %3087 = vmatpush1.bf16.xpose.msra.mxu0 0
    %3088 = vmatprep.subr.bf16.mxu0 0
    %3089 = vmatpush1.bf16.xpose.msra.mxu0 0
    %3090 = vmatprep.subr.bf16.mxu0 0
    %3091 = vmatpush1.bf16.xpose.msra.mxu0 0
    %3092 = vmatprep.subr.bf16.mxu0 0
    %3093 = vmatpush1.bf16.xpose.msra.mxu0 0
    %3094 = vmatprep.subr.bf16.mxu0 0
    %3095 = vmatpush1.bf16.xpose.msra.mxu0 0
    %3096 = vmatprep.subr.bf16.mxu0 0
    %3097 = vmatpush1.bf16.xpose.msra.mxu0 0
    %3098 = vmatprep.subr.bf16.mxu0 0
    %3099 = vmatpush1.bf16.xpose.msra.mxu0 0
    %3100 = vmatprep.mubr.bf16.mxu0 0
    %3101 = vmatmul.mubr.bf16.gmra.mrb[0].mxu0 %v3063
    %v3102 = vpop.f32.mrb[0].mxu0
    %v3103 = vadd.f32 0.0, %v3102
    %v3104 = vpop.f32.mrb[0].mxu0
    %v3105 = vpop.f32.mrb[0].mxu0
    %v3106 = vpop.f32.mrb[0].mxu0
    %3107 = vdwg.mxu0
    %3108 = vrot.lane.b32.xlu0 %v2441, 112
    %v3109 = vpop.permute.xlu0 %3108
    %3110 = vrot.lane.b32.xlu0 %v2443, 112
    %v3111 = vpop.permute.xlu0 %3110
    %v3113 = vsel %vm357, %v3109, 0
    %v3116 = vsel %vm357, %v3111, 0
    %3118 = vmatprep.subr.bf16.mxu0 0
    %3119 = vmatpush1.bf16.xpose.msra.mxu0 %v3116
    %3120 = vmatprep.subr.bf16.mxu0 0
    %3121 = vmatpush1.bf16.xpose.msra.mxu0 0
    %3122 = vmatprep.subr.bf16.mxu0 0
    %3123 = vmatpush1.bf16.xpose.msra.mxu0 0
    %3124 = vmatprep.subr.bf16.mxu0 0
    %3125 = vmatpush1.bf16.xpose.msra.mxu0 0
    %3126 = vmatprep.subr.bf16.mxu0 0
    %3127 = vmatpush1.bf16.xpose.msra.mxu0 0
    %3128 = vmatprep.subr.bf16.mxu0 0
    %3129 = vmatpush1.bf16.xpose.msra.mxu0 0
    %3130 = vmatprep.subr.bf16.mxu0 0
    %3131 = vmatpush1.bf16.xpose.msra.mxu0 0
    %3132 = vmatprep.subr.bf16.mxu0 0
    %3133 = vmatpush1.bf16.xpose.msra.mxu0 0
    %3134 = vmatprep.subr.bf16.mxu0 0
    %3135 = vmatpush1.bf16.xpose.msra.mxu0 0
    %3136 = vmatprep.subr.bf16.mxu0 0
    %3137 = vmatpush1.bf16.xpose.msra.mxu0 0
    %3138 = vmatprep.subr.bf16.mxu0 0
    %3139 = vmatpush1.bf16.xpose.msra.mxu0 0
    %3140 = vmatprep.subr.bf16.mxu0 0
    %3141 = vmatpush1.bf16.xpose.msra.mxu0 0
    %3142 = vmatprep.subr.bf16.mxu0 0
    %3143 = vmatpush1.bf16.xpose.msra.mxu0 0
    %3144 = vmatprep.subr.bf16.mxu0 0
    %3145 = vmatpush1.bf16.xpose.msra.mxu0 0
    %3146 = vmatprep.subr.bf16.mxu0 0
    %3147 = vmatpush1.bf16.xpose.msra.mxu0 0
    %3148 = vmatprep.subr.bf16.mxu0 0
    %3149 = vmatpush1.bf16.xpose.msra.mxu0 0
    %3150 = vmatprep.mubr.bf16.mxu0 0
    %3151 = vmatmul.mubr.bf16.gmra.mrb[0].mxu0 %v3113
    %v3152 = vpop.f32.mrb[0].mxu0
    %v3153 = vadd.f32 0.0, %v3152
    %v3154 = vpop.f32.mrb[0].mxu0
    %v3155 = vpop.f32.mrb[0].mxu0
    %v3156 = vpop.f32.mrb[0].mxu0
    %3157 = vdwg.mxu0
    %v3158 = vmul.f32 %v3103, 0.35355338
    %v3159 = vmul.f32 %v3153, 0.35355338
    %v3160 = vadd.f32 %v3158, %v148
    %v3161 = vadd.f32 %v3159, %v152
    %v3162 = vsel %vm357, %v3160, -inf
    %3163 = vmax.xlane.f32.xlu0 %v3162
    %v3164 = vpop.xlane.xlu0 %3163
    %v3165 = vsel %vm357, %v3161, -inf
    %3166 = vmax.xlane.f32.xlu0 %v3165
    %v3167 = vpop.xlane.xlu0 %3166
    %v3168 = vsub.f32 %v3160, %v3164
    %v3169 = vsub.f32 %v3161, %v3167
    %v3170 = vmul.f32 %v3168, 1.442695
    %v3171 = vpow.pop %v3170
    %v3172 = vmul.f32 %v3169, 1.442695
    %v3173 = vpow.pop %v3172
    %v3175 = vsel %vm357, %v3171, 0
    %v3178 = vsel %vm357, %v3173, 0
    %3180 = vmatprep.subr.mxu0 0.0
    %3181 = vmatpush1.msra.mxu0 1.0
    %3182 = vmatprep.subr.mxu0 0.0
    %3183 = vmatpush1.msra.mxu0 0.0
    %3184 = vmatprep.subr.mxu0 0.0
    %3185 = vmatpush1.msra.mxu0 0.0
    %3186 = vmatprep.subr.mxu0 0.0
    %3187 = vmatpush1.msra.mxu0 0.0
    %3188 = vmatprep.subr.mxu0 0.0
    %3189 = vmatpush1.msra.mxu0 0.0
    %3190 = vmatprep.subr.mxu0 0.0
    %3191 = vmatpush1.msra.mxu0 0.0
    %3192 = vmatprep.subr.mxu0 0.0
    %3193 = vmatpush1.msra.mxu0 0.0
    %3194 = vmatprep.subr.mxu0 0.0
    %3195 = vmatpush1.msra.mxu0 0.0
    %3196 = vmatprep.subr.mxu0 0.0
    %3197 = vmatpush1.msra.mxu0 0.0
    %3198 = vmatprep.subr.mxu0 0.0
    %3199 = vmatpush1.msra.mxu0 0.0
    %3200 = vmatprep.subr.mxu0 0.0
    %3201 = vmatpush1.msra.mxu0 0.0
    %3202 = vmatprep.subr.mxu0 0.0
    %3203 = vmatpush1.msra.mxu0 0.0
    %3204 = vmatprep.subr.mxu0 0.0
    %3205 = vmatpush1.msra.mxu0 0.0
    %3206 = vmatprep.subr.mxu0 0.0
    %3207 = vmatpush1.msra.mxu0 0.0
    %3208 = vmatprep.subr.mxu0 0.0
    %3209 = vmatpush1.msra.mxu0 0.0
    %3210 = vmatprep.subr.mxu0 0.0
    %3211 = vmatpush1.msra.mxu0 0.0
    %3212 = vmatprep.subr.mxu0 0.0
    %3213 = vmatpush1.msra.mxu0 0.0
    %3214 = vmatprep.subr.mxu0 0.0
    %3215 = vmatpush1.msra.mxu0 0.0
    %3216 = vmatprep.subr.mxu0 0.0
    %3217 = vmatpush1.msra.mxu0 0.0
    %3218 = vmatprep.subr.mxu0 0.0
    %3219 = vmatpush1.msra.mxu0 0.0
    %3220 = vmatprep.subr.mxu0 0.0
    %3221 = vmatpush1.msra.mxu0 0.0
    %3222 = vmatprep.subr.mxu0 0.0
    %3223 = vmatpush1.msra.mxu0 0.0
    %3224 = vmatprep.subr.mxu0 0.0
    %3225 = vmatpush1.msra.mxu0 0.0
    %3226 = vmatprep.subr.mxu0 0.0
    %3227 = vmatpush1.msra.mxu0 0.0
    %3228 = vmatprep.subr.mxu0 0.0
    %3229 = vmatpush1.msra.mxu0 0.0
    %3230 = vmatprep.subr.mxu0 0.0
    %3231 = vmatpush1.msra.mxu0 0.0
    %3232 = vmatprep.subr.mxu0 0.0
    %3233 = vmatpush1.msra.mxu0 0.0
    %3234 = vmatprep.subr.mxu0 0.0
    %3235 = vmatpush1.msra.mxu0 0.0
    %3236 = vmatprep.subr.mxu0 0.0
    %3237 = vmatpush1.msra.mxu0 0.0
    %3238 = vmatprep.subr.mxu0 0.0
    %3239 = vmatpush1.msra.mxu0 0.0
    %3240 = vmatprep.subr.mxu0 0.0
    %3241 = vmatpush1.msra.mxu0 0.0
    %3242 = vmatprep.subr.mxu0 0.0
    %3243 = vmatpush1.msra.mxu0 0.0
    %3244 = vmatprep.mubr.f32.mxu0 0.0
    %3245 = vmatmul.mubr.f32.gmra.mrb[0].mxu0 %v3175
    %v3246 = vpop.f32.mrb[0].mxu0
    %v3247 = vadd.f32 0.0, %v3246
    %v3248 = vpop.f32.mrb[0].mxu0
    %3249 = vmatprep.mubr.f32.mxu0 0.0
    %3250 = vmatmul.mubr.f32.gmra.mrb[0].mxu0 %v3178
    %v3251 = vpop.f32.mrb[0].mxu0
    %v3252 = vadd.f32 0.0, %v3251
    %v3253 = vpop.f32.mrb[0].mxu0
    %3254 = vdwg.mxu0
    %v3255 = vrcp.pop %v3247
    %v3256 = vrcp.pop %v3252
    %3258 = vset.pattern.permute.xlu0 0
    %3259 = vperm.xlu0 %3258, %v3255
    %v3260 = vpop.permute.xlu0 %3259
    %3263 = vset.pattern.permute.xlu0 0
    %3264 = vperm.xlu0 %3263, %v3256
    %v3265 = vpop.permute.xlu0 %3264
    %v3267 = vmul.f32 %v3171, %v3260
    %v3268 = vmul.f32 %v3173, %v3265
    %v3269 = vpack.c.bf16 %v3267, %v3267
    %v3270 = vpack.c.bf16 %v3268, %v3268
    %3271 = vrot.lane.b32.xlu0 %v2649, 112
    %v3272 = vpop.permute.xlu0 %3271
    %v3274 = vsel %vm357, %v3269, 0
    %v3277 = vsel %vm568, %v3272, 0
    %3279 = vmatprep.subr.bf16.mxu0 0
    %3280 = vmatpush1.bf16.msra.mxu0 %v3277
    %3281 = vmatprep.subr.bf16.mxu0 0
    %3282 = vmatpush1.bf16.msra.mxu0 0
    %3283 = vmatprep.subr.bf16.mxu0 0
    %3284 = vmatpush1.bf16.msra.mxu0 0
    %3285 = vmatprep.subr.bf16.mxu0 0
    %3286 = vmatpush1.bf16.msra.mxu0 0
    %3287 = vmatprep.subr.bf16.mxu0 0
    %3288 = vmatpush1.bf16.msra.mxu0 0
    %3289 = vmatprep.subr.bf16.mxu0 0
    %3290 = vmatpush1.bf16.msra.mxu0 0
    %3291 = vmatprep.subr.bf16.mxu0 0
    %3292 = vmatpush1.bf16.msra.mxu0 0
    %3293 = vmatprep.subr.bf16.mxu0 0
    %3294 = vmatpush1.bf16.msra.mxu0 0
    %3295 = vmatprep.subr.bf16.mxu0 0
    %3296 = vmatpush1.bf16.msra.mxu0 0
    %3297 = vmatprep.subr.bf16.mxu0 0
    %3298 = vmatpush1.bf16.msra.mxu0 0
    %3299 = vmatprep.subr.bf16.mxu0 0
    %3300 = vmatpush1.bf16.msra.mxu0 0
    %3301 = vmatprep.subr.bf16.mxu0 0
    %3302 = vmatpush1.bf16.msra.mxu0 0
    %3303 = vmatprep.subr.bf16.mxu0 0
    %3304 = vmatpush1.bf16.msra.mxu0 0
    %3305 = vmatprep.subr.bf16.mxu0 0
    %3306 = vmatpush1.bf16.msra.mxu0 0
    %3307 = vmatprep.subr.bf16.mxu0 0
    %3308 = vmatpush1.bf16.msra.mxu0 0
    %3309 = vmatprep.subr.bf16.mxu0 0
    %3310 = vmatpush1.bf16.msra.mxu0 0
    %3311 = vmatprep.mubr.bf16.mxu0 0
    %3312 = vmatmul.mubr.bf16.gmra.mrb[0].mxu0 %v3274
    %v3313 = vpop.f32.mrb[0].mxu0
    %v3314 = vadd.f32 0.0, %v3313
    %v3315 = vpop.f32.mrb[0].mxu0
    %v3316 = vpop.f32.mrb[0].mxu0
    %v3317 = vpop.f32.mrb[0].mxu0
    %3318 = vdwg.mxu0
    %3319 = vrot.lane.b32.xlu0 %v2650, 112
    %v3320 = vpop.permute.xlu0 %3319
    %v3322 = vsel %vm357, %v3270, 0
    %v3325 = vsel %vm568, %v3320, 0
    %3327 = vmatprep.subr.bf16.mxu0 0
    %3328 = vmatpush1.bf16.msra.mxu0 %v3325
    %3329 = vmatprep.subr.bf16.mxu0 0
    %3330 = vmatpush1.bf16.msra.mxu0 0
    %3331 = vmatprep.subr.bf16.mxu0 0
    %3332 = vmatpush1.bf16.msra.mxu0 0
    %3333 = vmatprep.subr.bf16.mxu0 0
    %3334 = vmatpush1.bf16.msra.mxu0 0
    %3335 = vmatprep.subr.bf16.mxu0 0
    %3336 = vmatpush1.bf16.msra.mxu0 0
    %3337 = vmatprep.subr.bf16.mxu0 0
    %3338 = vmatpush1.bf16.msra.mxu0 0
    %3339 = vmatprep.subr.bf16.mxu0 0
    %3340 = vmatpush1.bf16.msra.mxu0 0
    %3341 = vmatprep.subr.bf16.mxu0 0
    %3342 = vmatpush1.bf16.msra.mxu0 0
    %3343 = vmatprep.subr.bf16.mxu0 0
    %3344 = vmatpush1.bf16.msra.mxu0 0
    %3345 = vmatprep.subr.bf16.mxu0 0
    %3346 = vmatpush1.bf16.msra.mxu0 0
    %3347 = vmatprep.subr.bf16.mxu0 0
    %3348 = vmatpush1.bf16.msra.mxu0 0
    %3349 = vmatprep.subr.bf16.mxu0 0
    %3350 = vmatpush1.bf16.msra.mxu0 0
    %3351 = vmatprep.subr.bf16.mxu0 0
    %3352 = vmatpush1.bf16.msra.mxu0 0
    %3353 = vmatprep.subr.bf16.mxu0 0
    %3354 = vmatpush1.bf16.msra.mxu0 0
    %3355 = vmatprep.subr.bf16.mxu0 0
    %3356 = vmatpush1.bf16.msra.mxu0 0
    %3357 = vmatprep.subr.bf16.mxu0 0
    %3358 = vmatpush1.bf16.msra.mxu0 0
    %3359 = vmatprep.mubr.bf16.mxu0 0
    %3360 = vmatmul.mubr.bf16.gmra.mrb[0].mxu0 %v3322
    %v3361 = vpop.f32.mrb[0].mxu0
    %v3362 = vadd.f32 0.0, %v3361
    %v3363 = vpop.f32.mrb[0].mxu0
    %v3364 = vpop.f32.mrb[0].mxu0
    %v3365 = vpop.f32.mrb[0].mxu0
    %3366 = vdwg.mxu0
    %3367 = vrot.lane.b32.xlu0 %v2440, 104
    %v3368 = vpop.permute.xlu0 %3367
    %3369 = vrot.lane.b32.xlu0 %v2442, 104
    %v3370 = vpop.permute.xlu0 %3369
    %v3372 = vsel %vm357, %v3368, 0
    %v3375 = vsel %vm357, %v3370, 0
    %3377 = vmatprep.subr.bf16.mxu0 0
    %3378 = vmatpush1.bf16.xpose.msra.mxu0 %v3375
    %3379 = vmatprep.subr.bf16.mxu0 0
    %3380 = vmatpush1.bf16.xpose.msra.mxu0 0
    %3381 = vmatprep.subr.bf16.mxu0 0
    %3382 = vmatpush1.bf16.xpose.msra.mxu0 0
    %3383 = vmatprep.subr.bf16.mxu0 0
    %3384 = vmatpush1.bf16.xpose.msra.mxu0 0
    %3385 = vmatprep.subr.bf16.mxu0 0
    %3386 = vmatpush1.bf16.xpose.msra.mxu0 0
    %3387 = vmatprep.subr.bf16.mxu0 0
    %3388 = vmatpush1.bf16.xpose.msra.mxu0 0
    %3389 = vmatprep.subr.bf16.mxu0 0
    %3390 = vmatpush1.bf16.xpose.msra.mxu0 0
    %3391 = vmatprep.subr.bf16.mxu0 0
    %3392 = vmatpush1.bf16.xpose.msra.mxu0 0
    %3393 = vmatprep.subr.bf16.mxu0 0
    %3394 = vmatpush1.bf16.xpose.msra.mxu0 0
    %3395 = vmatprep.subr.bf16.mxu0 0
    %3396 = vmatpush1.bf16.xpose.msra.mxu0 0
    %3397 = vmatprep.subr.bf16.mxu0 0
    %3398 = vmatpush1.bf16.xpose.msra.mxu0 0
    %3399 = vmatprep.subr.bf16.mxu0 0
    %3400 = vmatpush1.bf16.xpose.msra.mxu0 0
    %3401 = vmatprep.subr.bf16.mxu0 0
    %3402 = vmatpush1.bf16.xpose.msra.mxu0 0
    %3403 = vmatprep.subr.bf16.mxu0 0
    %3404 = vmatpush1.bf16.xpose.msra.mxu0 0
    %3405 = vmatprep.subr.bf16.mxu0 0
    %3406 = vmatpush1.bf16.xpose.msra.mxu0 0
    %3407 = vmatprep.subr.bf16.mxu0 0
    %3408 = vmatpush1.bf16.xpose.msra.mxu0 0
    %3409 = vmatprep.mubr.bf16.mxu0 0
    %3410 = vmatmul.mubr.bf16.gmra.mrb[0].mxu0 %v3372
    %v3411 = vpop.f32.mrb[0].mxu0
    %v3412 = vadd.f32 0.0, %v3411
    %v3413 = vpop.f32.mrb[0].mxu0
    %v3414 = vpop.f32.mrb[0].mxu0
    %v3415 = vpop.f32.mrb[0].mxu0
    %3416 = vdwg.mxu0
    %3417 = vrot.lane.b32.xlu0 %v2441, 104
    %v3418 = vpop.permute.xlu0 %3417
    %3419 = vrot.lane.b32.xlu0 %v2443, 104
    %v3420 = vpop.permute.xlu0 %3419
    %v3422 = vsel %vm357, %v3418, 0
    %v3425 = vsel %vm357, %v3420, 0
    %3427 = vmatprep.subr.bf16.mxu0 0
    %3428 = vmatpush1.bf16.xpose.msra.mxu0 %v3425
    %3429 = vmatprep.subr.bf16.mxu0 0
    %3430 = vmatpush1.bf16.xpose.msra.mxu0 0
    %3431 = vmatprep.subr.bf16.mxu0 0
    %3432 = vmatpush1.bf16.xpose.msra.mxu0 0
    %3433 = vmatprep.subr.bf16.mxu0 0
    %3434 = vmatpush1.bf16.xpose.msra.mxu0 0
    %3435 = vmatprep.subr.bf16.mxu0 0
    %3436 = vmatpush1.bf16.xpose.msra.mxu0 0
    %3437 = vmatprep.subr.bf16.mxu0 0
    %3438 = vmatpush1.bf16.xpose.msra.mxu0 0
    %3439 = vmatprep.subr.bf16.mxu0 0
    %3440 = vmatpush1.bf16.xpose.msra.mxu0 0
    %3441 = vmatprep.subr.bf16.mxu0 0
    %3442 = vmatpush1.bf16.xpose.msra.mxu0 0
    %3443 = vmatprep.subr.bf16.mxu0 0
    %3444 = vmatpush1.bf16.xpose.msra.mxu0 0
    %3445 = vmatprep.subr.bf16.mxu0 0
    %3446 = vmatpush1.bf16.xpose.msra.mxu0 0
    %3447 = vmatprep.subr.bf16.mxu0 0
    %3448 = vmatpush1.bf16.xpose.msra.mxu0 0
    %3449 = vmatprep.subr.bf16.mxu0 0
    %3450 = vmatpush1.bf16.xpose.msra.mxu0 0
    %3451 = vmatprep.subr.bf16.mxu0 0
    %3452 = vmatpush1.bf16.xpose.msra.mxu0 0
    %3453 = vmatprep.subr.bf16.mxu0 0
    %3454 = vmatpush1.bf16.xpose.msra.mxu0 0
    %3455 = vmatprep.subr.bf16.mxu0 0
    %3456 = vmatpush1.bf16.xpose.msra.mxu0 0
    %3457 = vmatprep.subr.bf16.mxu0 0
    %3458 = vmatpush1.bf16.xpose.msra.mxu0 0
    %3459 = vmatprep.mubr.bf16.mxu0 0
    %3460 = vmatmul.mubr.bf16.gmra.mrb[0].mxu0 %v3422
    %v3461 = vpop.f32.mrb[0].mxu0
    %v3462 = vadd.f32 0.0, %v3461
    %v3463 = vpop.f32.mrb[0].mxu0
    %v3464 = vpop.f32.mrb[0].mxu0
    %v3465 = vpop.f32.mrb[0].mxu0
    %3466 = vdwg.mxu0
    %v3467 = vmul.f32 %v3412, 0.35355338
    %v3468 = vmul.f32 %v3462, 0.35355338
    %v3469 = vadd.f32 %v3467, %v148
    %v3470 = vadd.f32 %v3468, %v152
    %v3471 = vsel %vm357, %v3469, -inf
    %3472 = vmax.xlane.f32.xlu0 %v3471
    %v3473 = vpop.xlane.xlu0 %3472
    %v3474 = vsel %vm357, %v3470, -inf
    %3475 = vmax.xlane.f32.xlu0 %v3474
    %v3476 = vpop.xlane.xlu0 %3475
    %v3477 = vsub.f32 %v3469, %v3473
    %v3478 = vsub.f32 %v3470, %v3476
    %v3479 = vmul.f32 %v3477, 1.442695
    %v3480 = vpow.pop %v3479
    %v3481 = vmul.f32 %v3478, 1.442695
    %v3482 = vpow.pop %v3481
    %v3484 = vsel %vm357, %v3480, 0
    %v3487 = vsel %vm357, %v3482, 0
    %3489 = vmatprep.subr.mxu0 0.0
    %3490 = vmatpush1.msra.mxu0 1.0
    %3491 = vmatprep.subr.mxu0 0.0
    %3492 = vmatpush1.msra.mxu0 0.0
    %3493 = vmatprep.subr.mxu0 0.0
    %3494 = vmatpush1.msra.mxu0 0.0
    %3495 = vmatprep.subr.mxu0 0.0
    %3496 = vmatpush1.msra.mxu0 0.0
    %3497 = vmatprep.subr.mxu0 0.0
    %3498 = vmatpush1.msra.mxu0 0.0
    %3499 = vmatprep.subr.mxu0 0.0
    %3500 = vmatpush1.msra.mxu0 0.0
    %3501 = vmatprep.subr.mxu0 0.0
    %3502 = vmatpush1.msra.mxu0 0.0
    %3503 = vmatprep.subr.mxu0 0.0
    %3504 = vmatpush1.msra.mxu0 0.0
    %3505 = vmatprep.subr.mxu0 0.0
    %3506 = vmatpush1.msra.mxu0 0.0
    %3507 = vmatprep.subr.mxu0 0.0
    %3508 = vmatpush1.msra.mxu0 0.0
    %3509 = vmatprep.subr.mxu0 0.0
    %3510 = vmatpush1.msra.mxu0 0.0
    %3511 = vmatprep.subr.mxu0 0.0
    %3512 = vmatpush1.msra.mxu0 0.0
    %3513 = vmatprep.subr.mxu0 0.0
    %3514 = vmatpush1.msra.mxu0 0.0
    %3515 = vmatprep.subr.mxu0 0.0
    %3516 = vmatpush1.msra.mxu0 0.0
    %3517 = vmatprep.subr.mxu0 0.0
    %3518 = vmatpush1.msra.mxu0 0.0
    %3519 = vmatprep.subr.mxu0 0.0
    %3520 = vmatpush1.msra.mxu0 0.0
    %3521 = vmatprep.subr.mxu0 0.0
    %3522 = vmatpush1.msra.mxu0 0.0
    %3523 = vmatprep.subr.mxu0 0.0
    %3524 = vmatpush1.msra.mxu0 0.0
    %3525 = vmatprep.subr.mxu0 0.0
    %3526 = vmatpush1.msra.mxu0 0.0
    %3527 = vmatprep.subr.mxu0 0.0
    %3528 = vmatpush1.msra.mxu0 0.0
    %3529 = vmatprep.subr.mxu0 0.0
    %3530 = vmatpush1.msra.mxu0 0.0
    %3531 = vmatprep.subr.mxu0 0.0
    %3532 = vmatpush1.msra.mxu0 0.0
    %3533 = vmatprep.subr.mxu0 0.0
    %3534 = vmatpush1.msra.mxu0 0.0
    %3535 = vmatprep.subr.mxu0 0.0
    %3536 = vmatpush1.msra.mxu0 0.0
    %3537 = vmatprep.subr.mxu0 0.0
    %3538 = vmatpush1.msra.mxu0 0.0
    %3539 = vmatprep.subr.mxu0 0.0
    %3540 = vmatpush1.msra.mxu0 0.0
    %3541 = vmatprep.subr.mxu0 0.0
    %3542 = vmatpush1.msra.mxu0 0.0
    %3543 = vmatprep.subr.mxu0 0.0
    %3544 = vmatpush1.msra.mxu0 0.0
    %3545 = vmatprep.subr.mxu0 0.0
    %3546 = vmatpush1.msra.mxu0 0.0
    %3547 = vmatprep.subr.mxu0 0.0
    %3548 = vmatpush1.msra.mxu0 0.0
    %3549 = vmatprep.subr.mxu0 0.0
    %3550 = vmatpush1.msra.mxu0 0.0
    %3551 = vmatprep.subr.mxu0 0.0
    %3552 = vmatpush1.msra.mxu0 0.0
    %3553 = vmatprep.mubr.f32.mxu0 0.0
    %3554 = vmatmul.mubr.f32.gmra.mrb[0].mxu0 %v3484
    %v3555 = vpop.f32.mrb[0].mxu0
    %v3556 = vadd.f32 0.0, %v3555
    %v3557 = vpop.f32.mrb[0].mxu0
    %3558 = vmatprep.mubr.f32.mxu0 0.0
    %3559 = vmatmul.mubr.f32.gmra.mrb[0].mxu0 %v3487
    %v3560 = vpop.f32.mrb[0].mxu0
    %v3561 = vadd.f32 0.0, %v3560
    %v3562 = vpop.f32.mrb[0].mxu0
    %3563 = vdwg.mxu0
    %v3564 = vrcp.pop %v3556
    %v3565 = vrcp.pop %v3561
    %3567 = vset.pattern.permute.xlu0 0
    %3568 = vperm.xlu0 %3567, %v3564
    %v3569 = vpop.permute.xlu0 %3568
    %3572 = vset.pattern.permute.xlu0 0
    %3573 = vperm.xlu0 %3572, %v3565
    %v3574 = vpop.permute.xlu0 %3573
    %v3576 = vmul.f32 %v3480, %v3569
    %v3577 = vmul.f32 %v3482, %v3574
    %v3578 = vpack.c.bf16 %v3576, %v3576
    %v3579 = vpack.c.bf16 %v3577, %v3577
    %3580 = vrot.lane.b32.xlu0 %v2649, 104
    %v3581 = vpop.permute.xlu0 %3580
    %v3583 = vsel %vm357, %v3578, 0
    %v3586 = vsel %vm568, %v3581, 0
    %3588 = vmatprep.subr.bf16.mxu0 0
    %3589 = vmatpush1.bf16.msra.mxu0 %v3586
    %3590 = vmatprep.subr.bf16.mxu0 0
    %3591 = vmatpush1.bf16.msra.mxu0 0
    %3592 = vmatprep.subr.bf16.mxu0 0
    %3593 = vmatpush1.bf16.msra.mxu0 0
    %3594 = vmatprep.subr.bf16.mxu0 0
    %3595 = vmatpush1.bf16.msra.mxu0 0
    %3596 = vmatprep.subr.bf16.mxu0 0
    %3597 = vmatpush1.bf16.msra.mxu0 0
    %3598 = vmatprep.subr.bf16.mxu0 0
    %3599 = vmatpush1.bf16.msra.mxu0 0
    %3600 = vmatprep.subr.bf16.mxu0 0
    %3601 = vmatpush1.bf16.msra.mxu0 0
    %3602 = vmatprep.subr.bf16.mxu0 0
    %3603 = vmatpush1.bf16.msra.mxu0 0
    %3604 = vmatprep.subr.bf16.mxu0 0
    %3605 = vmatpush1.bf16.msra.mxu0 0
    %3606 = vmatprep.subr.bf16.mxu0 0
    %3607 = vmatpush1.bf16.msra.mxu0 0
    %3608 = vmatprep.subr.bf16.mxu0 0
    %3609 = vmatpush1.bf16.msra.mxu0 0
    %3610 = vmatprep.subr.bf16.mxu0 0
    %3611 = vmatpush1.bf16.msra.mxu0 0
    %3612 = vmatprep.subr.bf16.mxu0 0
    %3613 = vmatpush1.bf16.msra.mxu0 0
    %3614 = vmatprep.subr.bf16.mxu0 0
    %3615 = vmatpush1.bf16.msra.mxu0 0
    %3616 = vmatprep.subr.bf16.mxu0 0
    %3617 = vmatpush1.bf16.msra.mxu0 0
    %3618 = vmatprep.subr.bf16.mxu0 0
    %3619 = vmatpush1.bf16.msra.mxu0 0
    %3620 = vmatprep.mubr.bf16.mxu0 0
    %3621 = vmatmul.mubr.bf16.gmra.mrb[0].mxu0 %v3583
    %v3622 = vpop.f32.mrb[0].mxu0
    %v3623 = vadd.f32 0.0, %v3622
    %v3624 = vpop.f32.mrb[0].mxu0
    %v3625 = vpop.f32.mrb[0].mxu0
    %v3626 = vpop.f32.mrb[0].mxu0
    %3627 = vdwg.mxu0
    %3628 = vrot.lane.b32.xlu0 %v2650, 104
    %v3629 = vpop.permute.xlu0 %3628
    %v3631 = vsel %vm357, %v3579, 0
    %v3634 = vsel %vm568, %v3629, 0
    %3636 = vmatprep.subr.bf16.mxu0 0
    %3637 = vmatpush1.bf16.msra.mxu0 %v3634
    %3638 = vmatprep.subr.bf16.mxu0 0
    %3639 = vmatpush1.bf16.msra.mxu0 0
    %3640 = vmatprep.subr.bf16.mxu0 0
    %3641 = vmatpush1.bf16.msra.mxu0 0
    %3642 = vmatprep.subr.bf16.mxu0 0
    %3643 = vmatpush1.bf16.msra.mxu0 0
    %3644 = vmatprep.subr.bf16.mxu0 0
    %3645 = vmatpush1.bf16.msra.mxu0 0
    %3646 = vmatprep.subr.bf16.mxu0 0
    %3647 = vmatpush1.bf16.msra.mxu0 0
    %3648 = vmatprep.subr.bf16.mxu0 0
    %3649 = vmatpush1.bf16.msra.mxu0 0
    %3650 = vmatprep.subr.bf16.mxu0 0
    %3651 = vmatpush1.bf16.msra.mxu0 0
    %3652 = vmatprep.subr.bf16.mxu0 0
    %3653 = vmatpush1.bf16.msra.mxu0 0
    %3654 = vmatprep.subr.bf16.mxu0 0
    %3655 = vmatpush1.bf16.msra.mxu0 0
    %3656 = vmatprep.subr.bf16.mxu0 0
    %3657 = vmatpush1.bf16.msra.mxu0 0
    %3658 = vmatprep.subr.bf16.mxu0 0
    %3659 = vmatpush1.bf16.msra.mxu0 0
    %3660 = vmatprep.subr.bf16.mxu0 0
    %3661 = vmatpush1.bf16.msra.mxu0 0
    %3662 = vmatprep.subr.bf16.mxu0 0
    %3663 = vmatpush1.bf16.msra.mxu0 0
    %3664 = vmatprep.subr.bf16.mxu0 0
    %3665 = vmatpush1.bf16.msra.mxu0 0
    %3666 = vmatprep.subr.bf16.mxu0 0
    %3667 = vmatpush1.bf16.msra.mxu0 0
    %3668 = vmatprep.mubr.bf16.mxu0 0
    %3669 = vmatmul.mubr.bf16.gmra.mrb[0].mxu0 %v3631
    %v3670 = vpop.f32.mrb[0].mxu0
    %v3671 = vadd.f32 0.0, %v3670
    %v3672 = vpop.f32.mrb[0].mxu0
    %v3673 = vpop.f32.mrb[0].mxu0
    %v3674 = vpop.f32.mrb[0].mxu0
    %3675 = vdwg.mxu0
    %3678 = vrot.lane.b32.xlu0 %v3004, 8
    %v3679 = vpop.permute.xlu0 %3678
    %3680 = vrot.lane.b32.xlu0 %v3053, 8
    %v3681 = vpop.permute.xlu0 %3680
    %3686 = vrot.lane.b32.xlu0 %v3314, 16
    %v3687 = vpop.permute.xlu0 %3686
    %3688 = vrot.lane.b32.xlu0 %v3362, 16
    %v3689 = vpop.permute.xlu0 %3688
    %3694 = vrot.lane.b32.xlu0 %v3623, 24
    %v3695 = vpop.permute.xlu0 %3694
    %3696 = vrot.lane.b32.xlu0 %v3671, 24
    %v3697 = vpop.permute.xlu0 %3696
    %v3700 = vsel %vm357, %v2692, %v3679
    %v3701 = vsel %vm357, %v2738, %v3681
    %v3702 = vsel %vm1617, %v3700, %v3687
    %v3703 = vsel %vm1617, %v3701, %v3689
    %v3704 = vsel %vm1620, %v3702, %v3695
    %v3705 = vsel %vm1620, %v3703, %v3697
    %v3706 = vpack.c.bf16 %v3705, %v3704
    %v3707 = vpack.c.bf16 %v2250, %v2249
    %v3708 = vpack.c.bf16 %v2252, %v2251
    %v3710 = vlaneseq
    %v3711 = vshrl.u32 %v3710, 7
    %v3712 = vsub.s32 0, %v3711
    %v3713 = vrot.slane %v2254, %v3712
    %v3716 = vsel %vm210, %v3706, 0
    %3718 = vmatprep.subr.bf16.mxu0 0
    %3719 = vmatpush1.bf16.msra.mxu0 %v3707
    %3720 = vmatprep.subr.bf16.mxu0 0
    %3721 = vmatpush1.bf16.msra.mxu0 %v3708
    %3722 = vmatprep.subr.bf16.mxu0 0
    %3723 = vmatpush1.bf16.msra.mxu0 0
    %3724 = vmatprep.subr.bf16.mxu0 0
    %3725 = vmatpush1.bf16.msra.mxu0 0
    %3726 = vmatprep.subr.bf16.mxu0 0
    %3727 = vmatpush1.bf16.msra.mxu0 0
    %3728 = vmatprep.subr.bf16.mxu0 0
    %3729 = vmatpush1.bf16.msra.mxu0 0
    %3730 = vmatprep.subr.bf16.mxu0 0
    %3731 = vmatpush1.bf16.msra.mxu0 0
    %3732 = vmatprep.subr.bf16.mxu0 0
    %3733 = vmatpush1.bf16.msra.mxu0 0
    %3734 = vmatprep.subr.bf16.mxu0 0
    %3735 = vmatpush1.bf16.msra.mxu0 0
    %3736 = vmatprep.subr.bf16.mxu0 0
    %3737 = vmatpush1.bf16.msra.mxu0 0
    %3738 = vmatprep.subr.bf16.mxu0 0
    %3739 = vmatpush1.bf16.msra.mxu0 0
    %3740 = vmatprep.subr.bf16.mxu0 0
    %3741 = vmatpush1.bf16.msra.mxu0 0
    %3742 = vmatprep.subr.bf16.mxu0 0
    %3743 = vmatpush1.bf16.msra.mxu0 0
    %3744 = vmatprep.subr.bf16.mxu0 0
    %3745 = vmatpush1.bf16.msra.mxu0 0
    %3746 = vmatprep.subr.bf16.mxu0 0
    %3747 = vmatpush1.bf16.msra.mxu0 0
    %3748 = vmatprep.subr.bf16.mxu0 0
    %3749 = vmatpush1.bf16.msra.mxu0 0
    %3750 = vmatprep.mubr.bf16.mxu0 0
    %3751 = vmatmul.mubr.bf16.gmra.mrb[0].mxu0 %v3716
    %v3752 = vpop.f32.mrb[0].mxu0
    %v3753 = vadd.f32 %v3713, %v3752
    %v3754 = vpop.f32.mrb[0].mxu0
    %v3755 = vpop.f32.mrb[0].mxu0
    %v3756 = vadd.f32 %v3713, %v3755
    %v3757 = vpop.f32.mrb[0].mxu0
    %3758 = vdwg.mxu0
    %v3759 = vadd.f32 %v2225, %v3753
    %v3760 = vadd.f32 %v2226, %v3756
    %v3762 = vsel %vm210, %v3759, 0
    %v3765 = vsel %vm210, %v3760, 0
    %3767 = vmatprep.subr.mxu0 0.0
    %3768 = vmatpush1.msra.mxu0 1.0
    %3769 = vmatprep.subr.mxu0 0.0
    %3770 = vmatpush1.msra.mxu0 1.0
    %3771 = vmatprep.subr.mxu0 0.0
    %3772 = vmatpush1.msra.mxu0 1.0
    %3773 = vmatprep.subr.mxu0 0.0
    %3774 = vmatpush1.msra.mxu0 1.0
    %3775 = vmatprep.subr.mxu0 0.0
    %3776 = vmatpush1.msra.mxu0 0.0
    %3777 = vmatprep.subr.mxu0 0.0
    %3778 = vmatpush1.msra.mxu0 0.0
    %3779 = vmatprep.subr.mxu0 0.0
    %3780 = vmatpush1.msra.mxu0 0.0
    %3781 = vmatprep.subr.mxu0 0.0
    %3782 = vmatpush1.msra.mxu0 0.0
    %3783 = vmatprep.subr.mxu0 0.0
    %3784 = vmatpush1.msra.mxu0 0.0
    %3785 = vmatprep.subr.mxu0 0.0
    %3786 = vmatpush1.msra.mxu0 0.0
    %3787 = vmatprep.subr.mxu0 0.0
    %3788 = vmatpush1.msra.mxu0 0.0
    %3789 = vmatprep.subr.mxu0 0.0
    %3790 = vmatpush1.msra.mxu0 0.0
    %3791 = vmatprep.subr.mxu0 0.0
    %3792 = vmatpush1.msra.mxu0 0.0
    %3793 = vmatprep.subr.mxu0 0.0
    %3794 = vmatpush1.msra.mxu0 0.0
    %3795 = vmatprep.subr.mxu0 0.0
    %3796 = vmatpush1.msra.mxu0 0.0
    %3797 = vmatprep.subr.mxu0 0.0
    %3798 = vmatpush1.msra.mxu0 0.0
    %3799 = vmatprep.subr.mxu0 0.0
    %3800 = vmatpush1.msra.mxu0 0.0
    %3801 = vmatprep.subr.mxu0 0.0
    %3802 = vmatpush1.msra.mxu0 0.0
    %3803 = vmatprep.subr.mxu0 0.0
    %3804 = vmatpush1.msra.mxu0 0.0
    %3805 = vmatprep.subr.mxu0 0.0
    %3806 = vmatpush1.msra.mxu0 0.0
    %3807 = vmatprep.subr.mxu0 0.0
    %3808 = vmatpush1.msra.mxu0 0.0
    %3809 = vmatprep.subr.mxu0 0.0
    %3810 = vmatpush1.msra.mxu0 0.0
    %3811 = vmatprep.subr.mxu0 0.0
    %3812 = vmatpush1.msra.mxu0 0.0
    %3813 = vmatprep.subr.mxu0 0.0
    %3814 = vmatpush1.msra.mxu0 0.0
    %3815 = vmatprep.subr.mxu0 0.0
    %3816 = vmatpush1.msra.mxu0 0.0
    %3817 = vmatprep.subr.mxu0 0.0
    %3818 = vmatpush1.msra.mxu0 0.0
    %3819 = vmatprep.subr.mxu0 0.0
    %3820 = vmatpush1.msra.mxu0 0.0
    %3821 = vmatprep.subr.mxu0 0.0
    %3822 = vmatpush1.msra.mxu0 0.0
    %3823 = vmatprep.subr.mxu0 0.0
    %3824 = vmatpush1.msra.mxu0 0.0
    %3825 = vmatprep.subr.mxu0 0.0
    %3826 = vmatpush1.msra.mxu0 0.0
    %3827 = vmatprep.subr.mxu0 0.0
    %3828 = vmatpush1.msra.mxu0 0.0
    %3829 = vmatprep.subr.mxu0 0.0
    %3830 = vmatpush1.msra.mxu0 0.0
    %3831 = vmatprep.mubr.f32.mxu0 0.0
    %3832 = vmatmul.mubr.f32.gmra.mrb[0].mxu0 %v3762
    %v3833 = vpop.f32.mrb[0].mxu0
    %v3834 = vadd.f32 0.0, %v3833
    %v3835 = vpop.f32.mrb[0].mxu0
    %3836 = vmatprep.mubr.f32.mxu0 0.0
    %3837 = vmatmul.mubr.f32.gmra.mrb[0].mxu0 %v3765
    %v3838 = vpop.f32.mrb[0].mxu0
    %v3839 = vadd.f32 0.0, %v3838
    %v3840 = vpop.f32.mrb[0].mxu0
    %3841 = vdwg.mxu0
    %v3842 = vmul.f32 %v3759, %v3759
    %v3843 = vmul.f32 %v3760, %v3760
    %v3845 = vsel %vm210, %v3842, 0
    %v3848 = vsel %vm210, %v3843, 0
    %3850 = vmatprep.subr.mxu0 0.0
    %3851 = vmatpush1.msra.mxu0 1.0
    %3852 = vmatprep.subr.mxu0 0.0
    %3853 = vmatpush1.msra.mxu0 1.0
    %3854 = vmatprep.subr.mxu0 0.0
    %3855 = vmatpush1.msra.mxu0 1.0
    %3856 = vmatprep.subr.mxu0 0.0
    %3857 = vmatpush1.msra.mxu0 1.0
    %3858 = vmatprep.subr.mxu0 0.0
    %3859 = vmatpush1.msra.mxu0 0.0
    %3860 = vmatprep.subr.mxu0 0.0
    %3861 = vmatpush1.msra.mxu0 0.0
    %3862 = vmatprep.subr.mxu0 0.0
    %3863 = vmatpush1.msra.mxu0 0.0
    %3864 = vmatprep.subr.mxu0 0.0
    %3865 = vmatpush1.msra.mxu0 0.0
    %3866 = vmatprep.subr.mxu0 0.0
    %3867 = vmatpush1.msra.mxu0 0.0
    %3868 = vmatprep.subr.mxu0 0.0
    %3869 = vmatpush1.msra.mxu0 0.0
    %3870 = vmatprep.subr.mxu0 0.0
    %3871 = vmatpush1.msra.mxu0 0.0
    %3872 = vmatprep.subr.mxu0 0.0
    %3873 = vmatpush1.msra.mxu0 0.0
    %3874 = vmatprep.subr.mxu0 0.0
    %3875 = vmatpush1.msra.mxu0 0.0
    %3876 = vmatprep.subr.mxu0 0.0
    %3877 = vmatpush1.msra.mxu0 0.0
    %3878 = vmatprep.subr.mxu0 0.0
    %3879 = vmatpush1.msra.mxu0 0.0
    %3880 = vmatprep.subr.mxu0 0.0
    %3881 = vmatpush1.msra.mxu0 0.0
    %3882 = vmatprep.subr.mxu0 0.0
    %3883 = vmatpush1.msra.mxu0 0.0
    %3884 = vmatprep.subr.mxu0 0.0
    %3885 = vmatpush1.msra.mxu0 0.0
    %3886 = vmatprep.subr.mxu0 0.0
    %3887 = vmatpush1.msra.mxu0 0.0
    %3888 = vmatprep.subr.mxu0 0.0
    %3889 = vmatpush1.msra.mxu0 0.0
    %3890 = vmatprep.subr.mxu0 0.0
    %3891 = vmatpush1.msra.mxu0 0.0
    %3892 = vmatprep.subr.mxu0 0.0
    %3893 = vmatpush1.msra.mxu0 0.0
    %3894 = vmatprep.subr.mxu0 0.0
    %3895 = vmatpush1.msra.mxu0 0.0
    %3896 = vmatprep.subr.mxu0 0.0
    %3897 = vmatpush1.msra.mxu0 0.0
    %3898 = vmatprep.subr.mxu0 0.0
    %3899 = vmatpush1.msra.mxu0 0.0
    %3900 = vmatprep.subr.mxu0 0.0
    %3901 = vmatpush1.msra.mxu0 0.0
    %3902 = vmatprep.subr.mxu0 0.0
    %3903 = vmatpush1.msra.mxu0 0.0
    %3904 = vmatprep.subr.mxu0 0.0
    %3905 = vmatpush1.msra.mxu0 0.0
    %3906 = vmatprep.subr.mxu0 0.0
    %3907 = vmatpush1.msra.mxu0 0.0
    %3908 = vmatprep.subr.mxu0 0.0
    %3909 = vmatpush1.msra.mxu0 0.0
    %3910 = vmatprep.subr.mxu0 0.0
    %3911 = vmatpush1.msra.mxu0 0.0
    %3912 = vmatprep.subr.mxu0 0.0
    %3913 = vmatpush1.msra.mxu0 0.0
    %3914 = vmatprep.mubr.f32.mxu0 0.0
    %3915 = vmatmul.mubr.f32.gmra.mrb[0].mxu0 %v3845
    %v3916 = vpop.f32.mrb[0].mxu0
    %v3917 = vadd.f32 0.0, %v3916
    %v3918 = vpop.f32.mrb[0].mxu0
    %3919 = vmatprep.mubr.f32.mxu0 0.0
    %3920 = vmatmul.mubr.f32.gmra.mrb[0].mxu0 %v3848
    %v3921 = vpop.f32.mrb[0].mxu0
    %v3922 = vadd.f32 0.0, %v3921
    %v3923 = vpop.f32.mrb[0].mxu0
    %3924 = vdwg.mxu0
    %v3925 = vmul.f32 %v3834, 0.03125
    %v3926 = vmul.f32 %v3839, 0.03125
    %v3927 = vmul.f32 %v3917, 0.03125
    %v3928 = vmul.f32 %v3922, 0.03125
    %v3929 = vmul.f32 %v3925, %v3925
    %v3930 = vmul.f32 %v3926, %v3926
    %v3931 = vsub.f32 %v3927, %v3929
    %v3932 = vsub.f32 %v3928, %v3930
    %v3933 = vmax.f32 %v3931, 0.0
    %v3934 = vmax.f32 %v3932, 0.0
    %3936 = vset.pattern.permute.xlu0 0
    %3937 = vperm.xlu0 %3936, %v3925
    %v3938 = vpop.permute.xlu0 %3937
    %3941 = vset.pattern.permute.xlu0 0
    %3942 = vperm.xlu0 %3941, %v3926
    %v3943 = vpop.permute.xlu0 %3942
    %v3945 = vsub.f32 %v3759, %v3938
    %v3946 = vsub.f32 %v3760, %v3943
    %v3947 = vadd.f32 %v3933, 1e-05
    %v3948 = vadd.f32 %v3934, 1e-05
    %v3949 = vrsqrt.pop %v3947
    %v3950 = vrsqrt.pop %v3948
    %3952 = vset.pattern.permute.xlu0 0
    %3953 = vperm.xlu0 %3952, %v3949
    %v3954 = vpop.permute.xlu0 %3953
    %3957 = vset.pattern.permute.xlu0 0
    %3958 = vperm.xlu0 %3957, %v3950
    %v3959 = vpop.permute.xlu0 %3958
    %v3961 = vmul.f32 %v3945, %v3954
    %v3962 = vmul.f32 %v3946, %v3959
    %v3964 = vlaneseq
    %v3965 = vshrl.u32 %v3964, 7
    %v3966 = vsub.s32 0, %v3965
    %v3967 = vrot.slane %v2256, %v3966
    %v3969 = vmul.f32 %v3961, %v3967
    %v3970 = vmul.f32 %v3962, %v3967
    %v3972 = vlaneseq
    %v3973 = vshrl.u32 %v3972, 7
    %v3974 = vsub.s32 0, %v3973
    %v3975 = vrot.slane %v2258, %v3974
    %v3977 = vadd.f32 %v3969, %v3975
    %v3978 = vadd.f32 %v3970, %v3975
    %v3979 = vpack.c.bf16 %v3978, %v3977
    %v3980 = vpack.c.bf16 %v2261, %v2260
    %v3981 = vpack.c.bf16 %v2263, %v2262
    %v3983 = vlaneseq
    %v3984 = vshrl.u32 %v3983, 7
    %v3985 = vsub.s32 0, %v3984
    %v3986 = vrot.slane %v2265, %v3985
    %v3989 = vsel %vm210, %v3979, 0
    %3991 = vmatprep.subr.bf16.mxu0 0
    %3992 = vmatpush1.bf16.msra.mxu0 %v3980
    %3993 = vmatprep.subr.bf16.mxu0 0
    %3994 = vmatpush1.bf16.msra.mxu0 %v3981
    %3995 = vmatprep.subr.bf16.mxu0 0
    %3996 = vmatpush1.bf16.msra.mxu0 0
    %3997 = vmatprep.subr.bf16.mxu0 0
    %3998 = vmatpush1.bf16.msra.mxu0 0
    %3999 = vmatprep.subr.bf16.mxu0 0
    %4000 = vmatpush1.bf16.msra.mxu0 0
    %4001 = vmatprep.subr.bf16.mxu0 0
    %4002 = vmatpush1.bf16.msra.mxu0 0
    %4003 = vmatprep.subr.bf16.mxu0 0
    %4004 = vmatpush1.bf16.msra.mxu0 0
    %4005 = vmatprep.subr.bf16.mxu0 0
    %4006 = vmatpush1.bf16.msra.mxu0 0
    %4007 = vmatprep.subr.bf16.mxu0 0
    %4008 = vmatpush1.bf16.msra.mxu0 0
    %4009 = vmatprep.subr.bf16.mxu0 0
    %4010 = vmatpush1.bf16.msra.mxu0 0
    %4011 = vmatprep.subr.bf16.mxu0 0
    %4012 = vmatpush1.bf16.msra.mxu0 0
    %4013 = vmatprep.subr.bf16.mxu0 0
    %4014 = vmatpush1.bf16.msra.mxu0 0
    %4015 = vmatprep.subr.bf16.mxu0 0
    %4016 = vmatpush1.bf16.msra.mxu0 0
    %4017 = vmatprep.subr.bf16.mxu0 0
    %4018 = vmatpush1.bf16.msra.mxu0 0
    %4019 = vmatprep.subr.bf16.mxu0 0
    %4020 = vmatpush1.bf16.msra.mxu0 0
    %4021 = vmatprep.subr.bf16.mxu0 0
    %4022 = vmatpush1.bf16.msra.mxu0 0
    %4023 = vmatprep.mubr.bf16.mxu0 0
    %4024 = vmatmul.mubr.bf16.gmra.mrb[0].mxu0 %v3989
    %v4025 = vpop.f32.mrb[0].mxu0
    %v4026 = vadd.f32 %v3986, %v4025
    %v4027 = vpop.f32.mrb[0].mxu0
    %v4028 = vpop.f32.mrb[0].mxu0
    %v4029 = vadd.f32 %v3986, %v4028
    %v4030 = vpop.f32.mrb[0].mxu0
    %4031 = vdwg.mxu0
    %v4032 = vmax.f32 %v4026, 0.0
    %v4033 = vmax.f32 %v4029, 0.0
    %v4034 = vpack.c.bf16 %v4033, %v4032
    %v4035 = vpack.c.bf16 %v2268, %v2267
    %v4036 = vpack.c.bf16 %v2270, %v2269
    %v4037 = vpack.c.bf16 %v2272, %v2271
    %v4038 = vpack.c.bf16 %v2274, %v2273
    %v4039 = vpack.c.bf16 %v2276, %v2275
    %v4040 = vpack.c.bf16 %v2278, %v2277
    %v4041 = vpack.c.bf16 %v2280, %v2279
    %v4042 = vpack.c.bf16 %v2282, %v2281
    %v4044 = vlaneseq
    %v4045 = vshrl.u32 %v4044, 7
    %v4046 = vsub.s32 0, %v4045
    %v4047 = vrot.slane %v2284, %v4046
    %4049 = vmatprep.subr.bf16.mxu0 0
    %4050 = vmatpush1.bf16.msra.mxu0 %v4035
    %4051 = vmatprep.subr.bf16.mxu0 0
    %4052 = vmatpush1.bf16.msra.mxu0 %v4036
    %4053 = vmatprep.subr.bf16.mxu0 0
    %4054 = vmatpush1.bf16.msra.mxu0 %v4037
    %4055 = vmatprep.subr.bf16.mxu0 0
    %4056 = vmatpush1.bf16.msra.mxu0 %v4038
    %4057 = vmatprep.subr.bf16.mxu0 0
    %4058 = vmatpush1.bf16.msra.mxu0 %v4039
    %4059 = vmatprep.subr.bf16.mxu0 0
    %4060 = vmatpush1.bf16.msra.mxu0 %v4040
    %4061 = vmatprep.subr.bf16.mxu0 0
    %4062 = vmatpush1.bf16.msra.mxu0 %v4041
    %4063 = vmatprep.subr.bf16.mxu0 0
    %4064 = vmatpush1.bf16.msra.mxu0 %v4042
    %4065 = vmatprep.subr.bf16.mxu0 0
    %4066 = vmatpush1.bf16.msra.mxu0 0
    %4067 = vmatprep.subr.bf16.mxu0 0
    %4068 = vmatpush1.bf16.msra.mxu0 0
    %4069 = vmatprep.subr.bf16.mxu0 0
    %4070 = vmatpush1.bf16.msra.mxu0 0
    %4071 = vmatprep.subr.bf16.mxu0 0
    %4072 = vmatpush1.bf16.msra.mxu0 0
    %4073 = vmatprep.subr.bf16.mxu0 0
    %4074 = vmatpush1.bf16.msra.mxu0 0
    %4075 = vmatprep.subr.bf16.mxu0 0
    %4076 = vmatpush1.bf16.msra.mxu0 0
    %4077 = vmatprep.subr.bf16.mxu0 0
    %4078 = vmatpush1.bf16.msra.mxu0 0
    %4079 = vmatprep.subr.bf16.mxu0 0
    %4080 = vmatpush1.bf16.msra.mxu0 0
    %4081 = vmatprep.mubr.bf16.mxu0 0
    %4082 = vmatmul.mubr.bf16.gmra.mrb[0].mxu0 %v4034
    %v4083 = vpop.f32.mrb[0].mxu0
    %v4084 = vadd.f32 %v4047, %v4083
    %v4085 = vpop.f32.mrb[0].mxu0
    %v4086 = vpop.f32.mrb[0].mxu0
    %v4087 = vadd.f32 %v4047, %v4086
    %v4088 = vpop.f32.mrb[0].mxu0
    %4089 = vdwg.mxu0
    %v4090 = vadd.f32 %v3977, %v4084
    %v4091 = vadd.f32 %v3978, %v4087
    %v4093 = vsel %vm210, %v4090, 0
    %v4096 = vsel %vm210, %v4091, 0
    %4098 = vmatprep.subr.mxu0 0.0
    %4099 = vmatpush1.msra.mxu0 1.0
    %4100 = vmatprep.subr.mxu0 0.0
    %4101 = vmatpush1.msra.mxu0 1.0
    %4102 = vmatprep.subr.mxu0 0.0
    %4103 = vmatpush1.msra.mxu0 1.0
    %4104 = vmatprep.subr.mxu0 0.0
    %4105 = vmatpush1.msra.mxu0 1.0
    %4106 = vmatprep.subr.mxu0 0.0
    %4107 = vmatpush1.msra.mxu0 0.0
    %4108 = vmatprep.subr.mxu0 0.0
    %4109 = vmatpush1.msra.mxu0 0.0
    %4110 = vmatprep.subr.mxu0 0.0
    %4111 = vmatpush1.msra.mxu0 0.0
    %4112 = vmatprep.subr.mxu0 0.0
    %4113 = vmatpush1.msra.mxu0 0.0
    %4114 = vmatprep.subr.mxu0 0.0
    %4115 = vmatpush1.msra.mxu0 0.0
    %4116 = vmatprep.subr.mxu0 0.0
    %4117 = vmatpush1.msra.mxu0 0.0
    %4118 = vmatprep.subr.mxu0 0.0
    %4119 = vmatpush1.msra.mxu0 0.0
    %4120 = vmatprep.subr.mxu0 0.0
    %4121 = vmatpush1.msra.mxu0 0.0
    %4122 = vmatprep.subr.mxu0 0.0
    %4123 = vmatpush1.msra.mxu0 0.0
    %4124 = vmatprep.subr.mxu0 0.0
    %4125 = vmatpush1.msra.mxu0 0.0
    %4126 = vmatprep.subr.mxu0 0.0
    %4127 = vmatpush1.msra.mxu0 0.0
    %4128 = vmatprep.subr.mxu0 0.0
    %4129 = vmatpush1.msra.mxu0 0.0
    %4130 = vmatprep.subr.mxu0 0.0
    %4131 = vmatpush1.msra.mxu0 0.0
    %4132 = vmatprep.subr.mxu0 0.0
    %4133 = vmatpush1.msra.mxu0 0.0
    %4134 = vmatprep.subr.mxu0 0.0
    %4135 = vmatpush1.msra.mxu0 0.0
    %4136 = vmatprep.subr.mxu0 0.0
    %4137 = vmatpush1.msra.mxu0 0.0
    %4138 = vmatprep.subr.mxu0 0.0
    %4139 = vmatpush1.msra.mxu0 0.0
    %4140 = vmatprep.subr.mxu0 0.0
    %4141 = vmatpush1.msra.mxu0 0.0
    %4142 = vmatprep.subr.mxu0 0.0
    %4143 = vmatpush1.msra.mxu0 0.0
    %4144 = vmatprep.subr.mxu0 0.0
    %4145 = vmatpush1.msra.mxu0 0.0
    %4146 = vmatprep.subr.mxu0 0.0
    %4147 = vmatpush1.msra.mxu0 0.0
    %4148 = vmatprep.subr.mxu0 0.0
    %4149 = vmatpush1.msra.mxu0 0.0
    %4150 = vmatprep.subr.mxu0 0.0
    %4151 = vmatpush1.msra.mxu0 0.0
    %4152 = vmatprep.subr.mxu0 0.0
    %4153 = vmatpush1.msra.mxu0 0.0
    %4154 = vmatprep.subr.mxu0 0.0
    %4155 = vmatpush1.msra.mxu0 0.0
    %4156 = vmatprep.subr.mxu0 0.0
    %4157 = vmatpush1.msra.mxu0 0.0
    %4158 = vmatprep.subr.mxu0 0.0
    %4159 = vmatpush1.msra.mxu0 0.0
    %4160 = vmatprep.subr.mxu0 0.0
    %4161 = vmatpush1.msra.mxu0 0.0
    %4162 = vmatprep.mubr.f32.mxu0 0.0
    %4163 = vmatmul.mubr.f32.gmra.mrb[0].mxu0 %v4093
    %v4164 = vpop.f32.mrb[0].mxu0
    %v4165 = vadd.f32 0.0, %v4164
    %v4166 = vpop.f32.mrb[0].mxu0
    %4167 = vmatprep.mubr.f32.mxu0 0.0
    %4168 = vmatmul.mubr.f32.gmra.mrb[0].mxu0 %v4096
    %v4169 = vpop.f32.mrb[0].mxu0
    %v4170 = vadd.f32 0.0, %v4169
    %v4171 = vpop.f32.mrb[0].mxu0
    %4172 = vdwg.mxu0
    %v4173 = vmul.f32 %v4090, %v4090
    %v4174 = vmul.f32 %v4091, %v4091
    %v4176 = vsel %vm210, %v4173, 0
    %v4179 = vsel %vm210, %v4174, 0
    %4181 = vmatprep.subr.mxu0 0.0
    %4182 = vmatpush1.msra.mxu0 1.0
    %4183 = vmatprep.subr.mxu0 0.0
    %4184 = vmatpush1.msra.mxu0 1.0
    %4185 = vmatprep.subr.mxu0 0.0
    %4186 = vmatpush1.msra.mxu0 1.0
    %4187 = vmatprep.subr.mxu0 0.0
    %4188 = vmatpush1.msra.mxu0 1.0
    %4189 = vmatprep.subr.mxu0 0.0
    %4190 = vmatpush1.msra.mxu0 0.0
    %4191 = vmatprep.subr.mxu0 0.0
    %4192 = vmatpush1.msra.mxu0 0.0
    %4193 = vmatprep.subr.mxu0 0.0
    %4194 = vmatpush1.msra.mxu0 0.0
    %4195 = vmatprep.subr.mxu0 0.0
    %4196 = vmatpush1.msra.mxu0 0.0
    %4197 = vmatprep.subr.mxu0 0.0
    %4198 = vmatpush1.msra.mxu0 0.0
    %4199 = vmatprep.subr.mxu0 0.0
    %4200 = vmatpush1.msra.mxu0 0.0
    %4201 = vmatprep.subr.mxu0 0.0
    %4202 = vmatpush1.msra.mxu0 0.0
    %4203 = vmatprep.subr.mxu0 0.0
    %4204 = vmatpush1.msra.mxu0 0.0
    %4205 = vmatprep.subr.mxu0 0.0
    %4206 = vmatpush1.msra.mxu0 0.0
    %4207 = vmatprep.subr.mxu0 0.0
    %4208 = vmatpush1.msra.mxu0 0.0
    %4209 = vmatprep.subr.mxu0 0.0
    %4210 = vmatpush1.msra.mxu0 0.0
    %4211 = vmatprep.subr.mxu0 0.0
    %4212 = vmatpush1.msra.mxu0 0.0
    %4213 = vmatprep.subr.mxu0 0.0
    %4214 = vmatpush1.msra.mxu0 0.0
    %4215 = vmatprep.subr.mxu0 0.0
    %4216 = vmatpush1.msra.mxu0 0.0
    %4217 = vmatprep.subr.mxu0 0.0
    %4218 = vmatpush1.msra.mxu0 0.0
    %4219 = vmatprep.subr.mxu0 0.0
    %4220 = vmatpush1.msra.mxu0 0.0
    %4221 = vmatprep.subr.mxu0 0.0
    %4222 = vmatpush1.msra.mxu0 0.0
    %4223 = vmatprep.subr.mxu0 0.0
    %4224 = vmatpush1.msra.mxu0 0.0
    %4225 = vmatprep.subr.mxu0 0.0
    %4226 = vmatpush1.msra.mxu0 0.0
    %4227 = vmatprep.subr.mxu0 0.0
    %4228 = vmatpush1.msra.mxu0 0.0
    %4229 = vmatprep.subr.mxu0 0.0
    %4230 = vmatpush1.msra.mxu0 0.0
    %4231 = vmatprep.subr.mxu0 0.0
    %4232 = vmatpush1.msra.mxu0 0.0
    %4233 = vmatprep.subr.mxu0 0.0
    %4234 = vmatpush1.msra.mxu0 0.0
    %4235 = vmatprep.subr.mxu0 0.0
    %4236 = vmatpush1.msra.mxu0 0.0
    %4237 = vmatprep.subr.mxu0 0.0
    %4238 = vmatpush1.msra.mxu0 0.0
    %4239 = vmatprep.subr.mxu0 0.0
    %4240 = vmatpush1.msra.mxu0 0.0
    %4241 = vmatprep.subr.mxu0 0.0
    %4242 = vmatpush1.msra.mxu0 0.0
    %4243 = vmatprep.subr.mxu0 0.0
    %4244 = vmatpush1.msra.mxu0 0.0
    %4245 = vmatprep.mubr.f32.mxu0 0.0
    %4246 = vmatmul.mubr.f32.gmra.mrb[0].mxu0 %v4176
    %v4247 = vpop.f32.mrb[0].mxu0
    %v4248 = vadd.f32 0.0, %v4247
    %v4249 = vpop.f32.mrb[0].mxu0
    %4250 = vmatprep.mubr.f32.mxu0 0.0
    %4251 = vmatmul.mubr.f32.gmra.mrb[0].mxu0 %v4179
    %v4252 = vpop.f32.mrb[0].mxu0
    %v4253 = vadd.f32 0.0, %v4252
    %v4254 = vpop.f32.mrb[0].mxu0
    %4255 = vdwg.mxu0
    %v4256 = vmul.f32 %v4165, 0.03125
    %v4257 = vmul.f32 %v4170, 0.03125
    %v4258 = vmul.f32 %v4248, 0.03125
    %v4259 = vmul.f32 %v4253, 0.03125
    %v4260 = vmul.f32 %v4256, %v4256
    %v4261 = vmul.f32 %v4257, %v4257
    %v4262 = vsub.f32 %v4258, %v4260
    %v4263 = vsub.f32 %v4259, %v4261
    %v4264 = vmax.f32 %v4262, 0.0
    %v4265 = vmax.f32 %v4263, 0.0
    %4267 = vset.pattern.permute.xlu0 0
    %4268 = vperm.xlu0 %4267, %v4256
    %v4269 = vpop.permute.xlu0 %4268
    %4272 = vset.pattern.permute.xlu0 0
    %4273 = vperm.xlu0 %4272, %v4257
    %v4274 = vpop.permute.xlu0 %4273
    %v4276 = vsub.f32 %v4090, %v4269
    %v4277 = vsub.f32 %v4091, %v4274
    %v4278 = vadd.f32 %v4264, 1e-05
    %v4279 = vadd.f32 %v4265, 1e-05
    %v4280 = vrsqrt.pop %v4278
    %v4281 = vrsqrt.pop %v4279
    %4283 = vset.pattern.permute.xlu0 0
    %4284 = vperm.xlu0 %4283, %v4280
    %v4285 = vpop.permute.xlu0 %4284
    %4288 = vset.pattern.permute.xlu0 0
    %4289 = vperm.xlu0 %4288, %v4281
    %v4290 = vpop.permute.xlu0 %4289
    %v4292 = vmul.f32 %v4276, %v4285
    %v4293 = vmul.f32 %v4277, %v4290
    %v4295 = vlaneseq
    %v4296 = vshrl.u32 %v4295, 7
    %v4297 = vsub.s32 0, %v4296
    %v4298 = vrot.slane %v2286, %v4297
    %v4300 = vmul.f32 %v4292, %v4298
    %v4301 = vmul.f32 %v4293, %v4298
    %v4303 = vlaneseq
    %v4304 = vshrl.u32 %v4303, 7
    %v4305 = vsub.s32 0, %v4304
    %v4306 = vrot.slane %v2288, %v4305
    %v4308 = vadd.f32 %v4300, %v4306
    %v4309 = vadd.f32 %v4301, %v4306
    %v4310 = vld [vmem:[%s18] sm:$0xff]
    %v4311 = vld [vmem:[%s18 + $0x8] sm:$0xff]
    %v4312 = vld [vmem:[%s18 + $0x10] sm:$0xff]
    %v4313 = vld [vmem:[%s18 + $0x18] sm:$0xff]
    %v4314 = vpack.c.bf16 %v4308, %v4308
    %v4315 = vpack.c.bf16 %v4309, %v4309
    %v4316 = vpack.c.bf16 %v4311, %v4310
    %v4317 = vpack.c.bf16 %v4313, %v4312
    %v4318 = vld [vmem:[%s19] sm:$0x1]
    %v4320 = vlaneseq
    %v4321 = vshrl.u32 %v4320, 7
    %v4322 = vsub.s32 0, %v4321
    %v4323 = vrot.slane %v4318, %v4322
    %v4327 = vunpack.c.l.b16 %v4314
    %v4328 = vunpack.c.l.b16 %v4315
    %v4329 = vrot.slane %v4328, 7
    %vm4330 = vcmask 1041409
    %v4331 = vsel %vm4330, %v4329, %v4327
    %v4332 = vpack.c.b16 %v4331, %v4331
    %v4334 = vsel %vm210, %v4332, 0
    %4336 = vmatprep.subr.bf16.mxu0 0
    %4337 = vmatpush1.bf16.msra.mxu0 %v4316
    %4338 = vmatprep.subr.bf16.mxu0 0
    %4339 = vmatpush1.bf16.msra.mxu0 %v4317
    %4340 = vmatprep.subr.bf16.mxu0 0
    %4341 = vmatpush1.bf16.msra.mxu0 0
    %4342 = vmatprep.subr.bf16.mxu0 0
    %4343 = vmatpush1.bf16.msra.mxu0 0
    %4344 = vmatprep.subr.bf16.mxu0 0
    %4345 = vmatpush1.bf16.msra.mxu0 0
    %4346 = vmatprep.subr.bf16.mxu0 0
    %4347 = vmatpush1.bf16.msra.mxu0 0
    %4348 = vmatprep.subr.bf16.mxu0 0
    %4349 = vmatpush1.bf16.msra.mxu0 0
    %4350 = vmatprep.subr.bf16.mxu0 0
    %4351 = vmatpush1.bf16.msra.mxu0 0
    %4352 = vmatprep.subr.bf16.mxu0 0
    %4353 = vmatpush1.bf16.msra.mxu0 0
    %4354 = vmatprep.subr.bf16.mxu0 0
    %4355 = vmatpush1.bf16.msra.mxu0 0
    %4356 = vmatprep.subr.bf16.mxu0 0
    %4357 = vmatpush1.bf16.msra.mxu0 0
    %4358 = vmatprep.subr.bf16.mxu0 0
    %4359 = vmatpush1.bf16.msra.mxu0 0
    %4360 = vmatprep.subr.bf16.mxu0 0
    %4361 = vmatpush1.bf16.msra.mxu0 0
    %4362 = vmatprep.subr.bf16.mxu0 0
    %4363 = vmatpush1.bf16.msra.mxu0 0
    %4364 = vmatprep.subr.bf16.mxu0 0
    %4365 = vmatpush1.bf16.msra.mxu0 0
    %4366 = vmatprep.subr.bf16.mxu0 0
    %4367 = vmatpush1.bf16.msra.mxu0 0
    %4368 = vmatprep.mubr.bf16.mxu0 0
    %4369 = vmatmul.mubr.bf16.gmra.mrb[0].mxu0 %v4334
    %v4370 = vpop.f32.mrb[0].mxu0
    %v4371 = vadd.f32 %v4323, %v4370
    %v4372 = vpop.f32.mrb[0].mxu0
    %v4373 = vpop.f32.mrb[0].mxu0
    %v4374 = vpop.f32.mrb[0].mxu0
    %4375 = vdwg.mxu0
    %v4378 = vunpack.c.l.s4 1966171168
    %v4379 = vunpack.c.0.s8 %v4378
    %v4380 = vlaneseq
    %v4381 = vshrl.u32 %v4380, 7
    %v4382 = vsub.s32 %v4379, %v4381
    %v4383 = vrot.slane %v4371, %v4382
    %v4384 = vcombine.high %v4383, %v4383
    %v4386 = vunpack.c.l.s4 1966171168
    %v4387 = vunpack.c.0.s8 %v4386
    %v4388 = vlaneseq
    %v4389 = vshrl.u32 %v4388, 7
    %v4390 = vsub.s32 %v4387, %v4389
    %v4391 = vrot.slane %v4383, %v4390
    %v4393 = vunpack.c.l.s4 1966171168
    %v4394 = vunpack.c.0.s8 %v4393
    %v4395 = vlaneseq
    %v4396 = vshrl.u32 %v4395, 7
    %v4397 = vsub.s32 %v4394, %v4396
    %v4398 = vrot.slane %v4384, %v4397
    %4401 = vst [vmem:[#allocation11] sm:$0x1] %v4391
    %4402 = vst [vmem:[#allocation11 + $0x1] sm:$0x1] %v4398
    // Predicated region
    $region102: #{tpu_custom_call.1} parent=1 // pred_check
      _
    $region103: #{tpu_custom_call.1} parent=1 // pred_check_branch
      %4404 = sbr.rel (0) target = $region105
    $region104: #{tpu_custom_call.1} parent=1 // pred_region
      %s4406 = ssub.s32 32, 32
      %4407 = vsyncadd [#allocation4], %s4406
      %s4408 = sshll.u32 [#allocation11], 4
      %s4409 = int_to_ptr.vmem [resolvable:$true] %s4408
      %4414 = dma.vmem_to_hbm [thread:$0]  %s4409, 32, %s20, [#allocation4], 16, 16, 1
    $region105: #{tpu_custom_call.1} parent=1 // pred_fallthru
      _
    // Predicated region
    $region106: #{tpu_custom_call.1} parent=1 // pred_check
      _
    $region107: #{tpu_custom_call.1} parent=1 // pred_check_branch
      %4416 = sbr.rel (0) target = $region109
    $region108: #{tpu_custom_call.1} parent=1 // pred_region
      %4417 = dma.done [#allocation4], 32
    $region109: #{tpu_custom_call.1} parent=1 // pred_fallthru
      _
    %4418 = vsyncpa [#allocation3], 1
    %4419 = vsyncpa [#allocation6], 1
    %4420 = vsyncpa [#allocation9], 1
    %4421 = vsyncpa [#allocation4], 1

</llo_original>
